<compile_context>
chip_gen: v5e
topology: v5e:2x2
jax: 0.10.0
libtpu: 0.0.40
codegen_flags: <defaults>
</compile_context>

<pallas_src>
import functools
import math

import jax
import jax.numpy as jnp
from jax import lax
from jax.experimental import pallas as pl
from jax.experimental.pallas import tpu as pltpu

# ----------------------------- config ---------------------------------------
B = 2          # batch
C = 3          # channels
IMG = 16       # image height/width
P = 4          # patch size
NP = (IMG // P) ** 2   # 16 patches
S = NP + 1             # 17 tokens (CLS + patches)
H = 32                 # hidden size
NH = 4                 # attention heads
HD = H // NH           # head dim
MLP = 64               # intermediate size
L = 2                  # encoder layers
CPP = C * P * P        # flattened patch length (48)
EPS = 1e-12            # HF ViT layer_norm_eps
_SQRT1_2 = 1.0 / math.sqrt(2.0)


# --------------------------- kernel helpers ----------------------------------
def _layernorm(x, g, b):
    mu = jnp.mean(x, axis=-1, keepdims=True)
    var = jnp.mean((x - mu) ** 2, axis=-1, keepdims=True)
    return (x - mu) * lax.rsqrt(var + EPS) * g + b


def _gelu(x):
    # Exact (erf) GELU, matching HF ViT. erf is evaluated with the
    # Abramowitz-Stegun 7.1.26 polynomial (|err| < 1.5e-7) since lax.erf has no
    # Pallas/Mosaic lowering; the exp goes to the (otherwise idle) EUP slot.
    z = x * _SQRT1_2
    a = jnp.abs(z)
    t = 1.0 / (1.0 + 0.3275911 * a)
    poly = t * (0.254829592 + t * (-0.284496736 + t * (1.421413741
               + t * (-1.453152027 + t * 1.061405429))))
    erf_a = 1.0 - poly * jnp.exp(-(a * a))
    erf_z = jnp.where(z >= 0.0, erf_a, -erf_a)
    return 0.5 * x * (1.0 + erf_z)


# ------------------------------ fused kernel ---------------------------------
def vit_kernel(bpg, pix_ref, wp_ref, add_ref, wqkv_ref, bqkv_ref, wo_ref,
               w1_ref, b1_ref, w2_ref, vec_ref, lnf_ref, out_ref):
    """Fused ViT forward for `bpg` images (folded into the matmul M dimension):
    patch embed + CLS/pos + L encoder layers + final LN."""
    m = bpg * S

    # Patch embedding. The (x-0.5)/0.5 normalization is folded into w_patch /
    # add_slab host-side, so the raw pixel patches hit the MXU directly. Row 0 of
    # each image's pix block is all-zeros (CLS slot); add_ref carries cls+pos[0]
    # there and pos[i]+conv_bias-colsum(W) on the patch rows.
    xp = pix_ref[...].reshape(m, CPP).astype(jnp.bfloat16)
    x = jnp.dot(xp, wp_ref[...], preferred_element_type=jnp.float32) + add_ref[...]

    dn_bt = (((1,), (1,)), ((), ()))      # A @ B.T (contract last dims of both)

    for l in range(L):                    # static unroll over layers
        # ---- self-attention block (pre-LN) ----
        h = _layernorm(x, vec_ref[l, 0], vec_ref[l, 1])
        # One fused QKV matmul; 1/sqrt(HD) already folded into the Q columns.
        qkv = jnp.dot(h.astype(jnp.bfloat16), wqkv_ref[l],
                      preferred_element_type=jnp.float32) + bqkv_ref[l]  # [m, 3H]

        ctx_imgs = []
        for bi in range(bpg):             # per-image [S,S] attention core
            r0 = bi * S
            heads = []
            for hi in range(NH):          # static unroll; 8-lane slices are selects
                c = hi * HD
                q = qkv[r0:r0 + S, c:c + HD].astype(jnp.bfloat16)
                k = qkv[r0:r0 + S, H + c:H + c + HD].astype(jnp.bfloat16)
                v = qkv[r0:r0 + S, 2 * H + c:2 * H + c + HD].astype(jnp.bfloat16)
                s = lax.dot_general(q, k, dn_bt,
                                    preferred_element_type=jnp.float32)   # [S, S]
                s = s - jnp.max(s, axis=-1, keepdims=True)
                e = jnp.exp(s)
                p = e * pl.reciprocal(jnp.sum(e, axis=-1, keepdims=True),
                                      approx=True)
                heads.append(jnp.dot(p.astype(jnp.bfloat16), v,
                                     preferred_element_type=jnp.float32))  # [S, HD]
            ctx_imgs.append(jnp.concatenate(heads, axis=-1))               # [S, H]
        ctx = ctx_imgs[0] if bpg == 1 else jnp.concatenate(ctx_imgs, axis=0)

        # Single output projection over all images' concatenated heads.
        attn = jnp.dot(ctx.astype(jnp.bfloat16), wo_ref[l],
                       preferred_element_type=jnp.float32)                 # [m, H]
        x = x + attn + vec_ref[l, 4]

        # ---- MLP block (pre-LN) ----
        h2 = _layernorm(x, vec_ref[l, 2], vec_ref[l, 3])
        mm = jnp.dot(h2.astype(jnp.bfloat16), w1_ref[l],
                     preferred_element_type=jnp.float32) + b1_ref[l]
        mm = _gelu(mm)
        mm = jnp.dot(mm.astype(jnp.bfloat16), w2_ref[l],
                     preferred_element_type=jnp.float32) + vec_ref[l, 5]
        x = x + mm

    # One dense [m, H] store per grid step.
    out_ref[0] = _layernorm(x, lnf_ref[0], lnf_ref[1])


# ------------------------------ parameters -----------------------------------
def init_params(key):
    """Synthetic weights. Matrix weights use [in, out] (K, N) convention."""
    std = 0.02
    keys = iter(jax.random.split(key, 9))
    p = {}
    p['conv_w'] = jax.random.normal(next(keys), (H, C, P, P), jnp.float32) * std
    p['conv_b'] = jnp.zeros((H,), jnp.float32)
    p['cls'] = jax.random.normal(next(keys), (1, 1, H), jnp.float32) * std
    p['pos'] = jax.random.normal(next(keys), (1, S, H), jnp.float32) * std

    def rand(shape):
        return jax.random.normal(next(keys), shape, jnp.float32) * std

    p['ln1_g'] = jnp.ones((L, H), jnp.float32)
    p['ln1_b'] = jnp.zeros((L, H), jnp.float32)
    p['wq'] = rand((L, H, H)); p['bq'] = jnp.zeros((L, H), jnp.float32)
    p['wk'] = rand((L, H, H)); p['bk'] = jnp.zeros((L, H), jnp.float32)
    p['wv'] = rand((L, H, H)); p['bv'] = jnp.zeros((L, H), jnp.float32)
    p['wo'] = rand((L, H, H)); p['bo'] = jnp.zeros((L, H), jnp.float32)
    p['ln2_g'] = jnp.ones((L, H), jnp.float32)
    p['ln2_b'] = jnp.zeros((L, H), jnp.float32)
    p['w1'] = rand((L, H, MLP)); p['b1'] = jnp.zeros((L, MLP), jnp.float32)
    p['w2'] = rand((L, MLP, H)); p['b2'] = jnp.zeros((L, H), jnp.float32)
    p['lnf_g'] = jnp.ones((H,), jnp.float32)
    p['lnf_b'] = jnp.zeros((H,), jnp.float32)
    return p


def _pack_weights(params):
    """Pack per-layer tensors into contiguous [K, N]-oriented slabs, folding the
    feature normalization and the attention score scale in host-side."""
    bf16 = jnp.bfloat16

    # Patch embedding with (x*2 - 1) normalization folded in:
    #   (2x - 1) @ W + add == x @ (2W) + (add - colsum(W))
    w_raw = params['conv_w'].reshape(H, CPP).T                        # [CPP, H] f32
    w_patch = (2.0 * w_raw).astype(bf16)                              # [CPP, H] bf16
    col_sum = jnp.sum(w_raw, axis=0)                                  # [H]

    # Additive slab: row 0 = cls + pos[0] (its pixel row is exactly 0);
    # rows 1.. = pos[i] + conv_bias - colsum(W).
    add_rows = jnp.concatenate(
        [params['cls'][0],
         jnp.broadcast_to(params['conv_b'][None, :], (NP, H)) - col_sum[None, :]],
        axis=0)
    add_slab = params['pos'][0] + add_rows                            # [S, H] f32

    # Fused QKV weights/biases; fold 1/sqrt(HD) into the Q part.
    inv_sqrt_hd = 1.0 / math.sqrt(HD)
    wqkv = jnp.concatenate([params['wq'] * inv_sqrt_hd,
                            params['wk'], params['wv']], axis=-1).astype(bf16)  # [L,H,3H]
    bqkv = jnp.concatenate([params['bq'] * inv_sqrt_hd,
                            params['bk'], params['bv']], axis=-1)     # [L, 3H] f32

    wo = params['wo'].astype(bf16)                                    # [L, H, H]
    w1 = params['w1'].astype(bf16)                                    # [L, H, MLP]
    w2 = params['w2'].astype(bf16)                                    # [L, MLP, H]
    b1 = params['b1']                                                 # [L, MLP]

    vecs = jnp.stack([params['ln1_g'], params['ln1_b'],
                      params['ln2_g'], params['ln2_b'],
                      params['bo'], params['b2']], axis=1)            # [L, 6, H]
    lnf = jnp.stack([params['lnf_g'], params['lnf_b']], axis=0)       # [2, H]
    return w_patch, add_slab, wqkv, bqkv, wo, w1, b1, w2, vecs, lnf


# ------------------------------ forward --------------------------------------
def vit_forward(images, params):
    bsz = images.shape[0]
    # Keep a 2-step "parallel" grid (both v7x TensorCores) while folding the rest
    # of the batch into the matmul M dimension.
    if bsz % 2 == 0 and bsz >= 2:
        grid_n, bpg = 2, bsz // 2
    else:
        grid_n, bpg = bsz, 1
    m = bpg * S

    # Non-overlapping patch extraction (== Conv2d with stride = patch size), plus a
    # zero leading row per image for the CLS slot (its embedding comes from add_slab).
    patches = images.reshape(bsz, C, IMG // P, P, IMG // P, P)
    patches = patches.transpose(0, 2, 4, 1, 3, 5).reshape(bsz, NP, CPP)
    pix = jnp.concatenate(
        [jnp.zeros((bsz, 1, CPP), jnp.float32), patches], axis=1)     # [B, S, CPP]

    (w_patch, add_slab, wqkv, bqkv, wo, w1, b1, w2,
     vecs, lnf) = _pack_weights(params)
    add_step = jnp.tile(add_slab, (bpg, 1))                           # [m, H]

    out = pl.pallas_call(
        functools.partial(vit_kernel, bpg),
        out_shape=jax.ShapeDtypeStruct((grid_n, m, H), jnp.float32),
        grid=(grid_n,),
        in_specs=[
            pl.BlockSpec((bpg, S, CPP), lambda g: (g, 0, 0)),
            pl.BlockSpec((CPP, H), lambda g: (0, 0)),
            pl.BlockSpec((m, H), lambda g: (0, 0)),
            pl.BlockSpec((L, H, 3 * H), lambda g: (0, 0, 0)),
            pl.BlockSpec((L, 3 * H), lambda g: (0, 0)),
            pl.BlockSpec((L, H, H), lambda g: (0, 0, 0)),
            pl.BlockSpec((L, H, MLP), lambda g: (0, 0, 0)),
            pl.BlockSpec((L, MLP), lambda g: (0, 0)),
            pl.BlockSpec((L, MLP, H), lambda g: (0, 0, 0)),
            pl.BlockSpec((L, 6, H), lambda g: (0, 0, 0)),
            pl.BlockSpec((2, H), lambda g: (0, 0)),
        ],
        out_specs=pl.BlockSpec((1, m, H), lambda g: (g, 0, 0)),
        compiler_params=pltpu.CompilerParams(
            dimension_semantics=("parallel",)),
    )(pix, w_patch, add_step, wqkv, bqkv, wo, w1, b1, w2, vecs, lnf)

    out = out.reshape(bsz, S, H)
    cls_token = out[:, 0, :]        # [B, H]
    patch_tokens = out[:, 1:, :]    # [B, NP, H]
    return cls_token, patch_tokens


# -------------------------------- main ----------------------------------------
if __name__ == "__main__":
    key = jax.random.PRNGKey(0)
    pkey, ikey = jax.random.split(key)
    params = init_params(pkey)

    # deterministic "images" in [0, 1], NCHW
    images = jax.random.uniform(ikey, (B, C, IMG, IMG), jnp.float32)

    fwd = jax.jit(vit_forward)
    cls_token, patch_tokens = fwd(images, params)
    jax.block_until_ready((cls_token, patch_tokens))

    assert cls_token.shape == (B, H)
    assert patch_tokens.shape == (B, NP, H)
    assert jnp.all(jnp.isfinite(cls_token)) and jnp.all(jnp.isfinite(patch_tokens))
    print("KERNEL_OK")
</pallas_src>

<mosaic_0001>
module attributes {stable_mosaic.version = 11 : i64} {
  func.func @vit_kernel(%arg0: i32, %arg1: memref<1x17x48xf32, #tpu.memory_space<vmem>>, %arg2: memref<48x32xbf16, #tpu.memory_space<vmem>>, %arg3: memref<17x32xf32, #tpu.memory_space<vmem>>, %arg4: memref<2x32x96xbf16, #tpu.memory_space<vmem>>, %arg5: memref<2x96xf32, #tpu.memory_space<vmem>>, %arg6: memref<2x32x32xbf16, #tpu.memory_space<vmem>>, %arg7: memref<2x32x64xbf16, #tpu.memory_space<vmem>>, %arg8: memref<2x64xf32, #tpu.memory_space<vmem>>, %arg9: memref<2x64x32xbf16, #tpu.memory_space<vmem>>, %arg10: memref<2x6x32xf32, #tpu.memory_space<vmem>>, %arg11: memref<2x32xf32, #tpu.memory_space<vmem>>, %arg12: memref<1x17x32xf32, #tpu.memory_space<vmem>>) attributes {dimension_semantics = [#tpu.dimension_semantics<parallel>], iteration_bounds = array<i64: 2>, scalar_prefetch = 0 : i64, scratch_operands = 0 : i64, tpu.core_type = #tpu.core_type<tc>, window_params = [{transform_indices = @transform_0, window_bounds = array<i64: 1, 17, 48>}, {pipeline_mode = #tpu.pipeline_mode<synchronous>, transform_indices = @transform_1, window_bounds = array<i64: 48, 32>}, {pipeline_mode = #tpu.pipeline_mode<synchronous>, transform_indices = @transform_2, window_bounds = array<i64: 17, 32>}, {pipeline_mode = #tpu.pipeline_mode<synchronous>, transform_indices = @transform_3, window_bounds = array<i64: 2, 32, 96>}, {pipeline_mode = #tpu.pipeline_mode<synchronous>, transform_indices = @transform_4, window_bounds = array<i64: 2, 96>}, {pipeline_mode = #tpu.pipeline_mode<synchronous>, transform_indices = @transform_5, window_bounds = array<i64: 2, 32, 32>}, {pipeline_mode = #tpu.pipeline_mode<synchronous>, transform_indices = @transform_6, window_bounds = array<i64: 2, 32, 64>}, {pipeline_mode = #tpu.pipeline_mode<synchronous>, transform_indices = @transform_7, window_bounds = array<i64: 2, 64>}, {pipeline_mode = #tpu.pipeline_mode<synchronous>, transform_indices = @transform_8, window_bounds = array<i64: 2, 64, 32>}, {pipeline_mode = #tpu.pipeline_mode<synchronous>, transform_indices = @transform_9, window_bounds = array<i64: 2, 6, 32>}, {pipeline_mode = #tpu.pipeline_mode<synchronous>, transform_indices = @transform_10, window_bounds = array<i64: 2, 32>}, {transform_indices = @transform_11, window_bounds = array<i64: 1, 17, 32>}]} {
    %c0 = arith.constant 0 : index
    %c0_0 = arith.constant 0 : index
    %c0_1 = arith.constant 0 : index
    %0 = vector.load %arg1[%c0, %c0_0, %c0_1] : memref<1x17x48xf32, #tpu.memory_space<vmem>>, vector<1x17x48xf32>
    %1 = vector.shape_cast %0 : vector<1x17x48xf32> to vector<17x48xf32>
    %2 = arith.truncf %1 : vector<17x48xf32> to vector<17x48xbf16>
    %c0_2 = arith.constant 0 : index
    %c0_3 = arith.constant 0 : index
    %3 = vector.load %arg2[%c0_2, %c0_3] : memref<48x32xbf16, #tpu.memory_space<vmem>>, vector<48x32xbf16>
    %cst = arith.constant dense<0.000000e+00> : vector<17x32xf32>
    %4 = tpu.matmul %2, %3, %cst {dimension_numbers = #tpu.dot_dimension_numbers<[1], [0], [0], [1], [0, 0, 1, 1], [], []>} : vector<17x48xbf16>, vector<48x32xbf16>, vector<17x32xf32> -> vector<17x32xf32>
    %c0_4 = arith.constant 0 : index
    %c0_5 = arith.constant 0 : index
    %5 = vector.load %arg3[%c0_4, %c0_5] : memref<17x32xf32, #tpu.memory_space<vmem>>, vector<17x32xf32>
    %6 = arith.addf %4, %5 : vector<17x32xf32>
    %c0_6 = arith.constant 0 : index
    %c0_7 = arith.constant 0 : index
    %c0_8 = arith.constant 0 : index
    %7 = vector.load %arg10[%c0_6, %c0_7, %c0_8] : memref<2x6x32xf32, #tpu.memory_space<vmem>>, vector<1x1x32xf32>
    %8 = vector.shape_cast %7 : vector<1x1x32xf32> to vector<32xf32>
    %c0_9 = arith.constant 0 : index
    %c1 = arith.constant 1 : index
    %c0_10 = arith.constant 0 : index
    %9 = vector.load %arg10[%c0_9, %c1, %c0_10] : memref<2x6x32xf32, #tpu.memory_space<vmem>>, vector<1x1x32xf32>
    %10 = vector.shape_cast %9 : vector<1x1x32xf32> to vector<32xf32>
    %cst_11 = arith.constant dense<0.000000e+00> : vector<17xf32>
    %11 = vector.multi_reduction <add>, %6, %cst_11 [1] : vector<17x32xf32> to vector<17xf32>
    %12 = vector.shape_cast %11 : vector<17xf32> to vector<17x1xf32>
    %cst_12 = arith.constant 3.200000e+01 : f32
    %13 = vector.broadcast %cst_12 : f32 to vector<17x1xf32>
    %14 = arith.divf %12, %13 : vector<17x1xf32>
    %15 = vector.broadcast %14 : vector<17x1xf32> to vector<17x32xf32>
    %16 = arith.subf %6, %15 : vector<17x32xf32>
    %17 = arith.mulf %16, %16 : vector<17x32xf32>
    %cst_13 = arith.constant dense<0.000000e+00> : vector<17xf32>
    %18 = vector.multi_reduction <add>, %17, %cst_13 [1] : vector<17x32xf32> to vector<17xf32>
    %19 = vector.shape_cast %18 : vector<17xf32> to vector<17x1xf32>
    %cst_14 = arith.constant 3.200000e+01 : f32
    %20 = vector.broadcast %cst_14 : f32 to vector<17x1xf32>
    %21 = arith.divf %19, %20 : vector<17x1xf32>
    %22 = vector.broadcast %14 : vector<17x1xf32> to vector<17x32xf32>
    %23 = arith.subf %6, %22 : vector<17x32xf32>
    %cst_15 = arith.constant 9.99999996E-13 : f32
    %24 = vector.broadcast %cst_15 : f32 to vector<17x1xf32>
    %25 = arith.addf %21, %24 : vector<17x1xf32>
    %26 = math.rsqrt %25 : vector<17x1xf32>
    %27 = vector.broadcast %26 : vector<17x1xf32> to vector<17x32xf32>
    %28 = arith.mulf %23, %27 : vector<17x32xf32>
    %29 = vector.shape_cast %8 : vector<32xf32> to vector<1x32xf32>
    %30 = vector.broadcast %29 : vector<1x32xf32> to vector<17x32xf32>
    %31 = arith.mulf %28, %30 : vector<17x32xf32>
    %32 = vector.shape_cast %10 : vector<32xf32> to vector<1x32xf32>
    %33 = vector.broadcast %32 : vector<1x32xf32> to vector<17x32xf32>
    %34 = arith.addf %31, %33 : vector<17x32xf32>
    %35 = arith.truncf %34 : vector<17x32xf32> to vector<17x32xbf16>
    %c0_16 = arith.constant 0 : index
    %c0_17 = arith.constant 0 : index
    %c0_18 = arith.constant 0 : index
    %36 = vector.load %arg4[%c0_16, %c0_17, %c0_18] : memref<2x32x96xbf16, #tpu.memory_space<vmem>>, vector<1x32x96xbf16>
    %37 = vector.shape_cast %36 : vector<1x32x96xbf16> to vector<32x96xbf16>
    %cst_19 = arith.constant dense<0.000000e+00> : vector<17x96xf32>
    %38 = tpu.matmul %35, %37, %cst_19 {dimension_numbers = #tpu.dot_dimension_numbers<[1], [0], [0], [1], [0, 0, 1, 1], [], []>} : vector<17x32xbf16>, vector<32x96xbf16>, vector<17x96xf32> -> vector<17x96xf32>
    %c0_20 = arith.constant 0 : index
    %c0_21 = arith.constant 0 : index
    %39 = vector.load %arg5[%c0_20, %c0_21] : memref<2x96xf32, #tpu.memory_space<vmem>>, vector<1x96xf32>
    %40 = vector.shape_cast %39 : vector<1x96xf32> to vector<96xf32>
    %41 = vector.shape_cast %40 : vector<96xf32> to vector<1x96xf32>
    %42 = vector.broadcast %41 : vector<1x96xf32> to vector<17x96xf32>
    %43 = arith.addf %38, %42 : vector<17x96xf32>
    %44 = vector.extract_strided_slice %43 {offsets = [0, 0], sizes = [17, 8], strides = [1, 1]} : vector<17x96xf32> to vector<17x8xf32>
    %45 = arith.truncf %44 : vector<17x8xf32> to vector<17x8xbf16>
    %46 = vector.extract_strided_slice %43 {offsets = [0, 32], sizes = [17, 8], strides = [1, 1]} : vector<17x96xf32> to vector<17x8xf32>
    %47 = arith.truncf %46 : vector<17x8xf32> to vector<17x8xbf16>
    %48 = vector.extract_strided_slice %43 {offsets = [0, 64], sizes = [17, 8], strides = [1, 1]} : vector<17x96xf32> to vector<17x8xf32>
    %49 = arith.truncf %48 : vector<17x8xf32> to vector<17x8xbf16>
    %cst_22 = arith.constant dense<0.000000e+00> : vector<17x17xf32>
    %50 = tpu.matmul %45, %47, %cst_22 {dimension_numbers = #tpu.dot_dimension_numbers<[1], [1], [0], [0], [0, 0, 1, 0], [], []>} : vector<17x8xbf16>, vector<17x8xbf16>, vector<17x17xf32> -> vector<17x17xf32>
    %cst_23 = arith.constant dense<0xFF800000> : vector<17xf32>
    %51 = vector.multi_reduction <maximumf>, %50, %cst_23 [1] : vector<17x17xf32> to vector<17xf32>
    %52 = vector.shape_cast %51 : vector<17xf32> to vector<17x1xf32>
    %53 = vector.broadcast %52 : vector<17x1xf32> to vector<17x17xf32>
    %54 = arith.subf %50, %53 : vector<17x17xf32>
    %55 = math.exp %54 : vector<17x17xf32>
    %cst_24 = arith.constant dense<0.000000e+00> : vector<17xf32>
    %56 = vector.multi_reduction <add>, %55, %cst_24 [1] : vector<17x17xf32> to vector<17xf32>
    %57 = vector.shape_cast %56 : vector<17xf32> to vector<17x1xf32>
    %58 = tpu.reciprocal %57 {approx = true} : vector<17x1xf32> -> vector<17x1xf32>
    %59 = vector.broadcast %58 : vector<17x1xf32> to vector<17x17xf32>
    %60 = arith.mulf %55, %59 : vector<17x17xf32>
    %61 = arith.truncf %60 : vector<17x17xf32> to vector<17x17xbf16>
    %cst_25 = arith.constant dense<0.000000e+00> : vector<17x8xf32>
    %62 = tpu.matmul %61, %49, %cst_25 {dimension_numbers = #tpu.dot_dimension_numbers<[1], [0], [0], [1], [0, 0, 1, 1], [], []>} : vector<17x17xbf16>, vector<17x8xbf16>, vector<17x8xf32> -> vector<17x8xf32>
    %63 = vector.extract_strided_slice %43 {offsets = [0, 8], sizes = [17, 8], strides = [1, 1]} : vector<17x96xf32> to vector<17x8xf32>
    %64 = arith.truncf %63 : vector<17x8xf32> to vector<17x8xbf16>
    %65 = vector.extract_strided_slice %43 {offsets = [0, 40], sizes = [17, 8], strides = [1, 1]} : vector<17x96xf32> to vector<17x8xf32>
    %66 = arith.truncf %65 : vector<17x8xf32> to vector<17x8xbf16>
    %67 = vector.extract_strided_slice %43 {offsets = [0, 72], sizes = [17, 8], strides = [1, 1]} : vector<17x96xf32> to vector<17x8xf32>
    %68 = arith.truncf %67 : vector<17x8xf32> to vector<17x8xbf16>
    %cst_26 = arith.constant dense<0.000000e+00> : vector<17x17xf32>
    %69 = tpu.matmul %64, %66, %cst_26 {dimension_numbers = #tpu.dot_dimension_numbers<[1], [1], [0], [0], [0, 0, 1, 0], [], []>} : vector<17x8xbf16>, vector<17x8xbf16>, vector<17x17xf32> -> vector<17x17xf32>
    %cst_27 = arith.constant dense<0xFF800000> : vector<17xf32>
    %70 = vector.multi_reduction <maximumf>, %69, %cst_27 [1] : vector<17x17xf32> to vector<17xf32>
    %71 = vector.shape_cast %70 : vector<17xf32> to vector<17x1xf32>
    %72 = vector.broadcast %71 : vector<17x1xf32> to vector<17x17xf32>
    %73 = arith.subf %69, %72 : vector<17x17xf32>
    %74 = math.exp %73 : vector<17x17xf32>
    %cst_28 = arith.constant dense<0.000000e+00> : vector<17xf32>
    %75 = vector.multi_reduction <add>, %74, %cst_28 [1] : vector<17x17xf32> to vector<17xf32>
    %76 = vector.shape_cast %75 : vector<17xf32> to vector<17x1xf32>
    %77 = tpu.reciprocal %76 {approx = true} : vector<17x1xf32> -> vector<17x1xf32>
    %78 = vector.broadcast %77 : vector<17x1xf32> to vector<17x17xf32>
    %79 = arith.mulf %74, %78 : vector<17x17xf32>
    %80 = arith.truncf %79 : vector<17x17xf32> to vector<17x17xbf16>
    %cst_29 = arith.constant dense<0.000000e+00> : vector<17x8xf32>
    %81 = tpu.matmul %80, %68, %cst_29 {dimension_numbers = #tpu.dot_dimension_numbers<[1], [0], [0], [1], [0, 0, 1, 1], [], []>} : vector<17x17xbf16>, vector<17x8xbf16>, vector<17x8xf32> -> vector<17x8xf32>
    %82 = vector.extract_strided_slice %43 {offsets = [0, 16], sizes = [17, 8], strides = [1, 1]} : vector<17x96xf32> to vector<17x8xf32>
    %83 = arith.truncf %82 : vector<17x8xf32> to vector<17x8xbf16>
    %84 = vector.extract_strided_slice %43 {offsets = [0, 48], sizes = [17, 8], strides = [1, 1]} : vector<17x96xf32> to vector<17x8xf32>
    %85 = arith.truncf %84 : vector<17x8xf32> to vector<17x8xbf16>
    %86 = vector.extract_strided_slice %43 {offsets = [0, 80], sizes = [17, 8], strides = [1, 1]} : vector<17x96xf32> to vector<17x8xf32>
    %87 = arith.truncf %86 : vector<17x8xf32> to vector<17x8xbf16>
    %cst_30 = arith.constant dense<0.000000e+00> : vector<17x17xf32>
    %88 = tpu.matmul %83, %85, %cst_30 {dimension_numbers = #tpu.dot_dimension_numbers<[1], [1], [0], [0], [0, 0, 1, 0], [], []>} : vector<17x8xbf16>, vector<17x8xbf16>, vector<17x17xf32> -> vector<17x17xf32>
    %cst_31 = arith.constant dense<0xFF800000> : vector<17xf32>
    %89 = vector.multi_reduction <maximumf>, %88, %cst_31 [1] : vector<17x17xf32> to vector<17xf32>
    %90 = vector.shape_cast %89 : vector<17xf32> to vector<17x1xf32>
    %91 = vector.broadcast %90 : vector<17x1xf32> to vector<17x17xf32>
    %92 = arith.subf %88, %91 : vector<17x17xf32>
    %93 = math.exp %92 : vector<17x17xf32>
    %cst_32 = arith.constant dense<0.000000e+00> : vector<17xf32>
    %94 = vector.multi_reduction <add>, %93, %cst_32 [1] : vector<17x17xf32> to vector<17xf32>
    %95 = vector.shape_cast %94 : vector<17xf32> to vector<17x1xf32>
    %96 = tpu.reciprocal %95 {approx = true} : vector<17x1xf32> -> vector<17x1xf32>
    %97 = vector.broadcast %96 : vector<17x1xf32> to vector<17x17xf32>
    %98 = arith.mulf %93, %97 : vector<17x17xf32>
    %99 = arith.truncf %98 : vector<17x17xf32> to vector<17x17xbf16>
    %cst_33 = arith.constant dense<0.000000e+00> : vector<17x8xf32>
    %100 = tpu.matmul %99, %87, %cst_33 {dimension_numbers = #tpu.dot_dimension_numbers<[1], [0], [0], [1], [0, 0, 1, 1], [], []>} : vector<17x17xbf16>, vector<17x8xbf16>, vector<17x8xf32> -> vector<17x8xf32>
    %101 = vector.extract_strided_slice %43 {offsets = [0, 24], sizes = [17, 8], strides = [1, 1]} : vector<17x96xf32> to vector<17x8xf32>
    %102 = arith.truncf %101 : vector<17x8xf32> to vector<17x8xbf16>
    %103 = vector.extract_strided_slice %43 {offsets = [0, 56], sizes = [17, 8], strides = [1, 1]} : vector<17x96xf32> to vector<17x8xf32>
    %104 = arith.truncf %103 : vector<17x8xf32> to vector<17x8xbf16>
    %105 = vector.extract_strided_slice %43 {offsets = [0, 88], sizes = [17, 8], strides = [1, 1]} : vector<17x96xf32> to vector<17x8xf32>
    %106 = arith.truncf %105 : vector<17x8xf32> to vector<17x8xbf16>
    %cst_34 = arith.constant dense<0.000000e+00> : vector<17x17xf32>
    %107 = tpu.matmul %102, %104, %cst_34 {dimension_numbers = #tpu.dot_dimension_numbers<[1], [1], [0], [0], [0, 0, 1, 0], [], []>} : vector<17x8xbf16>, vector<17x8xbf16>, vector<17x17xf32> -> vector<17x17xf32>
    %cst_35 = arith.constant dense<0xFF800000> : vector<17xf32>
    %108 = vector.multi_reduction <maximumf>, %107, %cst_35 [1] : vector<17x17xf32> to vector<17xf32>
    %109 = vector.shape_cast %108 : vector<17xf32> to vector<17x1xf32>
    %110 = vector.broadcast %109 : vector<17x1xf32> to vector<17x17xf32>
    %111 = arith.subf %107, %110 : vector<17x17xf32>
    %112 = math.exp %111 : vector<17x17xf32>
    %cst_36 = arith.constant dense<0.000000e+00> : vector<17xf32>
    %113 = vector.multi_reduction <add>, %112, %cst_36 [1] : vector<17x17xf32> to vector<17xf32>
    %114 = vector.shape_cast %113 : vector<17xf32> to vector<17x1xf32>
    %115 = tpu.reciprocal %114 {approx = true} : vector<17x1xf32> -> vector<17x1xf32>
    %116 = vector.broadcast %115 : vector<17x1xf32> to vector<17x17xf32>
    %117 = arith.mulf %112, %116 : vector<17x17xf32>
    %118 = arith.truncf %117 : vector<17x17xf32> to vector<17x17xbf16>
    %cst_37 = arith.constant dense<0.000000e+00> : vector<17x8xf32>
    %119 = tpu.matmul %118, %106, %cst_37 {dimension_numbers = #tpu.dot_dimension_numbers<[1], [0], [0], [1], [0, 0, 1, 1], [], []>} : vector<17x17xbf16>, vector<17x8xbf16>, vector<17x8xf32> -> vector<17x8xf32>
    %120 = tpu.concatenate %62, %81, %100, %119 in 1 : vector<17x8xf32>, vector<17x8xf32>, vector<17x8xf32>, vector<17x8xf32> -> vector<17x32xf32>
    %121 = arith.truncf %120 : vector<17x32xf32> to vector<17x32xbf16>
    %c0_38 = arith.constant 0 : index
    %c0_39 = arith.constant 0 : index
    %c0_40 = arith.constant 0 : index
    %122 = vector.load %arg6[%c0_38, %c0_39, %c0_40] : memref<2x32x32xbf16, #tpu.memory_space<vmem>>, vector<1x32x32xbf16>
    %123 = vector.shape_cast %122 : vector<1x32x32xbf16> to vector<32x32xbf16>
    %cst_41 = arith.constant dense<0.000000e+00> : vector<17x32xf32>
    %124 = tpu.matmul %121, %123, %cst_41 {dimension_numbers = #tpu.dot_dimension_numbers<[1], [0], [0], [1], [0, 0, 1, 1], [], []>} : vector<17x32xbf16>, vector<32x32xbf16>, vector<17x32xf32> -> vector<17x32xf32>
    %125 = arith.addf %6, %124 : vector<17x32xf32>
    %c0_42 = arith.constant 0 : index
    %c4 = arith.constant 4 : index
    %c0_43 = arith.constant 0 : index
    %126 = vector.load %arg10[%c0_42, %c4, %c0_43] : memref<2x6x32xf32, #tpu.memory_space<vmem>>, vector<1x1x32xf32>
    %127 = vector.shape_cast %126 : vector<1x1x32xf32> to vector<32xf32>
    %128 = vector.shape_cast %127 : vector<32xf32> to vector<1x32xf32>
    %129 = vector.broadcast %128 : vector<1x32xf32> to vector<17x32xf32>
    %130 = arith.addf %125, %129 : vector<17x32xf32>
    %c0_44 = arith.constant 0 : index
    %c2 = arith.constant 2 : index
    %c0_45 = arith.constant 0 : index
    %131 = vector.load %arg10[%c0_44, %c2, %c0_45] : memref<2x6x32xf32, #tpu.memory_space<vmem>>, vector<1x1x32xf32>
    %132 = vector.shape_cast %131 : vector<1x1x32xf32> to vector<32xf32>
    %c0_46 = arith.constant 0 : index
    %c3 = arith.constant 3 : index
    %c0_47 = arith.constant 0 : index
    %133 = vector.load %arg10[%c0_46, %c3, %c0_47] : memref<2x6x32xf32, #tpu.memory_space<vmem>>, vector<1x1x32xf32>
    %134 = vector.shape_cast %133 : vector<1x1x32xf32> to vector<32xf32>
    %cst_48 = arith.constant dense<0.000000e+00> : vector<17xf32>
    %135 = vector.multi_reduction <add>, %130, %cst_48 [1] : vector<17x32xf32> to vector<17xf32>
    %136 = vector.shape_cast %135 : vector<17xf32> to vector<17x1xf32>
    %cst_49 = arith.constant 3.200000e+01 : f32
    %137 = vector.broadcast %cst_49 : f32 to vector<17x1xf32>
    %138 = arith.divf %136, %137 : vector<17x1xf32>
    %139 = vector.broadcast %138 : vector<17x1xf32> to vector<17x32xf32>
    %140 = arith.subf %130, %139 : vector<17x32xf32>
    %141 = arith.mulf %140, %140 : vector<17x32xf32>
    %cst_50 = arith.constant dense<0.000000e+00> : vector<17xf32>
    %142 = vector.multi_reduction <add>, %141, %cst_50 [1] : vector<17x32xf32> to vector<17xf32>
    %143 = vector.shape_cast %142 : vector<17xf32> to vector<17x1xf32>
    %cst_51 = arith.constant 3.200000e+01 : f32
    %144 = vector.broadcast %cst_51 : f32 to vector<17x1xf32>
    %145 = arith.divf %143, %144 : vector<17x1xf32>
    %146 = vector.broadcast %138 : vector<17x1xf32> to vector<17x32xf32>
    %147 = arith.subf %130, %146 : vector<17x32xf32>
    %cst_52 = arith.constant 9.99999996E-13 : f32
    %148 = vector.broadcast %cst_52 : f32 to vector<17x1xf32>
    %149 = arith.addf %145, %148 : vector<17x1xf32>
    %150 = math.rsqrt %149 : vector<17x1xf32>
    %151 = vector.broadcast %150 : vector<17x1xf32> to vector<17x32xf32>
    %152 = arith.mulf %147, %151 : vector<17x32xf32>
    %153 = vector.shape_cast %132 : vector<32xf32> to vector<1x32xf32>
    %154 = vector.broadcast %153 : vector<1x32xf32> to vector<17x32xf32>
    %155 = arith.mulf %152, %154 : vector<17x32xf32>
    %156 = vector.shape_cast %134 : vector<32xf32> to vector<1x32xf32>
    %157 = vector.broadcast %156 : vector<1x32xf32> to vector<17x32xf32>
    %158 = arith.addf %155, %157 : vector<17x32xf32>
    %159 = arith.truncf %158 : vector<17x32xf32> to vector<17x32xbf16>
    %c0_53 = arith.constant 0 : index
    %c0_54 = arith.constant 0 : index
    %c0_55 = arith.constant 0 : index
    %160 = vector.load %arg7[%c0_53, %c0_54, %c0_55] : memref<2x32x64xbf16, #tpu.memory_space<vmem>>, vector<1x32x64xbf16>
    %161 = vector.shape_cast %160 : vector<1x32x64xbf16> to vector<32x64xbf16>
    %cst_56 = arith.constant dense<0.000000e+00> : vector<17x64xf32>
    %162 = tpu.matmul %159, %161, %cst_56 {dimension_numbers = #tpu.dot_dimension_numbers<[1], [0], [0], [1], [0, 0, 1, 1], [], []>} : vector<17x32xbf16>, vector<32x64xbf16>, vector<17x64xf32> -> vector<17x64xf32>
    %c0_57 = arith.constant 0 : index
    %c0_58 = arith.constant 0 : index
    %163 = vector.load %arg8[%c0_57, %c0_58] : memref<2x64xf32, #tpu.memory_space<vmem>>, vector<1x64xf32>
    %164 = vector.shape_cast %163 : vector<1x64xf32> to vector<64xf32>
    %165 = vector.shape_cast %164 : vector<64xf32> to vector<1x64xf32>
    %166 = vector.broadcast %165 : vector<1x64xf32> to vector<17x64xf32>
    %167 = arith.addf %162, %166 : vector<17x64xf32>
    %cst_59 = arith.constant 0.707106769 : f32
    %168 = vector.broadcast %cst_59 : f32 to vector<17x64xf32>
    %169 = arith.mulf %167, %168 : vector<17x64xf32>
    %170 = math.absf %169 : vector<17x64xf32>
    %cst_60 = arith.constant 0.327591091 : f32
    %171 = vector.broadcast %cst_60 : f32 to vector<17x64xf32>
    %172 = arith.mulf %171, %170 : vector<17x64xf32>
    %cst_61 = arith.constant 1.000000e+00 : f32
    %173 = vector.broadcast %cst_61 : f32 to vector<17x64xf32>
    %174 = arith.addf %173, %172 : vector<17x64xf32>
    %cst_62 = arith.constant 1.000000e+00 : f32
    %175 = vector.broadcast %cst_62 : f32 to vector<17x64xf32>
    %176 = arith.divf %175, %174 : vector<17x64xf32>
    %cst_63 = arith.constant 1.06140542 : f32
    %177 = vector.broadcast %cst_63 : f32 to vector<17x64xf32>
    %178 = arith.mulf %176, %177 : vector<17x64xf32>
    %cst_64 = arith.constant -1.45315206 : f32
    %179 = vector.broadcast %cst_64 : f32 to vector<17x64xf32>
    %180 = arith.addf %179, %178 : vector<17x64xf32>
    %181 = arith.mulf %176, %180 : vector<17x64xf32>
    %cst_65 = arith.constant 1.42141378 : f32
    %182 = vector.broadcast %cst_65 : f32 to vector<17x64xf32>
    %183 = arith.addf %182, %181 : vector<17x64xf32>
    %184 = arith.mulf %176, %183 : vector<17x64xf32>
    %cst_66 = arith.constant -0.284496725 : f32
    %185 = vector.broadcast %cst_66 : f32 to vector<17x64xf32>
    %186 = arith.addf %185, %184 : vector<17x64xf32>
    %187 = arith.mulf %176, %186 : vector<17x64xf32>
    %cst_67 = arith.constant 0.254829586 : f32
    %188 = vector.broadcast %cst_67 : f32 to vector<17x64xf32>
    %189 = arith.addf %188, %187 : vector<17x64xf32>
    %190 = arith.mulf %176, %189 : vector<17x64xf32>
    %191 = arith.mulf %170, %170 : vector<17x64xf32>
    %cst_68 = arith.constant 0.000000e+00 : f32
    %192 = vector.broadcast %cst_68 : f32 to vector<17x64xf32>
    %193 = arith.subf %192, %191 : vector<17x64xf32>
    %194 = math.exp %193 : vector<17x64xf32>
    %195 = arith.mulf %190, %194 : vector<17x64xf32>
    %cst_69 = arith.constant 1.000000e+00 : f32
    %196 = vector.broadcast %cst_69 : f32 to vector<17x64xf32>
    %197 = arith.subf %196, %195 : vector<17x64xf32>
    %cst_70 = arith.constant 0.000000e+00 : f32
    %198 = vector.broadcast %cst_70 : f32 to vector<17x64xf32>
    %199 = arith.cmpf oge, %169, %198 : vector<17x64xf32>
    %cst_71 = arith.constant 0.000000e+00 : f32
    %200 = vector.broadcast %cst_71 : f32 to vector<17x64xf32>
    %201 = arith.subf %200, %197 : vector<17x64xf32>
    %202 = arith.select %199, %197, %201 : vector<17x64xi1>, vector<17x64xf32>
    %cst_72 = arith.constant 5.000000e-01 : f32
    %203 = vector.broadcast %cst_72 : f32 to vector<17x64xf32>
    %204 = arith.mulf %203, %167 : vector<17x64xf32>
    %cst_73 = arith.constant 1.000000e+00 : f32
    %205 = vector.broadcast %cst_73 : f32 to vector<17x64xf32>
    %206 = arith.addf %205, %202 : vector<17x64xf32>
    %207 = arith.mulf %204, %206 : vector<17x64xf32>
    %208 = arith.truncf %207 : vector<17x64xf32> to vector<17x64xbf16>
    %c0_74 = arith.constant 0 : index
    %c0_75 = arith.constant 0 : index
    %c0_76 = arith.constant 0 : index
    %209 = vector.load %arg9[%c0_74, %c0_75, %c0_76] : memref<2x64x32xbf16, #tpu.memory_space<vmem>>, vector<1x64x32xbf16>
    %210 = vector.shape_cast %209 : vector<1x64x32xbf16> to vector<64x32xbf16>
    %cst_77 = arith.constant dense<0.000000e+00> : vector<17x32xf32>
    %211 = tpu.matmul %208, %210, %cst_77 {dimension_numbers = #tpu.dot_dimension_numbers<[1], [0], [0], [1], [0, 0, 1, 1], [], []>} : vector<17x64xbf16>, vector<64x32xbf16>, vector<17x32xf32> -> vector<17x32xf32>
    %c0_78 = arith.constant 0 : index
    %c5 = arith.constant 5 : index
    %c0_79 = arith.constant 0 : index
    %212 = vector.load %arg10[%c0_78, %c5, %c0_79] : memref<2x6x32xf32, #tpu.memory_space<vmem>>, vector<1x1x32xf32>
    %213 = vector.shape_cast %212 : vector<1x1x32xf32> to vector<32xf32>
    %214 = vector.shape_cast %213 : vector<32xf32> to vector<1x32xf32>
    %215 = vector.broadcast %214 : vector<1x32xf32> to vector<17x32xf32>
    %216 = arith.addf %211, %215 : vector<17x32xf32>
    %217 = arith.addf %130, %216 : vector<17x32xf32>
    %c1_80 = arith.constant 1 : index
    %c0_81 = arith.constant 0 : index
    %c0_82 = arith.constant 0 : index
    %218 = vector.load %arg10[%c1_80, %c0_81, %c0_82] : memref<2x6x32xf32, #tpu.memory_space<vmem>>, vector<1x1x32xf32>
    %219 = vector.shape_cast %218 : vector<1x1x32xf32> to vector<32xf32>
    %c1_83 = arith.constant 1 : index
    %c1_84 = arith.constant 1 : index
    %c0_85 = arith.constant 0 : index
    %220 = vector.load %arg10[%c1_83, %c1_84, %c0_85] : memref<2x6x32xf32, #tpu.memory_space<vmem>>, vector<1x1x32xf32>
    %221 = vector.shape_cast %220 : vector<1x1x32xf32> to vector<32xf32>
    %cst_86 = arith.constant dense<0.000000e+00> : vector<17xf32>
    %222 = vector.multi_reduction <add>, %217, %cst_86 [1] : vector<17x32xf32> to vector<17xf32>
    %223 = vector.shape_cast %222 : vector<17xf32> to vector<17x1xf32>
    %cst_87 = arith.constant 3.200000e+01 : f32
    %224 = vector.broadcast %cst_87 : f32 to vector<17x1xf32>
    %225 = arith.divf %223, %224 : vector<17x1xf32>
    %226 = vector.broadcast %225 : vector<17x1xf32> to vector<17x32xf32>
    %227 = arith.subf %217, %226 : vector<17x32xf32>
    %228 = arith.mulf %227, %227 : vector<17x32xf32>
    %cst_88 = arith.constant dense<0.000000e+00> : vector<17xf32>
    %229 = vector.multi_reduction <add>, %228, %cst_88 [1] : vector<17x32xf32> to vector<17xf32>
    %230 = vector.shape_cast %229 : vector<17xf32> to vector<17x1xf32>
    %cst_89 = arith.constant 3.200000e+01 : f32
    %231 = vector.broadcast %cst_89 : f32 to vector<17x1xf32>
    %232 = arith.divf %230, %231 : vector<17x1xf32>
    %233 = vector.broadcast %225 : vector<17x1xf32> to vector<17x32xf32>
    %234 = arith.subf %217, %233 : vector<17x32xf32>
    %cst_90 = arith.constant 9.99999996E-13 : f32
    %235 = vector.broadcast %cst_90 : f32 to vector<17x1xf32>
    %236 = arith.addf %232, %235 : vector<17x1xf32>
    %237 = math.rsqrt %236 : vector<17x1xf32>
    %238 = vector.broadcast %237 : vector<17x1xf32> to vector<17x32xf32>
    %239 = arith.mulf %234, %238 : vector<17x32xf32>
    %240 = vector.shape_cast %219 : vector<32xf32> to vector<1x32xf32>
    %241 = vector.broadcast %240 : vector<1x32xf32> to vector<17x32xf32>
    %242 = arith.mulf %239, %241 : vector<17x32xf32>
    %243 = vector.shape_cast %221 : vector<32xf32> to vector<1x32xf32>
    %244 = vector.broadcast %243 : vector<1x32xf32> to vector<17x32xf32>
    %245 = arith.addf %242, %244 : vector<17x32xf32>
    %246 = arith.truncf %245 : vector<17x32xf32> to vector<17x32xbf16>
    %c1_91 = arith.constant 1 : index
    %c0_92 = arith.constant 0 : index
    %c0_93 = arith.constant 0 : index
    %247 = vector.load %arg4[%c1_91, %c0_92, %c0_93] : memref<2x32x96xbf16, #tpu.memory_space<vmem>>, vector<1x32x96xbf16>
    %248 = vector.shape_cast %247 : vector<1x32x96xbf16> to vector<32x96xbf16>
    %cst_94 = arith.constant dense<0.000000e+00> : vector<17x96xf32>
    %249 = tpu.matmul %246, %248, %cst_94 {dimension_numbers = #tpu.dot_dimension_numbers<[1], [0], [0], [1], [0, 0, 1, 1], [], []>} : vector<17x32xbf16>, vector<32x96xbf16>, vector<17x96xf32> -> vector<17x96xf32>
    %c1_95 = arith.constant 1 : index
    %c0_96 = arith.constant 0 : index
    %250 = vector.load %arg5[%c1_95, %c0_96] : memref<2x96xf32, #tpu.memory_space<vmem>>, vector<1x96xf32>
    %251 = vector.shape_cast %250 : vector<1x96xf32> to vector<96xf32>
    %252 = vector.shape_cast %251 : vector<96xf32> to vector<1x96xf32>
    %253 = vector.broadcast %252 : vector<1x96xf32> to vector<17x96xf32>
    %254 = arith.addf %249, %253 : vector<17x96xf32>
    %255 = vector.extract_strided_slice %254 {offsets = [0, 0], sizes = [17, 8], strides = [1, 1]} : vector<17x96xf32> to vector<17x8xf32>
    %256 = arith.truncf %255 : vector<17x8xf32> to vector<17x8xbf16>
    %257 = vector.extract_strided_slice %254 {offsets = [0, 32], sizes = [17, 8], strides = [1, 1]} : vector<17x96xf32> to vector<17x8xf32>
    %258 = arith.truncf %257 : vector<17x8xf32> to vector<17x8xbf16>
    %259 = vector.extract_strided_slice %254 {offsets = [0, 64], sizes = [17, 8], strides = [1, 1]} : vector<17x96xf32> to vector<17x8xf32>
    %260 = arith.truncf %259 : vector<17x8xf32> to vector<17x8xbf16>
    %cst_97 = arith.constant dense<0.000000e+00> : vector<17x17xf32>
    %261 = tpu.matmul %256, %258, %cst_97 {dimension_numbers = #tpu.dot_dimension_numbers<[1], [1], [0], [0], [0, 0, 1, 0], [], []>} : vector<17x8xbf16>, vector<17x8xbf16>, vector<17x17xf32> -> vector<17x17xf32>
    %cst_98 = arith.constant dense<0xFF800000> : vector<17xf32>
    %262 = vector.multi_reduction <maximumf>, %261, %cst_98 [1] : vector<17x17xf32> to vector<17xf32>
    %263 = vector.shape_cast %262 : vector<17xf32> to vector<17x1xf32>
    %264 = vector.broadcast %263 : vector<17x1xf32> to vector<17x17xf32>
    %265 = arith.subf %261, %264 : vector<17x17xf32>
    %266 = math.exp %265 : vector<17x17xf32>
    %cst_99 = arith.constant dense<0.000000e+00> : vector<17xf32>
    %267 = vector.multi_reduction <add>, %266, %cst_99 [1] : vector<17x17xf32> to vector<17xf32>
    %268 = vector.shape_cast %267 : vector<17xf32> to vector<17x1xf32>
    %269 = tpu.reciprocal %268 {approx = true} : vector<17x1xf32> -> vector<17x1xf32>
    %270 = vector.broadcast %269 : vector<17x1xf32> to vector<17x17xf32>
    %271 = arith.mulf %266, %270 : vector<17x17xf32>
    %272 = arith.truncf %271 : vector<17x17xf32> to vector<17x17xbf16>
    %cst_100 = arith.constant dense<0.000000e+00> : vector<17x8xf32>
    %273 = tpu.matmul %272, %260, %cst_100 {dimension_numbers = #tpu.dot_dimension_numbers<[1], [0], [0], [1], [0, 0, 1, 1], [], []>} : vector<17x17xbf16>, vector<17x8xbf16>, vector<17x8xf32> -> vector<17x8xf32>
    %274 = vector.extract_strided_slice %254 {offsets = [0, 8], sizes = [17, 8], strides = [1, 1]} : vector<17x96xf32> to vector<17x8xf32>
    %275 = arith.truncf %274 : vector<17x8xf32> to vector<17x8xbf16>
    %276 = vector.extract_strided_slice %254 {offsets = [0, 40], sizes = [17, 8], strides = [1, 1]} : vector<17x96xf32> to vector<17x8xf32>
    %277 = arith.truncf %276 : vector<17x8xf32> to vector<17x8xbf16>
    %278 = vector.extract_strided_slice %254 {offsets = [0, 72], sizes = [17, 8], strides = [1, 1]} : vector<17x96xf32> to vector<17x8xf32>
    %279 = arith.truncf %278 : vector<17x8xf32> to vector<17x8xbf16>
    %cst_101 = arith.constant dense<0.000000e+00> : vector<17x17xf32>
    %280 = tpu.matmul %275, %277, %cst_101 {dimension_numbers = #tpu.dot_dimension_numbers<[1], [1], [0], [0], [0, 0, 1, 0], [], []>} : vector<17x8xbf16>, vector<17x8xbf16>, vector<17x17xf32> -> vector<17x17xf32>
    %cst_102 = arith.constant dense<0xFF800000> : vector<17xf32>
    %281 = vector.multi_reduction <maximumf>, %280, %cst_102 [1] : vector<17x17xf32> to vector<17xf32>
    %282 = vector.shape_cast %281 : vector<17xf32> to vector<17x1xf32>
    %283 = vector.broadcast %282 : vector<17x1xf32> to vector<17x17xf32>
    %284 = arith.subf %280, %283 : vector<17x17xf32>
    %285 = math.exp %284 : vector<17x17xf32>
    %cst_103 = arith.constant dense<0.000000e+00> : vector<17xf32>
    %286 = vector.multi_reduction <add>, %285, %cst_103 [1] : vector<17x17xf32> to vector<17xf32>
    %287 = vector.shape_cast %286 : vector<17xf32> to vector<17x1xf32>
    %288 = tpu.reciprocal %287 {approx = true} : vector<17x1xf32> -> vector<17x1xf32>
    %289 = vector.broadcast %288 : vector<17x1xf32> to vector<17x17xf32>
    %290 = arith.mulf %285, %289 : vector<17x17xf32>
    %291 = arith.truncf %290 : vector<17x17xf32> to vector<17x17xbf16>
    %cst_104 = arith.constant dense<0.000000e+00> : vector<17x8xf32>
    %292 = tpu.matmul %291, %279, %cst_104 {dimension_numbers = #tpu.dot_dimension_numbers<[1], [0], [0], [1], [0, 0, 1, 1], [], []>} : vector<17x17xbf16>, vector<17x8xbf16>, vector<17x8xf32> -> vector<17x8xf32>
    %293 = vector.extract_strided_slice %254 {offsets = [0, 16], sizes = [17, 8], strides = [1, 1]} : vector<17x96xf32> to vector<17x8xf32>
    %294 = arith.truncf %293 : vector<17x8xf32> to vector<17x8xbf16>
    %295 = vector.extract_strided_slice %254 {offsets = [0, 48], sizes = [17, 8], strides = [1, 1]} : vector<17x96xf32> to vector<17x8xf32>
    %296 = arith.truncf %295 : vector<17x8xf32> to vector<17x8xbf16>
    %297 = vector.extract_strided_slice %254 {offsets = [0, 80], sizes = [17, 8], strides = [1, 1]} : vector<17x96xf32> to vector<17x8xf32>
    %298 = arith.truncf %297 : vector<17x8xf32> to vector<17x8xbf16>
    %cst_105 = arith.constant dense<0.000000e+00> : vector<17x17xf32>
    %299 = tpu.matmul %294, %296, %cst_105 {dimension_numbers = #tpu.dot_dimension_numbers<[1], [1], [0], [0], [0, 0, 1, 0], [], []>} : vector<17x8xbf16>, vector<17x8xbf16>, vector<17x17xf32> -> vector<17x17xf32>
    %cst_106 = arith.constant dense<0xFF800000> : vector<17xf32>
    %300 = vector.multi_reduction <maximumf>, %299, %cst_106 [1] : vector<17x17xf32> to vector<17xf32>
    %301 = vector.shape_cast %300 : vector<17xf32> to vector<17x1xf32>
    %302 = vector.broadcast %301 : vector<17x1xf32> to vector<17x17xf32>
    %303 = arith.subf %299, %302 : vector<17x17xf32>
    %304 = math.exp %303 : vector<17x17xf32>
    %cst_107 = arith.constant dense<0.000000e+00> : vector<17xf32>
    %305 = vector.multi_reduction <add>, %304, %cst_107 [1] : vector<17x17xf32> to vector<17xf32>
    %306 = vector.shape_cast %305 : vector<17xf32> to vector<17x1xf32>
    %307 = tpu.reciprocal %306 {approx = true} : vector<17x1xf32> -> vector<17x1xf32>
    %308 = vector.broadcast %307 : vector<17x1xf32> to vector<17x17xf32>
    %309 = arith.mulf %304, %308 : vector<17x17xf32>
    %310 = arith.truncf %309 : vector<17x17xf32> to vector<17x17xbf16>
    %cst_108 = arith.constant dense<0.000000e+00> : vector<17x8xf32>
    %311 = tpu.matmul %310, %298, %cst_108 {dimension_numbers = #tpu.dot_dimension_numbers<[1], [0], [0], [1], [0, 0, 1, 1], [], []>} : vector<17x17xbf16>, vector<17x8xbf16>, vector<17x8xf32> -> vector<17x8xf32>
    %312 = vector.extract_strided_slice %254 {offsets = [0, 24], sizes = [17, 8], strides = [1, 1]} : vector<17x96xf32> to vector<17x8xf32>
    %313 = arith.truncf %312 : vector<17x8xf32> to vector<17x8xbf16>
    %314 = vector.extract_strided_slice %254 {offsets = [0, 56], sizes = [17, 8], strides = [1, 1]} : vector<17x96xf32> to vector<17x8xf32>
    %315 = arith.truncf %314 : vector<17x8xf32> to vector<17x8xbf16>
    %316 = vector.extract_strided_slice %254 {offsets = [0, 88], sizes = [17, 8], strides = [1, 1]} : vector<17x96xf32> to vector<17x8xf32>
    %317 = arith.truncf %316 : vector<17x8xf32> to vector<17x8xbf16>
    %cst_109 = arith.constant dense<0.000000e+00> : vector<17x17xf32>
    %318 = tpu.matmul %313, %315, %cst_109 {dimension_numbers = #tpu.dot_dimension_numbers<[1], [1], [0], [0], [0, 0, 1, 0], [], []>} : vector<17x8xbf16>, vector<17x8xbf16>, vector<17x17xf32> -> vector<17x17xf32>
    %cst_110 = arith.constant dense<0xFF800000> : vector<17xf32>
    %319 = vector.multi_reduction <maximumf>, %318, %cst_110 [1] : vector<17x17xf32> to vector<17xf32>
    %320 = vector.shape_cast %319 : vector<17xf32> to vector<17x1xf32>
    %321 = vector.broadcast %320 : vector<17x1xf32> to vector<17x17xf32>
    %322 = arith.subf %318, %321 : vector<17x17xf32>
    %323 = math.exp %322 : vector<17x17xf32>
    %cst_111 = arith.constant dense<0.000000e+00> : vector<17xf32>
    %324 = vector.multi_reduction <add>, %323, %cst_111 [1] : vector<17x17xf32> to vector<17xf32>
    %325 = vector.shape_cast %324 : vector<17xf32> to vector<17x1xf32>
    %326 = tpu.reciprocal %325 {approx = true} : vector<17x1xf32> -> vector<17x1xf32>
    %327 = vector.broadcast %326 : vector<17x1xf32> to vector<17x17xf32>
    %328 = arith.mulf %323, %327 : vector<17x17xf32>
    %329 = arith.truncf %328 : vector<17x17xf32> to vector<17x17xbf16>
    %cst_112 = arith.constant dense<0.000000e+00> : vector<17x8xf32>
    %330 = tpu.matmul %329, %317, %cst_112 {dimension_numbers = #tpu.dot_dimension_numbers<[1], [0], [0], [1], [0, 0, 1, 1], [], []>} : vector<17x17xbf16>, vector<17x8xbf16>, vector<17x8xf32> -> vector<17x8xf32>
    %331 = tpu.concatenate %273, %292, %311, %330 in 1 : vector<17x8xf32>, vector<17x8xf32>, vector<17x8xf32>, vector<17x8xf32> -> vector<17x32xf32>
    %332 = arith.truncf %331 : vector<17x32xf32> to vector<17x32xbf16>
    %c1_113 = arith.constant 1 : index
    %c0_114 = arith.constant 0 : index
    %c0_115 = arith.constant 0 : index
    %333 = vector.load %arg6[%c1_113, %c0_114, %c0_115] : memref<2x32x32xbf16, #tpu.memory_space<vmem>>, vector<1x32x32xbf16>
    %334 = vector.shape_cast %333 : vector<1x32x32xbf16> to vector<32x32xbf16>
    %cst_116 = arith.constant dense<0.000000e+00> : vector<17x32xf32>
    %335 = tpu.matmul %332, %334, %cst_116 {dimension_numbers = #tpu.dot_dimension_numbers<[1], [0], [0], [1], [0, 0, 1, 1], [], []>} : vector<17x32xbf16>, vector<32x32xbf16>, vector<17x32xf32> -> vector<17x32xf32>
    %336 = arith.addf %217, %335 : vector<17x32xf32>
    %c1_117 = arith.constant 1 : index
    %c4_118 = arith.constant 4 : index
    %c0_119 = arith.constant 0 : index
    %337 = vector.load %arg10[%c1_117, %c4_118, %c0_119] : memref<2x6x32xf32, #tpu.memory_space<vmem>>, vector<1x1x32xf32>
    %338 = vector.shape_cast %337 : vector<1x1x32xf32> to vector<32xf32>
    %339 = vector.shape_cast %338 : vector<32xf32> to vector<1x32xf32>
    %340 = vector.broadcast %339 : vector<1x32xf32> to vector<17x32xf32>
    %341 = arith.addf %336, %340 : vector<17x32xf32>
    %c1_120 = arith.constant 1 : index
    %c2_121 = arith.constant 2 : index
    %c0_122 = arith.constant 0 : index
    %342 = vector.load %arg10[%c1_120, %c2_121, %c0_122] : memref<2x6x32xf32, #tpu.memory_space<vmem>>, vector<1x1x32xf32>
    %343 = vector.shape_cast %342 : vector<1x1x32xf32> to vector<32xf32>
    %c1_123 = arith.constant 1 : index
    %c3_124 = arith.constant 3 : index
    %c0_125 = arith.constant 0 : index
    %344 = vector.load %arg10[%c1_123, %c3_124, %c0_125] : memref<2x6x32xf32, #tpu.memory_space<vmem>>, vector<1x1x32xf32>
    %345 = vector.shape_cast %344 : vector<1x1x32xf32> to vector<32xf32>
    %cst_126 = arith.constant dense<0.000000e+00> : vector<17xf32>
    %346 = vector.multi_reduction <add>, %341, %cst_126 [1] : vector<17x32xf32> to vector<17xf32>
    %347 = vector.shape_cast %346 : vector<17xf32> to vector<17x1xf32>
    %cst_127 = arith.constant 3.200000e+01 : f32
    %348 = vector.broadcast %cst_127 : f32 to vector<17x1xf32>
    %349 = arith.divf %347, %348 : vector<17x1xf32>
    %350 = vector.broadcast %349 : vector<17x1xf32> to vector<17x32xf32>
    %351 = arith.subf %341, %350 : vector<17x32xf32>
    %352 = arith.mulf %351, %351 : vector<17x32xf32>
    %cst_128 = arith.constant dense<0.000000e+00> : vector<17xf32>
    %353 = vector.multi_reduction <add>, %352, %cst_128 [1] : vector<17x32xf32> to vector<17xf32>
    %354 = vector.shape_cast %353 : vector<17xf32> to vector<17x1xf32>
    %cst_129 = arith.constant 3.200000e+01 : f32
    %355 = vector.broadcast %cst_129 : f32 to vector<17x1xf32>
    %356 = arith.divf %354, %355 : vector<17x1xf32>
    %357 = vector.broadcast %349 : vector<17x1xf32> to vector<17x32xf32>
    %358 = arith.subf %341, %357 : vector<17x32xf32>
    %cst_130 = arith.constant 9.99999996E-13 : f32
    %359 = vector.broadcast %cst_130 : f32 to vector<17x1xf32>
    %360 = arith.addf %356, %359 : vector<17x1xf32>
    %361 = math.rsqrt %360 : vector<17x1xf32>
    %362 = vector.broadcast %361 : vector<17x1xf32> to vector<17x32xf32>
    %363 = arith.mulf %358, %362 : vector<17x32xf32>
    %364 = vector.shape_cast %343 : vector<32xf32> to vector<1x32xf32>
    %365 = vector.broadcast %364 : vector<1x32xf32> to vector<17x32xf32>
    %366 = arith.mulf %363, %365 : vector<17x32xf32>
    %367 = vector.shape_cast %345 : vector<32xf32> to vector<1x32xf32>
    %368 = vector.broadcast %367 : vector<1x32xf32> to vector<17x32xf32>
    %369 = arith.addf %366, %368 : vector<17x32xf32>
    %370 = arith.truncf %369 : vector<17x32xf32> to vector<17x32xbf16>
    %c1_131 = arith.constant 1 : index
    %c0_132 = arith.constant 0 : index
    %c0_133 = arith.constant 0 : index
    %371 = vector.load %arg7[%c1_131, %c0_132, %c0_133] : memref<2x32x64xbf16, #tpu.memory_space<vmem>>, vector<1x32x64xbf16>
    %372 = vector.shape_cast %371 : vector<1x32x64xbf16> to vector<32x64xbf16>
    %cst_134 = arith.constant dense<0.000000e+00> : vector<17x64xf32>
    %373 = tpu.matmul %370, %372, %cst_134 {dimension_numbers = #tpu.dot_dimension_numbers<[1], [0], [0], [1], [0, 0, 1, 1], [], []>} : vector<17x32xbf16>, vector<32x64xbf16>, vector<17x64xf32> -> vector<17x64xf32>
    %c1_135 = arith.constant 1 : index
    %c0_136 = arith.constant 0 : index
    %374 = vector.load %arg8[%c1_135, %c0_136] : memref<2x64xf32, #tpu.memory_space<vmem>>, vector<1x64xf32>
    %375 = vector.shape_cast %374 : vector<1x64xf32> to vector<64xf32>
    %376 = vector.shape_cast %375 : vector<64xf32> to vector<1x64xf32>
    %377 = vector.broadcast %376 : vector<1x64xf32> to vector<17x64xf32>
    %378 = arith.addf %373, %377 : vector<17x64xf32>
    %cst_137 = arith.constant 0.707106769 : f32
    %379 = vector.broadcast %cst_137 : f32 to vector<17x64xf32>
    %380 = arith.mulf %378, %379 : vector<17x64xf32>
    %381 = math.absf %380 : vector<17x64xf32>
    %cst_138 = arith.constant 0.327591091 : f32
    %382 = vector.broadcast %cst_138 : f32 to vector<17x64xf32>
    %383 = arith.mulf %382, %381 : vector<17x64xf32>
    %cst_139 = arith.constant 1.000000e+00 : f32
    %384 = vector.broadcast %cst_139 : f32 to vector<17x64xf32>
    %385 = arith.addf %384, %383 : vector<17x64xf32>
    %cst_140 = arith.constant 1.000000e+00 : f32
    %386 = vector.broadcast %cst_140 : f32 to vector<17x64xf32>
    %387 = arith.divf %386, %385 : vector<17x64xf32>
    %cst_141 = arith.constant 1.06140542 : f32
    %388 = vector.broadcast %cst_141 : f32 to vector<17x64xf32>
    %389 = arith.mulf %387, %388 : vector<17x64xf32>
    %cst_142 = arith.constant -1.45315206 : f32
    %390 = vector.broadcast %cst_142 : f32 to vector<17x64xf32>
    %391 = arith.addf %390, %389 : vector<17x64xf32>
    %392 = arith.mulf %387, %391 : vector<17x64xf32>
    %cst_143 = arith.constant 1.42141378 : f32
    %393 = vector.broadcast %cst_143 : f32 to vector<17x64xf32>
    %394 = arith.addf %393, %392 : vector<17x64xf32>
    %395 = arith.mulf %387, %394 : vector<17x64xf32>
    %cst_144 = arith.constant -0.284496725 : f32
    %396 = vector.broadcast %cst_144 : f32 to vector<17x64xf32>
    %397 = arith.addf %396, %395 : vector<17x64xf32>
    %398 = arith.mulf %387, %397 : vector<17x64xf32>
    %cst_145 = arith.constant 0.254829586 : f32
    %399 = vector.broadcast %cst_145 : f32 to vector<17x64xf32>
    %400 = arith.addf %399, %398 : vector<17x64xf32>
    %401 = arith.mulf %387, %400 : vector<17x64xf32>
    %402 = arith.mulf %381, %381 : vector<17x64xf32>
    %cst_146 = arith.constant 0.000000e+00 : f32
    %403 = vector.broadcast %cst_146 : f32 to vector<17x64xf32>
    %404 = arith.subf %403, %402 : vector<17x64xf32>
    %405 = math.exp %404 : vector<17x64xf32>
    %406 = arith.mulf %401, %405 : vector<17x64xf32>
    %cst_147 = arith.constant 1.000000e+00 : f32
    %407 = vector.broadcast %cst_147 : f32 to vector<17x64xf32>
    %408 = arith.subf %407, %406 : vector<17x64xf32>
    %cst_148 = arith.constant 0.000000e+00 : f32
    %409 = vector.broadcast %cst_148 : f32 to vector<17x64xf32>
    %410 = arith.cmpf oge, %380, %409 : vector<17x64xf32>
    %cst_149 = arith.constant 0.000000e+00 : f32
    %411 = vector.broadcast %cst_149 : f32 to vector<17x64xf32>
    %412 = arith.subf %411, %408 : vector<17x64xf32>
    %413 = arith.select %410, %408, %412 : vector<17x64xi1>, vector<17x64xf32>
    %cst_150 = arith.constant 5.000000e-01 : f32
    %414 = vector.broadcast %cst_150 : f32 to vector<17x64xf32>
    %415 = arith.mulf %414, %378 : vector<17x64xf32>
    %cst_151 = arith.constant 1.000000e+00 : f32
    %416 = vector.broadcast %cst_151 : f32 to vector<17x64xf32>
    %417 = arith.addf %416, %413 : vector<17x64xf32>
    %418 = arith.mulf %415, %417 : vector<17x64xf32>
    %419 = arith.truncf %418 : vector<17x64xf32> to vector<17x64xbf16>
    %c1_152 = arith.constant 1 : index
    %c0_153 = arith.constant 0 : index
    %c0_154 = arith.constant 0 : index
    %420 = vector.load %arg9[%c1_152, %c0_153, %c0_154] : memref<2x64x32xbf16, #tpu.memory_space<vmem>>, vector<1x64x32xbf16>
    %421 = vector.shape_cast %420 : vector<1x64x32xbf16> to vector<64x32xbf16>
    %cst_155 = arith.constant dense<0.000000e+00> : vector<17x32xf32>
    %422 = tpu.matmul %419, %421, %cst_155 {dimension_numbers = #tpu.dot_dimension_numbers<[1], [0], [0], [1], [0, 0, 1, 1], [], []>} : vector<17x64xbf16>, vector<64x32xbf16>, vector<17x32xf32> -> vector<17x32xf32>
    %c1_156 = arith.constant 1 : index
    %c5_157 = arith.constant 5 : index
    %c0_158 = arith.constant 0 : index
    %423 = vector.load %arg10[%c1_156, %c5_157, %c0_158] : memref<2x6x32xf32, #tpu.memory_space<vmem>>, vector<1x1x32xf32>
    %424 = vector.shape_cast %423 : vector<1x1x32xf32> to vector<32xf32>
    %425 = vector.shape_cast %424 : vector<32xf32> to vector<1x32xf32>
    %426 = vector.broadcast %425 : vector<1x32xf32> to vector<17x32xf32>
    %427 = arith.addf %422, %426 : vector<17x32xf32>
    %428 = arith.addf %341, %427 : vector<17x32xf32>
    %c0_159 = arith.constant 0 : index
    %c0_160 = arith.constant 0 : index
    %429 = vector.load %arg11[%c0_159, %c0_160] : memref<2x32xf32, #tpu.memory_space<vmem>>, vector<1x32xf32>
    %430 = vector.shape_cast %429 : vector<1x32xf32> to vector<32xf32>
    %c1_161 = arith.constant 1 : index
    %c0_162 = arith.constant 0 : index
    %431 = vector.load %arg11[%c1_161, %c0_162] : memref<2x32xf32, #tpu.memory_space<vmem>>, vector<1x32xf32>
    %432 = vector.shape_cast %431 : vector<1x32xf32> to vector<32xf32>
    %cst_163 = arith.constant dense<0.000000e+00> : vector<17xf32>
    %433 = vector.multi_reduction <add>, %428, %cst_163 [1] : vector<17x32xf32> to vector<17xf32>
    %434 = vector.shape_cast %433 : vector<17xf32> to vector<17x1xf32>
    %cst_164 = arith.constant 3.200000e+01 : f32
    %435 = vector.broadcast %cst_164 : f32 to vector<17x1xf32>
    %436 = arith.divf %434, %435 : vector<17x1xf32>
    %437 = vector.broadcast %436 : vector<17x1xf32> to vector<17x32xf32>
    %438 = arith.subf %428, %437 : vector<17x32xf32>
    %439 = arith.mulf %438, %438 : vector<17x32xf32>
    %cst_165 = arith.constant dense<0.000000e+00> : vector<17xf32>
    %440 = vector.multi_reduction <add>, %439, %cst_165 [1] : vector<17x32xf32> to vector<17xf32>
    %441 = vector.shape_cast %440 : vector<17xf32> to vector<17x1xf32>
    %cst_166 = arith.constant 3.200000e+01 : f32
    %442 = vector.broadcast %cst_166 : f32 to vector<17x1xf32>
    %443 = arith.divf %441, %442 : vector<17x1xf32>
    %444 = vector.broadcast %436 : vector<17x1xf32> to vector<17x32xf32>
    %445 = arith.subf %428, %444 : vector<17x32xf32>
    %cst_167 = arith.constant 9.99999996E-13 : f32
    %446 = vector.broadcast %cst_167 : f32 to vector<17x1xf32>
    %447 = arith.addf %443, %446 : vector<17x1xf32>
    %448 = math.rsqrt %447 : vector<17x1xf32>
    %449 = vector.broadcast %448 : vector<17x1xf32> to vector<17x32xf32>
    %450 = arith.mulf %445, %449 : vector<17x32xf32>
    %451 = vector.shape_cast %430 : vector<32xf32> to vector<1x32xf32>
    %452 = vector.broadcast %451 : vector<1x32xf32> to vector<17x32xf32>
    %453 = arith.mulf %450, %452 : vector<17x32xf32>
    %454 = vector.shape_cast %432 : vector<32xf32> to vector<1x32xf32>
    %455 = vector.broadcast %454 : vector<1x32xf32> to vector<17x32xf32>
    %456 = arith.addf %453, %455 : vector<17x32xf32>
    %c0_168 = arith.constant 0 : index
    %c0_169 = arith.constant 0 : index
    %c0_170 = arith.constant 0 : index
    %457 = vector.load %arg12[%c0_168, %c0_169, %c0_170] : memref<1x17x32xf32, #tpu.memory_space<vmem>>, vector<1x17x32xf32>
    %458 = vector.shape_cast %457 : vector<1x17x32xf32> to vector<17x32xf32>
    %459 = vector.shape_cast %456 : vector<17x32xf32> to vector<1x17x32xf32>
    tpu.vector_store %arg12[%c0_168, %c0_169, %c0_170], %459 {strides = array<i32>} : memref<1x17x32xf32, #tpu.memory_space<vmem>>, vector<1x17x32xf32>,
    return
  }
  func.func @transform_0(%arg0: i32) -> (i32, i32, i32) {
    %c0_i32 = arith.constant 0 : i32
    %c0_i32_0 = arith.constant 0 : i32
    %c0_i32_1 = arith.constant 0 : i32
    return %arg0, %c0_i32, %c0_i32_0 : i32, i32, i32
  }
  func.func @transform_1(%arg0: i32) -> (i32, i32) {
    %c0_i32 = arith.constant 0 : i32
    %c0_i32_0 = arith.constant 0 : i32
    %c0_i32_1 = arith.constant 0 : i32
    return %c0_i32, %c0_i32_0 : i32, i32
  }
  func.func @transform_2(%arg0: i32) -> (i32, i32) {
    %c0_i32 = arith.constant 0 : i32
    %c0_i32_0 = arith.constant 0 : i32
    %c0_i32_1 = arith.constant 0 : i32
    return %c0_i32, %c0_i32_0 : i32, i32
  }
  func.func @transform_3(%arg0: i32) -> (i32, i32, i32) {
    %c0_i32 = arith.constant 0 : i32
    %c0_i32_0 = arith.constant 0 : i32
    %c0_i32_1 = arith.constant 0 : i32
    %c0_i32_2 = arith.constant 0 : i32
    return %c0_i32, %c0_i32_0, %c0_i32_1 : i32, i32, i32
  }
  func.func @transform_4(%arg0: i32) -> (i32, i32) {
    %c0_i32 = arith.constant 0 : i32
    %c0_i32_0 = arith.constant 0 : i32
    %c0_i32_1 = arith.constant 0 : i32
    return %c0_i32, %c0_i32_0 : i32, i32
  }
  func.func @transform_5(%arg0: i32) -> (i32, i32, i32) {
    %c0_i32 = arith.constant 0 : i32
    %c0_i32_0 = arith.constant 0 : i32
    %c0_i32_1 = arith.constant 0 : i32
    %c0_i32_2 = arith.constant 0 : i32
    return %c0_i32, %c0_i32_0, %c0_i32_1 : i32, i32, i32
  }
  func.func @transform_6(%arg0: i32) -> (i32, i32, i32) {
    %c0_i32 = arith.constant 0 : i32
    %c0_i32_0 = arith.constant 0 : i32
    %c0_i32_1 = arith.constant 0 : i32
    %c0_i32_2 = arith.constant 0 : i32
    return %c0_i32, %c0_i32_0, %c0_i32_1 : i32, i32, i32
  }
  func.func @transform_7(%arg0: i32) -> (i32, i32) {
    %c0_i32 = arith.constant 0 : i32
    %c0_i32_0 = arith.constant 0 : i32
    %c0_i32_1 = arith.constant 0 : i32
    return %c0_i32, %c0_i32_0 : i32, i32
  }
  func.func @transform_8(%arg0: i32) -> (i32, i32, i32) {
    %c0_i32 = arith.constant 0 : i32
    %c0_i32_0 = arith.constant 0 : i32
    %c0_i32_1 = arith.constant 0 : i32
    %c0_i32_2 = arith.constant 0 : i32
    return %c0_i32, %c0_i32_0, %c0_i32_1 : i32, i32, i32
  }
  func.func @transform_9(%arg0: i32) -> (i32, i32, i32) {
    %c0_i32 = arith.constant 0 : i32
    %c0_i32_0 = arith.constant 0 : i32
    %c0_i32_1 = arith.constant 0 : i32
    %c0_i32_2 = arith.constant 0 : i32
    return %c0_i32, %c0_i32_0, %c0_i32_1 : i32, i32, i32
  }
  func.func @transform_10(%arg0: i32) -> (i32, i32) {
    %c0_i32 = arith.constant 0 : i32
    %c0_i32_0 = arith.constant 0 : i32
    %c0_i32_1 = arith.constant 0 : i32
    return %c0_i32, %c0_i32_0 : i32, i32
  }
  func.func @transform_11(%arg0: i32) -> (i32, i32, i32) {
    %c0_i32 = arith.constant 0 : i32
    %c0_i32_0 = arith.constant 0 : i32
    %c0_i32_1 = arith.constant 0 : i32
    return %arg0, %c0_i32, %c0_i32_0 : i32, i32, i32
  }
}

</mosaic_0001>

<llo_original>
// kernel: sub.0
$region0: #{sub.0}
  #allocation0 [shape = 's32[1]{0}', space=sflag, size = 0x4, scoped, tag = 'scoped memory for sub.0']
  %s0 = inlined_call_operand.vmem [shape: f32[32], index: 0, kind: input, shape index: {}]
  %s1 = inlined_call_operand.vmem [shape: f32[32], index: 1, kind: input, shape index: {}]
  %s2 = inlined_call_operand.vmem [shape: f32[32], index: 2, kind: output, shape index: {}]
  %v3 = vld [vmem:[%s0] sm:$0x1]
  %v4 = vld [vmem:[%s1] sm:$0x1]
  %5 = xla_tuple %v3, %v4
  %6 = xla_tuple %5
  %v7 = vsub.f32 %v3, %v4
  %8 = xla_tuple %v7
  %9 = vst [vmem:[%s2] sm:$0x1] %v7

// kernel: vit_forward.1
$region0: #{vit_forward.1}
  #allocation0 [shape = 'u32[]', space=smem, size = 0x4, offset = 0x4, fixed_abs, tag = 'smem constant byte address 0x4 - core index']
  #allocation1 [shape = 'u32[72,128]{1,0:T(1,128)}', space=vmem, size = 0x9000, scoped, tag = 'internal scratch']
  %s0 = inlined_call_operand.vmem [shape: f32[2,17,48], index: 0, kind: input, shape index: {}]
  %s1 = inlined_call_operand.vmem [shape: bf16[48,32], index: 1, kind: input, shape index: {}]
  %s2 = inlined_call_operand.vmem [shape: f32[17,32], index: 2, kind: input, shape index: {}]
  %s3 = inlined_call_operand.vmem [shape: bf16[2,32,96], index: 3, kind: input, shape index: {}]
  %s4 = inlined_call_operand.vmem [shape: f32[2,96], index: 4, kind: input, shape index: {}]
  %s5 = inlined_call_operand.vmem [shape: bf16[2,32,32], index: 5, kind: input, shape index: {}]
  %s6 = inlined_call_operand.vmem [shape: bf16[2,32,64], index: 6, kind: input, shape index: {}]
  %s7 = inlined_call_operand.vmem [shape: f32[2,64], index: 7, kind: input, shape index: {}]
  %s8 = inlined_call_operand.vmem [shape: bf16[2,64,32], index: 8, kind: input, shape index: {}]
  %s9 = inlined_call_operand.vmem [shape: f32[2,6,32], index: 9, kind: input, shape index: {}]
  %s10 = inlined_call_operand.vmem [shape: f32[2,32], index: 10, kind: input, shape index: {}]
  %s11 = inlined_call_operand.vmem [shape: f32[2,17,32], index: 11, kind: output, shape index: {}]
  %s12 = sld [smem:[#allocation0]]
  $region77: #{vit_forward.1} parent=0
    _
  %s14 = ssub.s32 1, %s12
  %s15 = scalar_select 0, %s14, %s12
  loop: start=0, step=1, limit=4
  $region2: #{vit_forward.1} parent=0 // loop_pre_header
    _
  $region3: #{vit_forward.1} parent=0 // loop_header
    %s17 = sphi 0, %s21
    %p18 = scmp.ge.s32.totalorder %s17, 4
    %s27 = sphi 0, %s29
    %s30 = sphi 0, %s27
    %s31 = sphi 0, %s30
    %s47 = sphi 0, %s31
    %s51 = sphi 0, %s51
    %s53 = sphi 0, %s51
    %s54 = sphi 0, %s53
    %s68 = sphi 0, %s54
    %s72 = sphi 0, %s72
    %s74 = sphi 0, %s72
    %s75 = sphi 0, %s74
    %s89 = sphi 0, %s75
    %s93 = sphi 0, %s93
    %s95 = sphi 0, %s93
    %s96 = sphi 0, %s95
    %s110 = sphi 0, %s96
    %s114 = sphi 0, %s114
    %s116 = sphi 0, %s114
    %s117 = sphi 0, %s116
    %s131 = sphi 0, %s117
    %s135 = sphi 0, %s135
    %s137 = sphi 0, %s135
    %s138 = sphi 0, %s137
    %s152 = sphi 0, %s138
    %s156 = sphi 0, %s156
    %s158 = sphi 0, %s156
    %s159 = sphi 0, %s158
    %s173 = sphi 0, %s159
    %s177 = sphi 0, %s177
    %s179 = sphi 0, %s177
    %s180 = sphi 0, %s179
    %s194 = sphi 0, %s180
    %s198 = sphi 0, %s198
    %s200 = sphi 0, %s198
    %s201 = sphi 0, %s200
    %s215 = sphi 0, %s201
    %s219 = sphi 0, %s219
    %s221 = sphi 0, %s219
    %s222 = sphi 0, %s221
    %s236 = sphi 0, %s222
    %s240 = sphi 0, %s240
    %s242 = sphi 0, %s240
    %s243 = sphi 0, %s242
    %s257 = sphi 0, %s243
    %s263 = sphi 0, %s265
    %s266 = sphi 0, %s263
    %s267 = sphi 0, %s266
    %s283 = sphi 0, %s267
  $region4: #{vit_forward.1} parent=0 // loop_header_branch
    %20 = sbr.rel (%p18) target = $region8
  $region5: #{vit_forward.1} parent=0 // loop_body
    %s22 = ssub.s32 %s17, 1
    %s23 = ssub.s32 %s17, 2
    %s24 = sadd.s32 %s17, 1
    %s25 = ssub.s32 %s17, %s24
    %p26 = scmp.eq.s32.totalorder %s25, 0
    %s28 = sadd.s32 %s27, 1
    %s29 = scalar_select %p26, %s27, %s28
    %p32 = pneg %p26
    %p33 = scmp.eq.s32.totalorder %s17, 1
    %p34 = por %p32, %p33
    %p35 = scmp.ne.s32.totalorder %s27, %s30
    %p36 = scmp.eq.s32.totalorder %s17, 0
    %p37 = por %p35, %p36
    %p38 = scmp.ne.s32.totalorder %s27, %s30
    %p39 = scmp.eq.s32.totalorder %s22, 1
    %p40 = por %p38, %p39
    %p41 = scmp.ne.s32.totalorder %s30, %s31
    %p42 = scmp.eq.s32.totalorder %s22, 0
    %p43 = por %p41, %p42
    %p44 = scmp.ne.s32.totalorder %s30, %s31
    %p45 = scmp.eq.s32.totalorder %s23, 1
    %p46 = por %p44, %p45
    %p48 = scmp.ne.s32.totalorder %s31, %s47
    %p49 = scmp.eq.s32.totalorder %s23, 0
    %p50 = por %p48, %p49
    %s52 = sadd.s32 %s51, 1
    %p55 = scmp.eq.s32.totalorder %s17, 1
    %p56 = scmp.ne.s32.totalorder %s51, %s53
    %p57 = scmp.eq.s32.totalorder %s17, 0
    %p58 = por %p56, %p57
    %p59 = scmp.ne.s32.totalorder %s51, %s53
    %p60 = scmp.eq.s32.totalorder %s22, 1
    %p61 = por %p59, %p60
    %p62 = scmp.ne.s32.totalorder %s53, %s54
    %p63 = scmp.eq.s32.totalorder %s22, 0
    %p64 = por %p62, %p63
    %p65 = scmp.ne.s32.totalorder %s53, %s54
    %p66 = scmp.eq.s32.totalorder %s23, 1
    %p67 = por %p65, %p66
    %p69 = scmp.ne.s32.totalorder %s54, %s68
    %p70 = scmp.eq.s32.totalorder %s23, 0
    %p71 = por %p69, %p70
    %s73 = sadd.s32 %s72, 1
    %p76 = scmp.eq.s32.totalorder %s17, 1
    %p77 = scmp.ne.s32.totalorder %s72, %s74
    %p78 = scmp.eq.s32.totalorder %s17, 0
    %p79 = por %p77, %p78
    %p80 = scmp.ne.s32.totalorder %s72, %s74
    %p81 = scmp.eq.s32.totalorder %s22, 1
    %p82 = por %p80, %p81
    %p83 = scmp.ne.s32.totalorder %s74, %s75
    %p84 = scmp.eq.s32.totalorder %s22, 0
    %p85 = por %p83, %p84
    %p86 = scmp.ne.s32.totalorder %s74, %s75
    %p87 = scmp.eq.s32.totalorder %s23, 1
    %p88 = por %p86, %p87
    %p90 = scmp.ne.s32.totalorder %s75, %s89
    %p91 = scmp.eq.s32.totalorder %s23, 0
    %p92 = por %p90, %p91
    %s94 = sadd.s32 %s93, 1
    %p97 = scmp.eq.s32.totalorder %s17, 1
    %p98 = scmp.ne.s32.totalorder %s93, %s95
    %p99 = scmp.eq.s32.totalorder %s17, 0
    %p100 = por %p98, %p99
    %p101 = scmp.ne.s32.totalorder %s93, %s95
    %p102 = scmp.eq.s32.totalorder %s22, 1
    %p103 = por %p101, %p102
    %p104 = scmp.ne.s32.totalorder %s95, %s96
    %p105 = scmp.eq.s32.totalorder %s22, 0
    %p106 = por %p104, %p105
    %p107 = scmp.ne.s32.totalorder %s95, %s96
    %p108 = scmp.eq.s32.totalorder %s23, 1
    %p109 = por %p107, %p108
    %p111 = scmp.ne.s32.totalorder %s96, %s110
    %p112 = scmp.eq.s32.totalorder %s23, 0
    %p113 = por %p111, %p112
    %s115 = sadd.s32 %s114, 1
    %p118 = scmp.eq.s32.totalorder %s17, 1
    %p119 = scmp.ne.s32.totalorder %s114, %s116
    %p120 = scmp.eq.s32.totalorder %s17, 0
    %p121 = por %p119, %p120
    %p122 = scmp.ne.s32.totalorder %s114, %s116
    %p123 = scmp.eq.s32.totalorder %s22, 1
    %p124 = por %p122, %p123
    %p125 = scmp.ne.s32.totalorder %s116, %s117
    %p126 = scmp.eq.s32.totalorder %s22, 0
    %p127 = por %p125, %p126
    %p128 = scmp.ne.s32.totalorder %s116, %s117
    %p129 = scmp.eq.s32.totalorder %s23, 1
    %p130 = por %p128, %p129
    %p132 = scmp.ne.s32.totalorder %s117, %s131
    %p133 = scmp.eq.s32.totalorder %s23, 0
    %p134 = por %p132, %p133
    %s136 = sadd.s32 %s135, 1
    %p139 = scmp.eq.s32.totalorder %s17, 1
    %p140 = scmp.ne.s32.totalorder %s135, %s137
    %p141 = scmp.eq.s32.totalorder %s17, 0
    %p142 = por %p140, %p141
    %p143 = scmp.ne.s32.totalorder %s135, %s137
    %p144 = scmp.eq.s32.totalorder %s22, 1
    %p145 = por %p143, %p144
    %p146 = scmp.ne.s32.totalorder %s137, %s138
    %p147 = scmp.eq.s32.totalorder %s22, 0
    %p148 = por %p146, %p147
    %p149 = scmp.ne.s32.totalorder %s137, %s138
    %p150 = scmp.eq.s32.totalorder %s23, 1
    %p151 = por %p149, %p150
    %p153 = scmp.ne.s32.totalorder %s138, %s152
    %p154 = scmp.eq.s32.totalorder %s23, 0
    %p155 = por %p153, %p154
    %s157 = sadd.s32 %s156, 1
    %p160 = scmp.eq.s32.totalorder %s17, 1
    %p161 = scmp.ne.s32.totalorder %s156, %s158
    %p162 = scmp.eq.s32.totalorder %s17, 0
    %p163 = por %p161, %p162
    %p164 = scmp.ne.s32.totalorder %s156, %s158
    %p165 = scmp.eq.s32.totalorder %s22, 1
    %p166 = por %p164, %p165
    %p167 = scmp.ne.s32.totalorder %s158, %s159
    %p168 = scmp.eq.s32.totalorder %s22, 0
    %p169 = por %p167, %p168
    %p170 = scmp.ne.s32.totalorder %s158, %s159
    %p171 = scmp.eq.s32.totalorder %s23, 1
    %p172 = por %p170, %p171
    %p174 = scmp.ne.s32.totalorder %s159, %s173
    %p175 = scmp.eq.s32.totalorder %s23, 0
    %p176 = por %p174, %p175
    %s178 = sadd.s32 %s177, 1
    %p181 = scmp.eq.s32.totalorder %s17, 1
    %p182 = scmp.ne.s32.totalorder %s177, %s179
    %p183 = scmp.eq.s32.totalorder %s17, 0
    %p184 = por %p182, %p183
    %p185 = scmp.ne.s32.totalorder %s177, %s179
    %p186 = scmp.eq.s32.totalorder %s22, 1
    %p187 = por %p185, %p186
    %p188 = scmp.ne.s32.totalorder %s179, %s180
    %p189 = scmp.eq.s32.totalorder %s22, 0
    %p190 = por %p188, %p189
    %p191 = scmp.ne.s32.totalorder %s179, %s180
    %p192 = scmp.eq.s32.totalorder %s23, 1
    %p193 = por %p191, %p192
    %p195 = scmp.ne.s32.totalorder %s180, %s194
    %p196 = scmp.eq.s32.totalorder %s23, 0
    %p197 = por %p195, %p196
    %s199 = sadd.s32 %s198, 1
    %p202 = scmp.eq.s32.totalorder %s17, 1
    %p203 = scmp.ne.s32.totalorder %s198, %s200
    %p204 = scmp.eq.s32.totalorder %s17, 0
    %p205 = por %p203, %p204
    %p206 = scmp.ne.s32.totalorder %s198, %s200
    %p207 = scmp.eq.s32.totalorder %s22, 1
    %p208 = por %p206, %p207
    %p209 = scmp.ne.s32.totalorder %s200, %s201
    %p210 = scmp.eq.s32.totalorder %s22, 0
    %p211 = por %p209, %p210
    %p212 = scmp.ne.s32.totalorder %s200, %s201
    %p213 = scmp.eq.s32.totalorder %s23, 1
    %p214 = por %p212, %p213
    %p216 = scmp.ne.s32.totalorder %s201, %s215
    %p217 = scmp.eq.s32.totalorder %s23, 0
    %p218 = por %p216, %p217
    %s220 = sadd.s32 %s219, 1
    %p223 = scmp.eq.s32.totalorder %s17, 1
    %p224 = scmp.ne.s32.totalorder %s219, %s221
    %p225 = scmp.eq.s32.totalorder %s17, 0
    %p226 = por %p224, %p225
    %p227 = scmp.ne.s32.totalorder %s219, %s221
    %p228 = scmp.eq.s32.totalorder %s22, 1
    %p229 = por %p227, %p228
    %p230 = scmp.ne.s32.totalorder %s221, %s222
    %p231 = scmp.eq.s32.totalorder %s22, 0
    %p232 = por %p230, %p231
    %p233 = scmp.ne.s32.totalorder %s221, %s222
    %p234 = scmp.eq.s32.totalorder %s23, 1
    %p235 = por %p233, %p234
    %p237 = scmp.ne.s32.totalorder %s222, %s236
    %p238 = scmp.eq.s32.totalorder %s23, 0
    %p239 = por %p237, %p238
    %s241 = sadd.s32 %s240, 1
    %p244 = scmp.eq.s32.totalorder %s17, 1
    %p245 = scmp.ne.s32.totalorder %s240, %s242
    %p246 = scmp.eq.s32.totalorder %s17, 0
    %p247 = por %p245, %p246
    %p248 = scmp.ne.s32.totalorder %s240, %s242
    %p249 = scmp.eq.s32.totalorder %s22, 1
    %p250 = por %p248, %p249
    %p251 = scmp.ne.s32.totalorder %s242, %s243
    %p252 = scmp.eq.s32.totalorder %s22, 0
    %p253 = por %p251, %p252
    %p254 = scmp.ne.s32.totalorder %s242, %s243
    %p255 = scmp.eq.s32.totalorder %s23, 1
    %p256 = por %p254, %p255
    %p258 = scmp.ne.s32.totalorder %s243, %s257
    %p259 = scmp.eq.s32.totalorder %s23, 0
    %p260 = por %p258, %p259
    %s261 = ssub.s32 %s17, %s24
    %p262 = scmp.eq.s32.totalorder %s261, 0
    %s264 = sadd.s32 %s263, 1
    %s265 = scalar_select %p262, %s263, %s264
    %p268 = pneg %p262
    %p269 = scmp.eq.s32.totalorder %s17, 1
    %p270 = por %p268, %p269
    %p271 = scmp.ne.s32.totalorder %s263, %s266
    %p272 = scmp.eq.s32.totalorder %s17, 0
    %p273 = por %p271, %p272
    %p274 = scmp.ne.s32.totalorder %s263, %s266
    %p275 = scmp.eq.s32.totalorder %s22, 1
    %p276 = por %p274, %p275
    %p277 = scmp.ne.s32.totalorder %s266, %s267
    %p278 = scmp.eq.s32.totalorder %s22, 0
    %p279 = por %p277, %p278
    %p280 = scmp.ne.s32.totalorder %s266, %s267
    %p281 = scmp.eq.s32.totalorder %s23, 1
    %p282 = por %p280, %p281
    %p284 = scmp.ne.s32.totalorder %s267, %s283
    %p285 = scmp.eq.s32.totalorder %s23, 0
    %p286 = por %p284, %p285
    %p287 = scmp.le.s32.totalorder 1, %s17
    %p288 = scmp.lt.s32.totalorder %s17, 3
    %p289 = pnand %p287, %p288
    %p290 = pneg %p289
    // Predicated region
    $region9: #{vit_forward.1} parent=5 // pred_check
      _
    $region10: #{vit_forward.1} parent=5 // pred_check_branch
      %292 = sbr.rel (%p289) target = $region12
    $region11: #{vit_forward.1} parent=5 // pred_region
      %s293 = ssub.s32 %s17, 1
      // Predicated region
      $region13: #{vit_forward.1} parent=11 // pred_check
        %p294 = pneg %p64
      $region14: #{vit_forward.1} parent=11 // pred_check_branch
        %296 = sbr.rel (%p294) target = $region16
      $region15: #{vit_forward.1} parent=11 // pred_region
        _
      $region16: #{vit_forward.1} parent=11 // pred_fallthru
        _
      // Predicated region
      $region17: #{vit_forward.1} parent=11 // pred_check
        %p297 = pneg %p85
      $region18: #{vit_forward.1} parent=11 // pred_check_branch
        %299 = sbr.rel (%p297) target = $region20
      $region19: #{vit_forward.1} parent=11 // pred_region
        _
      $region20: #{vit_forward.1} parent=11 // pred_fallthru
        _
      // Predicated region
      $region21: #{vit_forward.1} parent=11 // pred_check
        %p300 = pneg %p106
      $region22: #{vit_forward.1} parent=11 // pred_check_branch
        %302 = sbr.rel (%p300) target = $region24
      $region23: #{vit_forward.1} parent=11 // pred_region
        _
      $region24: #{vit_forward.1} parent=11 // pred_fallthru
        _
      // Predicated region
      $region25: #{vit_forward.1} parent=11 // pred_check
        %p303 = pneg %p127
      $region26: #{vit_forward.1} parent=11 // pred_check_branch
        %305 = sbr.rel (%p303) target = $region28
      $region27: #{vit_forward.1} parent=11 // pred_region
        _
      $region28: #{vit_forward.1} parent=11 // pred_fallthru
        _
      // Predicated region
      $region29: #{vit_forward.1} parent=11 // pred_check
        %p306 = pneg %p148
      $region30: #{vit_forward.1} parent=11 // pred_check_branch
        %308 = sbr.rel (%p306) target = $region32
      $region31: #{vit_forward.1} parent=11 // pred_region
        _
      $region32: #{vit_forward.1} parent=11 // pred_fallthru
        _
      // Predicated region
      $region33: #{vit_forward.1} parent=11 // pred_check
        %p309 = pneg %p169
      $region34: #{vit_forward.1} parent=11 // pred_check_branch
        %311 = sbr.rel (%p309) target = $region36
      $region35: #{vit_forward.1} parent=11 // pred_region
        _
      $region36: #{vit_forward.1} parent=11 // pred_fallthru
        _
      // Predicated region
      $region37: #{vit_forward.1} parent=11 // pred_check
        %p312 = pneg %p190
      $region38: #{vit_forward.1} parent=11 // pred_check_branch
        %314 = sbr.rel (%p312) target = $region40
      $region39: #{vit_forward.1} parent=11 // pred_region
        _
      $region40: #{vit_forward.1} parent=11 // pred_fallthru
        _
      // Predicated region
      $region41: #{vit_forward.1} parent=11 // pred_check
        %p315 = pneg %p211
      $region42: #{vit_forward.1} parent=11 // pred_check_branch
        %317 = sbr.rel (%p315) target = $region44
      $region43: #{vit_forward.1} parent=11 // pred_region
        _
      $region44: #{vit_forward.1} parent=11 // pred_fallthru
        _
      // Predicated region
      $region45: #{vit_forward.1} parent=11 // pred_check
        %p318 = pneg %p232
      $region46: #{vit_forward.1} parent=11 // pred_check_branch
        %320 = sbr.rel (%p318) target = $region48
      $region47: #{vit_forward.1} parent=11 // pred_region
        _
      $region48: #{vit_forward.1} parent=11 // pred_fallthru
        _
      // Predicated region
      $region49: #{vit_forward.1} parent=11 // pred_check
        %p321 = pneg %p253
      $region50: #{vit_forward.1} parent=11 // pred_check_branch
        %323 = sbr.rel (%p321) target = $region52
      $region51: #{vit_forward.1} parent=11 // pred_region
        _
      $region52: #{vit_forward.1} parent=11 // pred_fallthru
        _
    $region12: #{vit_forward.1} parent=5 // pred_fallthru
      _
    %p324 = scmp.lt.s32.totalorder %s17, 2
    // Predicated region
    $region53: #{vit_forward.1} parent=5 // pred_check
      %p325 = pneg %p324
    $region54: #{vit_forward.1} parent=5 // pred_check_branch
      %327 = sbr.rel (%p325) target = $region56
    $region55: #{vit_forward.1} parent=5 // pred_region
      // Predicated region
      $region57: #{vit_forward.1} parent=55 // pred_check
        %p328 = pneg %p37
      $region58: #{vit_forward.1} parent=55 // pred_check_branch
        %330 = sbr.rel (%p328) target = $region60
      $region59: #{vit_forward.1} parent=55 // pred_region
        %p331 = scmp.lt.s32.totalorder %s17, 1
        %s332 = scalar_select %p331, %s17, 1
        %s333 = smul.addr %s332, 3
        %s334 = smul.addr %s333, 8
        %s335 = scalar_lea.vmem %s0, %s334
      $region60: #{vit_forward.1} parent=55 // pred_fallthru
        _
    $region56: #{vit_forward.1} parent=5 // pred_fallthru
      _
    %p336 = scmp.le.s32.totalorder 1, %s17
    %p337 = scmp.lt.s32.totalorder %s17, 3
    %p338 = pnand %p336, %p337
    %p339 = pneg %p338
    // Predicated region
    $region61: #{vit_forward.1} parent=5 // pred_check
      _
    $region62: #{vit_forward.1} parent=5 // pred_check_branch
      %341 = sbr.rel (%p338) target = $region64
    $region63: #{vit_forward.1} parent=5 // pred_region
      %s342 = ssub.s32 %s17, 1
      %p343 = scmp.lt.s32.totalorder %s22, 1
      %s344 = scalar_select %p343, %s22, 1
      %s345 = smul.addr %s344, 3
      %s346 = smul.addr %s345, 8
      %s347 = scalar_lea.vmem %s0, %s346
      %p348 = pneg %p43
      %p349 = pneg %p40
      %p350 = pneg %p64
      %p351 = pneg %p61
      %p352 = pneg %p85
      %p353 = pneg %p82
      %p354 = pneg %p106
      %p355 = pneg %p103
      %p356 = pneg %p127
      %p357 = pneg %p124
      %p358 = pneg %p148
      %p359 = pneg %p145
      %p360 = pneg %p169
      %p361 = pneg %p166
      %p362 = pneg %p190
      %p363 = pneg %p187
      %p364 = pneg %p211
      %p365 = pneg %p208
      %p366 = pneg %p232
      %p367 = pneg %p229
      %p368 = pneg %p253
      %p369 = pneg %p250
      %p370 = pneg %p279
      %p371 = pneg %p276
      %p372 = scmp.lt.s32.totalorder %s22, 1
      %s373 = scalar_select %p372, %s22, 1
      %s374 = smul.addr %s373, 3
      %s375 = smul.addr %s374, 8
      %s376 = scalar_lea.vmem %s11, %s375
      %p377 = scmp.lt.s32.totalorder %s22, 1
      %s378 = scalar_select %p377, %s22, 1
      %s379 = smul.addr %s378, 3
      %s380 = smul.addr %s379, 8
      %s381 = scalar_lea.vmem %s0, %s380
      %p382 = scmp.lt.s32.totalorder %s22, 1
      %s383 = scalar_select %p382, %s22, 1
      %s384 = smul.addr %s383, 3
      %s385 = smul.addr %s384, 8
      %s386 = scalar_lea.vmem %s11, %s385
      %v388 = vld [vmem:[%s381] sm:$0xff]
      %v389 = vld [vmem:[%s381 + $0x8] sm:$0xff]
      %v390 = vld [vmem:[%s381 + $0x10] sm:$0x1]
      %v391 = vpack.c.bf16 %v389, %v388
      %v392 = vpack.c.bf16 %v390, %v390
      %v393 = vld [vmem:[%s1] sm:$0xf]
      %v394 = vld [vmem:[%s1 + $0x4] sm:$0xf]
      %v395 = vld [vmem:[%s1 + $0x8] sm:$0xf]
      %v396 = vld [vmem:[%s1 + $0xc] sm:$0xf]
      %v397 = vld [vmem:[%s1 + $0x10] sm:$0xf]
      %v398 = vld [vmem:[%s1 + $0x14] sm:$0xf]
      %v399 = vld [vmem:[%s2] sm:$0xff]
      %v400 = vld [vmem:[%s2 + $0x8] sm:$0xff]
      %v401 = vld [vmem:[%s2 + $0x10] sm:$0x1]
      %v408 = vunpack.c.l.b16 %v393
      %v409 = vunpack.c.l.b16 %v394
      %v410 = vunpack.c.l.b16 %v395
      %v411 = vunpack.c.l.b16 %v396
      %v412 = vunpack.c.l.b16 %v397
      %v413 = vunpack.c.l.b16 %v398
      %v414 = vpack.c.b16 %v409, %v408
      %v415 = vpack.c.b16 %v411, %v410
      %v416 = vpack.c.b16 %v413, %v412
      %vm420 = vcmask 392192
      %v422 = vsel %vm420, %v391, 0
      %v425 = vsel %vm420, %v392, 0
      %427 = vmatpush.bf16.msra.mxu0 0
      %428 = vmatpush.bf16.msra.mxu0 0
      %429 = vmatpush.bf16.msra.mxu0 0
      %430 = vmatpush.bf16.msra.mxu0 0
      %431 = vmatpush.bf16.msra.mxu0 0
      %432 = vmatpush.bf16.msra.mxu0 %v416
      %433 = vmatpush.bf16.msra.mxu0 %v415
      %434 = vmatpush.bf16.msra.mxu0 %v414
      %435 = vmatmul.bf16.gmra.mxu0 %v422
      %v436 = vpop.f32.mrf.mxu0
      %v437 = vadd.f32 %v399, %v436
      %v438 = vpop.f32.mrf.mxu0
      %v439 = vadd.f32 %v400, %v438
      %440 = vmatmul.bf16.gmra.mxu0 %v425
      %v441 = vpop.f32.mrf.mxu0
      %v442 = vadd.f32 %v401, %v441
      %v443 = vpop.f32.mrf.mxu0
      %444 = vdwg.mxu0
      %v445 = vld [vmem:[%s9] sm:$0x1]
      %v446 = vld [vmem:[%s9 + $0x1] sm:$0x1]
      %vm447 = vcmask 261120
      %v448 = vsel %vm447, %v437, 0.0
      %449 = vadd.xlane.f32.xlu0 %v448
      %v450 = vpop.xlane.xlu0 %449
      %v451 = vsel %vm447, %v439, 0.0
      %452 = vadd.xlane.f32.xlu0 %v451
      %v453 = vpop.xlane.xlu0 %452
      %vm454 = vcmask 253952
      %v455 = vsel %vm454, %v442, 0.0
      %456 = vadd.xlane.f32.xlu0 %v455
      %v457 = vpop.xlane.xlu0 %456
      %v458 = vrcp.pop 32.0
      %v459 = vmul.f32 32.0, %v458
      %v460 = vsub.f32 1.0, %v459
      %v461 = vmul.f32 %v458, %v460
      %v462 = vadd.f32 %v458, %v461
      %vm463 = vweird.f32 %v458
      %v464 = vsel %vm463, %v458, %v462
      %v465 = vmul.f32 %v450, %v464
      %v466 = vmul.f32 %v453, %v464
      %v467 = vmul.f32 %v457, %v464
      %v468 = vsub.f32 %v437, %v465
      %v469 = vsub.f32 %v439, %v466
      %v470 = vsub.f32 %v442, %v467
      %v471 = vmul.f32 %v468, %v468
      %v472 = vmul.f32 %v469, %v469
      %v473 = vmul.f32 %v470, %v470
      %v474 = vsel %vm447, %v471, 0.0
      %475 = vadd.xlane.f32.xlu0 %v474
      %v476 = vpop.xlane.xlu0 %475
      %v477 = vsel %vm447, %v472, 0.0
      %478 = vadd.xlane.f32.xlu0 %v477
      %v479 = vpop.xlane.xlu0 %478
      %v480 = vsel %vm454, %v473, 0.0
      %481 = vadd.xlane.f32.xlu0 %v480
      %v482 = vpop.xlane.xlu0 %481
      %v483 = vmul.f32 %v476, %v464
      %v484 = vmul.f32 %v479, %v464
      %v485 = vmul.f32 %v482, %v464
      %v486 = vadd.f32 %v483, 1e-12
      %v487 = vadd.f32 %v484, 1e-12
      %v488 = vadd.f32 %v485, 1e-12
      %v489 = vrsqrt.pop %v486
      %v490 = vmul.f32 %v489, %v486
      %v491 = vmul.f32 %v490, %v489
      %v492 = vmul.f32 0.5, %v491
      %v493 = vsub.f32 1.5, %v492
      %v494 = vmul.f32 %v489, %v493
      %vm495 = vweird.f32 %v486
      %vm496 = vweird.f32 %v489
      %vm497 = vmor %vm495, %vm496
      %v498 = vsel %vm497, %v489, %v494
      %v499 = vrsqrt.pop %v487
      %v500 = vmul.f32 %v499, %v487
      %v501 = vmul.f32 %v500, %v499
      %v502 = vmul.f32 0.5, %v501
      %v503 = vsub.f32 1.5, %v502
      %v504 = vmul.f32 %v499, %v503
      %vm505 = vweird.f32 %v487
      %vm506 = vweird.f32 %v499
      %vm507 = vmor %vm505, %vm506
      %v508 = vsel %vm507, %v499, %v504
      %v509 = vrsqrt.pop %v488
      %v510 = vmul.f32 %v509, %v488
      %v511 = vmul.f32 %v510, %v509
      %v512 = vmul.f32 0.5, %v511
      %v513 = vsub.f32 1.5, %v512
      %v514 = vmul.f32 %v509, %v513
      %vm515 = vweird.f32 %v488
      %vm516 = vweird.f32 %v509
      %vm517 = vmor %vm515, %vm516
      %v518 = vsel %vm517, %v509, %v514
      %v519 = vmul.f32 %v468, %v498
      %v520 = vmul.f32 %v469, %v508
      %v521 = vmul.f32 %v470, %v518
      %v522 = vperm.slane %v445, 0
      %v523 = vmul.f32 %v519, %v522
      %v524 = vmul.f32 %v520, %v522
      %v525 = vmul.f32 %v521, %v522
      %v526 = vperm.slane %v446, 0
      %v527 = vadd.f32 %v523, %v526
      %v528 = vadd.f32 %v524, %v526
      %v529 = vadd.f32 %v525, %v526
      %v530 = vpack.c.bf16 %v528, %v527
      %v531 = vpack.c.bf16 %v529, %v529
      %v532 = vld [vmem:[%s3] sm:$0xf]
      %v533 = vld [vmem:[%s3 + $0x4] sm:$0xf]
      %v534 = vld [vmem:[%s3 + $0x8] sm:$0xf]
      %v535 = vld [vmem:[%s3 + $0xc] sm:$0xf]
      %v536 = vld [vmem:[%s4] sm:$0x1]
      %v537 = vperm.slane %v536, 0
      %v542 = vunpack.c.l.b16 %v532
      %v543 = vunpack.c.l.b16 %v533
      %v544 = vunpack.c.l.b16 %v534
      %v545 = vunpack.c.l.b16 %v535
      %v546 = vpack.c.b16 %v543, %v542
      %v547 = vpack.c.b16 %v545, %v544
      %v551 = vsel %vm447, %v530, 0
      %v554 = vsel %vm447, %v531, 0
      %556 = vmatpush.bf16.msra.mxu0 0
      %557 = vmatpush.bf16.msra.mxu0 0
      %558 = vmatpush.bf16.msra.mxu0 0
      %559 = vmatpush.bf16.msra.mxu0 0
      %560 = vmatpush.bf16.msra.mxu0 0
      %561 = vmatpush.bf16.msra.mxu0 0
      %562 = vmatpush.bf16.msra.mxu0 %v547
      %563 = vmatpush.bf16.msra.mxu0 %v546
      %564 = vmatmul.bf16.gmra.mxu0 %v551
      %v565 = vpop.f32.mrf.mxu0
      %v566 = vadd.f32 %v537, %v565
      %v567 = vpop.f32.mrf.mxu0
      %v568 = vadd.f32 %v537, %v567
      %569 = vmatmul.bf16.gmra.mxu0 %v554
      %v570 = vpop.f32.mrf.mxu0
      %v571 = vadd.f32 %v537, %v570
      %v572 = vpop.f32.mrf.mxu0
      %573 = vdwg.mxu0
      %v574 = vpack.c.bf16 %v568, %v566
      %v575 = vpack.c.bf16 %v571, %v571
      %578 = vrot.lane.b32.xlu0 %v574, 96
      %v579 = vpop.permute.xlu0 %578
      %580 = vrot.lane.b32.xlu0 %v575, 96
      %v581 = vpop.permute.xlu0 %580
      %vm582 = vcmask 64512
      %v584 = vsel %vm582, %v574, 0
      %v587 = vsel %vm582, %v575, 0
      %v590 = vsel %vm582, %v579, 0
      %v593 = vsel %vm582, %v581, 0
      %595 = vmatpush.bf16.xpose.msra.mxu0 0
      %596 = vmatpush.bf16.xpose.msra.mxu0 0
      %597 = vmatpush.bf16.xpose.msra.mxu0 0
      %598 = vmatpush.bf16.xpose.msra.mxu0 0
      %599 = vmatpush.bf16.xpose.msra.mxu0 0
      %600 = vmatpush.bf16.xpose.msra.mxu0 0
      %601 = vmatpush.bf16.xpose.msra.mxu0 %v593
      %602 = vmatpush.bf16.xpose.msra.mxu0 %v590
      %603 = vmatmul.bf16.gmra.mxu0 %v584
      %v604 = vpop.f32.mrf.mxu0
      %v605 = vadd.f32 0.0, %v604
      %v606 = vpop.f32.mrf.mxu0
      %v607 = vadd.f32 0.0, %v606
      %608 = vmatmul.bf16.gmra.mxu0 %v587
      %v609 = vpop.f32.mrf.mxu0
      %v610 = vadd.f32 0.0, %v609
      %v611 = vpop.f32.mrf.mxu0
      %612 = vdwg.mxu0
      %vm613 = vcmask 138240
      %v614 = vsel %vm613, %v605, -inf
      %615 = vmax.xlane.f32.xlu0 %v614
      %v616 = vpop.xlane.xlu0 %615
      %v617 = vsel %vm613, %v607, -inf
      %618 = vmax.xlane.f32.xlu0 %v617
      %v619 = vpop.xlane.xlu0 %618
      %vm620 = vcmask 131072
      %v621 = vsel %vm620, %v610, -inf
      %622 = vmax.xlane.f32.xlu0 %v621
      %v623 = vpop.xlane.xlu0 %622
      %v624 = vsub.f32 %v605, %v616
      %v625 = vsub.f32 %v607, %v619
      %v626 = vsub.f32 %v610, %v623
      %v627 = vmul.f32 %v624, 1.442695
      %v628 = vpow.pop %v627
      %v629 = vmul.f32 %v625, 1.442695
      %v630 = vpow.pop %v629
      %v631 = vmul.f32 %v626, 1.442695
      %v632 = vpow.pop %v631
      %v633 = vsel %vm613, %v628, 0.0
      %634 = vadd.xlane.f32.xlu0 %v633
      %v635 = vpop.xlane.xlu0 %634
      %v636 = vsel %vm613, %v630, 0.0
      %637 = vadd.xlane.f32.xlu0 %v636
      %v638 = vpop.xlane.xlu0 %637
      %v639 = vsel %vm620, %v632, 0.0
      %640 = vadd.xlane.f32.xlu0 %v639
      %v641 = vpop.xlane.xlu0 %640
      %v642 = vrcp.pop %v635
      %v643 = vrcp.pop %v638
      %v644 = vrcp.pop %v641
      %v645 = vmul.f32 %v628, %v642
      %v646 = vmul.f32 %v630, %v643
      %v647 = vmul.f32 %v632, %v644
      %v648 = vpack.c.bf16 %v646, %v645
      %v649 = vpack.c.bf16 %v647, %v647
      %650 = vrot.lane.b32.xlu0 %v574, 64
      %v651 = vpop.permute.xlu0 %650
      %652 = vrot.lane.b32.xlu0 %v575, 64
      %v653 = vpop.permute.xlu0 %652
      %v656 = vsel %vm613, %v648, 0
      %v659 = vsel %vm613, %v649, 0
      %vm661 = vcmask 1040384
      %v662 = vsel 0, 4294967295, 65535
      %v663 = vsel %vm661, %v662, 0
      %v665 = vand.u32 %v653, %v663
      %667 = vmatpush.bf16.msra.mxu0 0
      %668 = vmatpush.bf16.msra.mxu0 0
      %669 = vmatpush.bf16.msra.mxu0 0
      %670 = vmatpush.bf16.msra.mxu0 0
      %671 = vmatpush.bf16.msra.mxu0 0
      %672 = vmatpush.bf16.msra.mxu0 0
      %673 = vmatpush.bf16.msra.mxu0 %v665
      %674 = vmatpush.bf16.msra.mxu0 %v651
      %675 = vmatmul.bf16.gmra.mxu0 %v656
      %v676 = vpop.f32.mrf.mxu0
      %v677 = vadd.f32 0.0, %v676
      %v678 = vpop.f32.mrf.mxu0
      %v679 = vadd.f32 0.0, %v678
      %680 = vmatmul.bf16.gmra.mxu0 %v659
      %v681 = vpop.f32.mrf.mxu0
      %v682 = vadd.f32 0.0, %v681
      %v683 = vpop.f32.mrf.mxu0
      %684 = vdwg.mxu0
      %685 = vrot.lane.b32.xlu0 %v574, 120
      %v686 = vpop.permute.xlu0 %685
      %687 = vrot.lane.b32.xlu0 %v575, 120
      %v688 = vpop.permute.xlu0 %687
      %689 = vrot.lane.b32.xlu0 %v574, 88
      %v690 = vpop.permute.xlu0 %689
      %691 = vrot.lane.b32.xlu0 %v575, 88
      %v692 = vpop.permute.xlu0 %691
      %v694 = vsel %vm582, %v686, 0
      %v697 = vsel %vm582, %v688, 0
      %v700 = vsel %vm582, %v690, 0
      %v703 = vsel %vm582, %v692, 0
      %705 = vmatpush.bf16.xpose.msra.mxu0 0
      %706 = vmatpush.bf16.xpose.msra.mxu0 0
      %707 = vmatpush.bf16.xpose.msra.mxu0 0
      %708 = vmatpush.bf16.xpose.msra.mxu0 0
      %709 = vmatpush.bf16.xpose.msra.mxu0 0
      %710 = vmatpush.bf16.xpose.msra.mxu0 0
      %711 = vmatpush.bf16.xpose.msra.mxu0 %v703
      %712 = vmatpush.bf16.xpose.msra.mxu0 %v700
      %713 = vmatmul.bf16.gmra.mxu0 %v694
      %v714 = vpop.f32.mrf.mxu0
      %v715 = vadd.f32 0.0, %v714
      %v716 = vpop.f32.mrf.mxu0
      %v717 = vadd.f32 0.0, %v716
      %718 = vmatmul.bf16.gmra.mxu0 %v697
      %v719 = vpop.f32.mrf.mxu0
      %v720 = vadd.f32 0.0, %v719
      %v721 = vpop.f32.mrf.mxu0
      %722 = vdwg.mxu0
      %v723 = vsel %vm613, %v715, -inf
      %724 = vmax.xlane.f32.xlu0 %v723
      %v725 = vpop.xlane.xlu0 %724
      %v726 = vsel %vm613, %v717, -inf
      %727 = vmax.xlane.f32.xlu0 %v726
      %v728 = vpop.xlane.xlu0 %727
      %v729 = vsel %vm620, %v720, -inf
      %730 = vmax.xlane.f32.xlu0 %v729
      %v731 = vpop.xlane.xlu0 %730
      %v732 = vsub.f32 %v715, %v725
      %v733 = vsub.f32 %v717, %v728
      %v734 = vsub.f32 %v720, %v731
      %v735 = vmul.f32 %v732, 1.442695
      %v736 = vpow.pop %v735
      %v737 = vmul.f32 %v733, 1.442695
      %v738 = vpow.pop %v737
      %v739 = vmul.f32 %v734, 1.442695
      %v740 = vpow.pop %v739
      %v741 = vsel %vm613, %v736, 0.0
      %742 = vadd.xlane.f32.xlu0 %v741
      %v743 = vpop.xlane.xlu0 %742
      %v744 = vsel %vm613, %v738, 0.0
      %745 = vadd.xlane.f32.xlu0 %v744
      %v746 = vpop.xlane.xlu0 %745
      %v747 = vsel %vm620, %v740, 0.0
      %748 = vadd.xlane.f32.xlu0 %v747
      %v749 = vpop.xlane.xlu0 %748
      %v750 = vrcp.pop %v743
      %v751 = vrcp.pop %v746
      %v752 = vrcp.pop %v749
      %v753 = vmul.f32 %v736, %v750
      %v754 = vmul.f32 %v738, %v751
      %v755 = vmul.f32 %v740, %v752
      %v756 = vpack.c.bf16 %v754, %v753
      %v757 = vpack.c.bf16 %v755, %v755
      %758 = vrot.lane.b32.xlu0 %v574, 56
      %v759 = vpop.permute.xlu0 %758
      %760 = vrot.lane.b32.xlu0 %v575, 56
      %v761 = vpop.permute.xlu0 %760
      %v764 = vsel %vm613, %v756, 0
      %v767 = vsel %vm613, %v757, 0
      %v770 = vand.u32 %v761, %v663
      %772 = vmatpush.bf16.msra.mxu0 0
      %773 = vmatpush.bf16.msra.mxu0 0
      %774 = vmatpush.bf16.msra.mxu0 0
      %775 = vmatpush.bf16.msra.mxu0 0
      %776 = vmatpush.bf16.msra.mxu0 0
      %777 = vmatpush.bf16.msra.mxu0 0
      %778 = vmatpush.bf16.msra.mxu0 %v770
      %779 = vmatpush.bf16.msra.mxu0 %v759
      %780 = vmatmul.bf16.gmra.mxu0 %v764
      %v781 = vpop.f32.mrf.mxu0
      %v782 = vadd.f32 0.0, %v781
      %v783 = vpop.f32.mrf.mxu0
      %v784 = vadd.f32 0.0, %v783
      %785 = vmatmul.bf16.gmra.mxu0 %v767
      %v786 = vpop.f32.mrf.mxu0
      %v787 = vadd.f32 0.0, %v786
      %v788 = vpop.f32.mrf.mxu0
      %789 = vdwg.mxu0
      %790 = vrot.lane.b32.xlu0 %v574, 112
      %v791 = vpop.permute.xlu0 %790
      %792 = vrot.lane.b32.xlu0 %v575, 112
      %v793 = vpop.permute.xlu0 %792
      %794 = vrot.lane.b32.xlu0 %v574, 80
      %v795 = vpop.permute.xlu0 %794
      %796 = vrot.lane.b32.xlu0 %v575, 80
      %v797 = vpop.permute.xlu0 %796
      %v799 = vsel %vm582, %v791, 0
      %v802 = vsel %vm582, %v793, 0
      %v805 = vsel %vm582, %v795, 0
      %v808 = vsel %vm582, %v797, 0
      %810 = vmatpush.bf16.xpose.msra.mxu0 0
      %811 = vmatpush.bf16.xpose.msra.mxu0 0
      %812 = vmatpush.bf16.xpose.msra.mxu0 0
      %813 = vmatpush.bf16.xpose.msra.mxu0 0
      %814 = vmatpush.bf16.xpose.msra.mxu0 0
      %815 = vmatpush.bf16.xpose.msra.mxu0 0
      %816 = vmatpush.bf16.xpose.msra.mxu0 %v808
      %817 = vmatpush.bf16.xpose.msra.mxu0 %v805
      %818 = vmatmul.bf16.gmra.mxu0 %v799
      %v819 = vpop.f32.mrf.mxu0
      %v820 = vadd.f32 0.0, %v819
      %v821 = vpop.f32.mrf.mxu0
      %v822 = vadd.f32 0.0, %v821
      %823 = vmatmul.bf16.gmra.mxu0 %v802
      %v824 = vpop.f32.mrf.mxu0
      %v825 = vadd.f32 0.0, %v824
      %v826 = vpop.f32.mrf.mxu0
      %827 = vdwg.mxu0
      %v828 = vsel %vm613, %v820, -inf
      %829 = vmax.xlane.f32.xlu0 %v828
      %v830 = vpop.xlane.xlu0 %829
      %v831 = vsel %vm613, %v822, -inf
      %832 = vmax.xlane.f32.xlu0 %v831
      %v833 = vpop.xlane.xlu0 %832
      %v834 = vsel %vm620, %v825, -inf
      %835 = vmax.xlane.f32.xlu0 %v834
      %v836 = vpop.xlane.xlu0 %835
      %v837 = vsub.f32 %v820, %v830
      %v838 = vsub.f32 %v822, %v833
      %v839 = vsub.f32 %v825, %v836
      %v840 = vmul.f32 %v837, 1.442695
      %v841 = vpow.pop %v840
      %v842 = vmul.f32 %v838, 1.442695
      %v843 = vpow.pop %v842
      %v844 = vmul.f32 %v839, 1.442695
      %v845 = vpow.pop %v844
      %v846 = vsel %vm613, %v841, 0.0
      %847 = vadd.xlane.f32.xlu0 %v846
      %v848 = vpop.xlane.xlu0 %847
      %v849 = vsel %vm613, %v843, 0.0
      %850 = vadd.xlane.f32.xlu0 %v849
      %v851 = vpop.xlane.xlu0 %850
      %v852 = vsel %vm620, %v845, 0.0
      %853 = vadd.xlane.f32.xlu0 %v852
      %v854 = vpop.xlane.xlu0 %853
      %v855 = vrcp.pop %v848
      %v856 = vrcp.pop %v851
      %v857 = vrcp.pop %v854
      %v858 = vmul.f32 %v841, %v855
      %v859 = vmul.f32 %v843, %v856
      %v860 = vmul.f32 %v845, %v857
      %v861 = vpack.c.bf16 %v859, %v858
      %v862 = vpack.c.bf16 %v860, %v860
      %863 = vrot.lane.b32.xlu0 %v574, 48
      %v864 = vpop.permute.xlu0 %863
      %865 = vrot.lane.b32.xlu0 %v575, 48
      %v866 = vpop.permute.xlu0 %865
      %v869 = vsel %vm613, %v861, 0
      %v872 = vsel %vm613, %v862, 0
      %v875 = vand.u32 %v866, %v663
      %877 = vmatpush.bf16.msra.mxu0 0
      %878 = vmatpush.bf16.msra.mxu0 0
      %879 = vmatpush.bf16.msra.mxu0 0
      %880 = vmatpush.bf16.msra.mxu0 0
      %881 = vmatpush.bf16.msra.mxu0 0
      %882 = vmatpush.bf16.msra.mxu0 0
      %883 = vmatpush.bf16.msra.mxu0 %v875
      %884 = vmatpush.bf16.msra.mxu0 %v864
      %885 = vmatmul.bf16.gmra.mxu0 %v869
      %v886 = vpop.f32.mrf.mxu0
      %v887 = vadd.f32 0.0, %v886
      %v888 = vpop.f32.mrf.mxu0
      %v889 = vadd.f32 0.0, %v888
      %890 = vmatmul.bf16.gmra.mxu0 %v872
      %v891 = vpop.f32.mrf.mxu0
      %v892 = vadd.f32 0.0, %v891
      %v893 = vpop.f32.mrf.mxu0
      %894 = vdwg.mxu0
      %895 = vrot.lane.b32.xlu0 %v574, 104
      %v896 = vpop.permute.xlu0 %895
      %897 = vrot.lane.b32.xlu0 %v575, 104
      %v898 = vpop.permute.xlu0 %897
      %899 = vrot.lane.b32.xlu0 %v574, 72
      %v900 = vpop.permute.xlu0 %899
      %901 = vrot.lane.b32.xlu0 %v575, 72
      %v902 = vpop.permute.xlu0 %901
      %v904 = vsel %vm582, %v896, 0
      %v907 = vsel %vm582, %v898, 0
      %v910 = vsel %vm582, %v900, 0
      %v913 = vsel %vm582, %v902, 0
      %915 = vmatpush.bf16.xpose.msra.mxu0 0
      %916 = vmatpush.bf16.xpose.msra.mxu0 0
      %917 = vmatpush.bf16.xpose.msra.mxu0 0
      %918 = vmatpush.bf16.xpose.msra.mxu0 0
      %919 = vmatpush.bf16.xpose.msra.mxu0 0
      %920 = vmatpush.bf16.xpose.msra.mxu0 0
      %921 = vmatpush.bf16.xpose.msra.mxu0 %v913
      %922 = vmatpush.bf16.xpose.msra.mxu0 %v910
      %923 = vmatmul.bf16.gmra.mxu0 %v904
      %v924 = vpop.f32.mrf.mxu0
      %v925 = vadd.f32 0.0, %v924
      %v926 = vpop.f32.mrf.mxu0
      %v927 = vadd.f32 0.0, %v926
      %928 = vmatmul.bf16.gmra.mxu0 %v907
      %v929 = vpop.f32.mrf.mxu0
      %v930 = vadd.f32 0.0, %v929
      %v931 = vpop.f32.mrf.mxu0
      %932 = vdwg.mxu0
      %v933 = vsel %vm613, %v925, -inf
      %934 = vmax.xlane.f32.xlu0 %v933
      %v935 = vpop.xlane.xlu0 %934
      %v936 = vsel %vm613, %v927, -inf
      %937 = vmax.xlane.f32.xlu0 %v936
      %v938 = vpop.xlane.xlu0 %937
      %v939 = vsel %vm620, %v930, -inf
      %940 = vmax.xlane.f32.xlu0 %v939
      %v941 = vpop.xlane.xlu0 %940
      %v942 = vsub.f32 %v925, %v935
      %v943 = vsub.f32 %v927, %v938
      %v944 = vsub.f32 %v930, %v941
      %v945 = vmul.f32 %v942, 1.442695
      %v946 = vpow.pop %v945
      %v947 = vmul.f32 %v943, 1.442695
      %v948 = vpow.pop %v947
      %v949 = vmul.f32 %v944, 1.442695
      %v950 = vpow.pop %v949
      %v951 = vsel %vm613, %v946, 0.0
      %952 = vadd.xlane.f32.xlu0 %v951
      %v953 = vpop.xlane.xlu0 %952
      %v954 = vsel %vm613, %v948, 0.0
      %955 = vadd.xlane.f32.xlu0 %v954
      %v956 = vpop.xlane.xlu0 %955
      %v957 = vsel %vm620, %v950, 0.0
      %958 = vadd.xlane.f32.xlu0 %v957
      %v959 = vpop.xlane.xlu0 %958
      %v960 = vrcp.pop %v953
      %v961 = vrcp.pop %v956
      %v962 = vrcp.pop %v959
      %v963 = vmul.f32 %v946, %v960
      %v964 = vmul.f32 %v948, %v961
      %v965 = vmul.f32 %v950, %v962
      %v966 = vpack.c.bf16 %v964, %v963
      %v967 = vpack.c.bf16 %v965, %v965
      %968 = vrot.lane.b32.xlu0 %v574, 40
      %v969 = vpop.permute.xlu0 %968
      %970 = vrot.lane.b32.xlu0 %v575, 40
      %v971 = vpop.permute.xlu0 %970
      %v974 = vsel %vm613, %v966, 0
      %v977 = vsel %vm613, %v967, 0
      %v980 = vand.u32 %v971, %v663
      %982 = vmatpush.bf16.msra.mxu0 0
      %983 = vmatpush.bf16.msra.mxu0 0
      %984 = vmatpush.bf16.msra.mxu0 0
      %985 = vmatpush.bf16.msra.mxu0 0
      %986 = vmatpush.bf16.msra.mxu0 0
      %987 = vmatpush.bf16.msra.mxu0 0
      %988 = vmatpush.bf16.msra.mxu0 %v980
      %989 = vmatpush.bf16.msra.mxu0 %v969
      %990 = vmatmul.bf16.gmra.mxu0 %v974
      %v991 = vpop.f32.mrf.mxu0
      %v992 = vadd.f32 0.0, %v991
      %v993 = vpop.f32.mrf.mxu0
      %v994 = vadd.f32 0.0, %v993
      %995 = vmatmul.bf16.gmra.mxu0 %v977
      %v996 = vpop.f32.mrf.mxu0
      %v997 = vadd.f32 0.0, %v996
      %v998 = vpop.f32.mrf.mxu0
      %999 = vdwg.mxu0
      %1003 = vrot.lane.b32.xlu0 %v782, 8
      %v1004 = vpop.permute.xlu0 %1003
      %1005 = vrot.lane.b32.xlu0 %v784, 8
      %v1006 = vpop.permute.xlu0 %1005
      %1007 = vrot.lane.b32.xlu0 %v787, 8
      %v1008 = vpop.permute.xlu0 %1007
      %1015 = vrot.lane.b32.xlu0 %v887, 16
      %v1016 = vpop.permute.xlu0 %1015
      %1017 = vrot.lane.b32.xlu0 %v889, 16
      %v1018 = vpop.permute.xlu0 %1017
      %1019 = vrot.lane.b32.xlu0 %v892, 16
      %v1020 = vpop.permute.xlu0 %1019
      %1027 = vrot.lane.b32.xlu0 %v992, 24
      %v1028 = vpop.permute.xlu0 %1027
      %1029 = vrot.lane.b32.xlu0 %v994, 24
      %v1030 = vpop.permute.xlu0 %1029
      %1031 = vrot.lane.b32.xlu0 %v997, 24
      %v1032 = vpop.permute.xlu0 %1031
      %v1036 = vsel %vm582, %v677, %v1004
      %v1037 = vsel %vm582, %v679, %v1006
      %v1038 = vsel %vm582, %v682, %v1008
      %vm1039 = vcmask 130048
      %v1040 = vsel %vm1039, %v1036, %v1016
      %v1041 = vsel %vm1039, %v1037, %v1018
      %v1042 = vsel %vm1039, %v1038, %v1020
      %vm1043 = vcmask 195584
      %v1044 = vsel %vm1043, %v1040, %v1028
      %v1045 = vsel %vm1043, %v1041, %v1030
      %v1046 = vsel %vm1043, %v1042, %v1032
      %v1047 = vpack.c.bf16 %v1045, %v1044
      %v1048 = vpack.c.bf16 %v1046, %v1046
      %v1049 = vld [vmem:[%s5] sm:$0xf]
      %v1050 = vld [vmem:[%s5 + $0x4] sm:$0xf]
      %v1051 = vld [vmem:[%s5 + $0x8] sm:$0xf]
      %v1052 = vld [vmem:[%s5 + $0xc] sm:$0xf]
      %v1057 = vunpack.c.l.b16 %v1049
      %v1058 = vunpack.c.l.b16 %v1050
      %v1059 = vunpack.c.l.b16 %v1051
      %v1060 = vunpack.c.l.b16 %v1052
      %v1061 = vpack.c.b16 %v1058, %v1057
      %v1062 = vpack.c.b16 %v1060, %v1059
      %v1066 = vsel %vm447, %v1047, 0
      %v1069 = vsel %vm447, %v1048, 0
      %1071 = vmatpush.bf16.msra.mxu0 0
      %1072 = vmatpush.bf16.msra.mxu0 0
      %1073 = vmatpush.bf16.msra.mxu0 0
      %1074 = vmatpush.bf16.msra.mxu0 0
      %1075 = vmatpush.bf16.msra.mxu0 0
      %1076 = vmatpush.bf16.msra.mxu0 0
      %1077 = vmatpush.bf16.msra.mxu0 %v1062
      %1078 = vmatpush.bf16.msra.mxu0 %v1061
      %1079 = vmatmul.bf16.gmra.mxu0 %v1066
      %v1080 = vpop.f32.mrf.mxu0
      %v1081 = vadd.f32 0.0, %v1080
      %v1082 = vpop.f32.mrf.mxu0
      %v1083 = vadd.f32 0.0, %v1082
      %1084 = vmatmul.bf16.gmra.mxu0 %v1069
      %v1085 = vpop.f32.mrf.mxu0
      %v1086 = vadd.f32 0.0, %v1085
      %v1087 = vpop.f32.mrf.mxu0
      %1088 = vdwg.mxu0
      %v1089 = vadd.f32 %v437, %v1081
      %v1090 = vadd.f32 %v439, %v1083
      %v1091 = vadd.f32 %v442, %v1086
      %v1092 = vld [vmem:[%s9 + $0x4] sm:$0x1]
      %v1093 = vperm.slane %v1092, 0
      %v1094 = vadd.f32 %v1089, %v1093
      %v1095 = vadd.f32 %v1090, %v1093
      %v1096 = vadd.f32 %v1091, %v1093
      %v1097 = vld [vmem:[%s9 + $0x2] sm:$0x1]
      %v1098 = vld [vmem:[%s9 + $0x3] sm:$0x1]
      %v1099 = vsel %vm447, %v1094, 0.0
      %1100 = vadd.xlane.f32.xlu0 %v1099
      %v1101 = vpop.xlane.xlu0 %1100
      %v1102 = vsel %vm447, %v1095, 0.0
      %1103 = vadd.xlane.f32.xlu0 %v1102
      %v1104 = vpop.xlane.xlu0 %1103
      %v1105 = vsel %vm454, %v1096, 0.0
      %1106 = vadd.xlane.f32.xlu0 %v1105
      %v1107 = vpop.xlane.xlu0 %1106
      %v1108 = vmul.f32 %v1101, %v464
      %v1109 = vmul.f32 %v1104, %v464
      %v1110 = vmul.f32 %v1107, %v464
      %v1111 = vsub.f32 %v1094, %v1108
      %v1112 = vsub.f32 %v1095, %v1109
      %v1113 = vsub.f32 %v1096, %v1110
      %v1114 = vmul.f32 %v1111, %v1111
      %v1115 = vmul.f32 %v1112, %v1112
      %v1116 = vmul.f32 %v1113, %v1113
      %v1117 = vsel %vm447, %v1114, 0.0
      %1118 = vadd.xlane.f32.xlu0 %v1117
      %v1119 = vpop.xlane.xlu0 %1118
      %v1120 = vsel %vm447, %v1115, 0.0
      %1121 = vadd.xlane.f32.xlu0 %v1120
      %v1122 = vpop.xlane.xlu0 %1121
      %v1123 = vsel %vm454, %v1116, 0.0
      %1124 = vadd.xlane.f32.xlu0 %v1123
      %v1125 = vpop.xlane.xlu0 %1124
      %v1126 = vmul.f32 %v1119, %v464
      %v1127 = vmul.f32 %v1122, %v464
      %v1128 = vmul.f32 %v1125, %v464
      %v1129 = vadd.f32 %v1126, 1e-12
      %v1130 = vadd.f32 %v1127, 1e-12
      %v1131 = vadd.f32 %v1128, 1e-12
      %v1132 = vrsqrt.pop %v1129
      %v1133 = vmul.f32 %v1132, %v1129
      %v1134 = vmul.f32 %v1133, %v1132
      %v1135 = vmul.f32 0.5, %v1134
      %v1136 = vsub.f32 1.5, %v1135
      %v1137 = vmul.f32 %v1132, %v1136
      %vm1138 = vweird.f32 %v1129
      %vm1139 = vweird.f32 %v1132
      %vm1140 = vmor %vm1138, %vm1139
      %v1141 = vsel %vm1140, %v1132, %v1137
      %v1142 = vrsqrt.pop %v1130
      %v1143 = vmul.f32 %v1142, %v1130
      %v1144 = vmul.f32 %v1143, %v1142
      %v1145 = vmul.f32 0.5, %v1144
      %v1146 = vsub.f32 1.5, %v1145
      %v1147 = vmul.f32 %v1142, %v1146
      %vm1148 = vweird.f32 %v1130
      %vm1149 = vweird.f32 %v1142
      %vm1150 = vmor %vm1148, %vm1149
      %v1151 = vsel %vm1150, %v1142, %v1147
      %v1152 = vrsqrt.pop %v1131
      %v1153 = vmul.f32 %v1152, %v1131
      %v1154 = vmul.f32 %v1153, %v1152
      %v1155 = vmul.f32 0.5, %v1154
      %v1156 = vsub.f32 1.5, %v1155
      %v1157 = vmul.f32 %v1152, %v1156
      %vm1158 = vweird.f32 %v1131
      %vm1159 = vweird.f32 %v1152
      %vm1160 = vmor %vm1158, %vm1159
      %v1161 = vsel %vm1160, %v1152, %v1157
      %v1162 = vmul.f32 %v1111, %v1141
      %v1163 = vmul.f32 %v1112, %v1151
      %v1164 = vmul.f32 %v1113, %v1161
      %v1165 = vperm.slane %v1097, 0
      %v1166 = vmul.f32 %v1162, %v1165
      %v1167 = vmul.f32 %v1163, %v1165
      %v1168 = vmul.f32 %v1164, %v1165
      %v1169 = vperm.slane %v1098, 0
      %v1170 = vadd.f32 %v1166, %v1169
      %v1171 = vadd.f32 %v1167, %v1169
      %v1172 = vadd.f32 %v1168, %v1169
      %v1173 = vpack.c.bf16 %v1171, %v1170
      %v1174 = vpack.c.bf16 %v1172, %v1172
      %v1175 = vld [vmem:[%s6] sm:$0xf]
      %v1176 = vld [vmem:[%s6 + $0x4] sm:$0xf]
      %v1177 = vld [vmem:[%s6 + $0x8] sm:$0xf]
      %v1178 = vld [vmem:[%s6 + $0xc] sm:$0xf]
      %v1179 = vld [vmem:[%s7] sm:$0x1]
      %v1180 = vperm.slane %v1179, 0
      %v1185 = vunpack.c.l.b16 %v1175
      %v1186 = vunpack.c.l.b16 %v1176
      %v1187 = vunpack.c.l.b16 %v1177
      %v1188 = vunpack.c.l.b16 %v1178
      %v1189 = vpack.c.b16 %v1186, %v1185
      %v1190 = vpack.c.b16 %v1188, %v1187
      %v1194 = vsel %vm447, %v1173, 0
      %v1197 = vsel %vm447, %v1174, 0
      %1199 = vmatpush.bf16.msra.mxu0 0
      %1200 = vmatpush.bf16.msra.mxu0 0
      %1201 = vmatpush.bf16.msra.mxu0 0
      %1202 = vmatpush.bf16.msra.mxu0 0
      %1203 = vmatpush.bf16.msra.mxu0 0
      %1204 = vmatpush.bf16.msra.mxu0 0
      %1205 = vmatpush.bf16.msra.mxu0 %v1190
      %1206 = vmatpush.bf16.msra.mxu0 %v1189
      %1207 = vmatmul.bf16.gmra.mxu0 %v1194
      %v1208 = vpop.f32.mrf.mxu0
      %v1209 = vadd.f32 %v1180, %v1208
      %v1210 = vpop.f32.mrf.mxu0
      %v1211 = vadd.f32 %v1180, %v1210
      %1212 = vmatmul.bf16.gmra.mxu0 %v1197
      %v1213 = vpop.f32.mrf.mxu0
      %v1214 = vadd.f32 %v1180, %v1213
      %v1215 = vpop.f32.mrf.mxu0
      %1216 = vdwg.mxu0
      %v1217 = vmul.f32 %v1209, 0.70710677
      %v1218 = vmul.f32 %v1211, 0.70710677
      %v1219 = vmul.f32 %v1214, 0.70710677
      %v1220 = vand.u32 2147483647, %v1217
      %v1221 = vand.u32 2147483647, %v1218
      %v1222 = vand.u32 2147483647, %v1219
      %v1223 = vmul.f32 %v1220, 0.3275911
      %v1224 = vmul.f32 %v1221, 0.3275911
      %v1225 = vmul.f32 %v1222, 0.3275911
      %v1226 = vadd.f32 %v1223, 1.0
      %v1227 = vadd.f32 %v1224, 1.0
      %v1228 = vadd.f32 %v1225, 1.0
      %v1229 = vrcp.pop %v1226
      %v1230 = vmul.f32 %v1226, %v1229
      %v1231 = vsub.f32 1.0, %v1230
      %v1232 = vmul.f32 %v1229, %v1231
      %v1233 = vadd.f32 %v1229, %v1232
      %vm1234 = vweird.f32 %v1226
      %vm1235 = vweird.f32 %v1229
      %vm1236 = vmor %vm1234, %vm1235
      %v1237 = vsel %vm1236, %v1229, %v1233
      %v1238 = vand.u32 2147483647, %v1226
      %vm1239 = vcmp.eq.f32.partialorder %v1238, 8.507059e+37
      %v1240 = vand.u32 %v1226, 2147483648
      %v1241 = vor.u32 1.1754944e-38, %v1240
      %v1242 = vsel %vm1239, %v1241, %v1237
      %v1243 = vmul.f32 1.0, %v1242
      %v1244 = vrcp.pop %v1227
      %v1245 = vmul.f32 %v1227, %v1244
      %v1246 = vsub.f32 1.0, %v1245
      %v1247 = vmul.f32 %v1244, %v1246
      %v1248 = vadd.f32 %v1244, %v1247
      %vm1249 = vweird.f32 %v1227
      %vm1250 = vweird.f32 %v1244
      %vm1251 = vmor %vm1249, %vm1250
      %v1252 = vsel %vm1251, %v1244, %v1248
      %v1253 = vand.u32 2147483647, %v1227
      %vm1254 = vcmp.eq.f32.partialorder %v1253, 8.507059e+37
      %v1255 = vand.u32 %v1227, 2147483648
      %v1256 = vor.u32 1.1754944e-38, %v1255
      %v1257 = vsel %vm1254, %v1256, %v1252
      %v1258 = vmul.f32 1.0, %v1257
      %v1259 = vrcp.pop %v1228
      %v1260 = vmul.f32 %v1228, %v1259
      %v1261 = vsub.f32 1.0, %v1260
      %v1262 = vmul.f32 %v1259, %v1261
      %v1263 = vadd.f32 %v1259, %v1262
      %vm1264 = vweird.f32 %v1228
      %vm1265 = vweird.f32 %v1259
      %vm1266 = vmor %vm1264, %vm1265
      %v1267 = vsel %vm1266, %v1259, %v1263
      %v1268 = vand.u32 2147483647, %v1228
      %vm1269 = vcmp.eq.f32.partialorder %v1268, 8.507059e+37
      %v1270 = vand.u32 %v1228, 2147483648
      %v1271 = vor.u32 1.1754944e-38, %v1270
      %v1272 = vsel %vm1269, %v1271, %v1267
      %v1273 = vmul.f32 1.0, %v1272
      %v1274 = vmul.f32 %v1243, 1.0614054
      %v1275 = vmul.f32 %v1258, 1.0614054
      %v1276 = vmul.f32 %v1273, 1.0614054
      %v1277 = vadd.f32 %v1274, -1.4531521
      %v1278 = vadd.f32 %v1275, -1.4531521
      %v1279 = vadd.f32 %v1276, -1.4531521
      %v1280 = vmul.f32 %v1243, %v1277
      %v1281 = vmul.f32 %v1258, %v1278
      %v1282 = vmul.f32 %v1273, %v1279
      %v1283 = vadd.f32 %v1280, 1.4214138
      %v1284 = vadd.f32 %v1281, 1.4214138
      %v1285 = vadd.f32 %v1282, 1.4214138
      %v1286 = vmul.f32 %v1243, %v1283
      %v1287 = vmul.f32 %v1258, %v1284
      %v1288 = vmul.f32 %v1273, %v1285
      %v1289 = vadd.f32 %v1286, -0.28449672
      %v1290 = vadd.f32 %v1287, -0.28449672
      %v1291 = vadd.f32 %v1288, -0.28449672
      %v1292 = vmul.f32 %v1243, %v1289
      %v1293 = vmul.f32 %v1258, %v1290
      %v1294 = vmul.f32 %v1273, %v1291
      %v1295 = vadd.f32 %v1292, 0.2548296
      %v1296 = vadd.f32 %v1293, 0.2548296
      %v1297 = vadd.f32 %v1294, 0.2548296
      %v1298 = vmul.f32 %v1243, %v1295
      %v1299 = vmul.f32 %v1258, %v1296
      %v1300 = vmul.f32 %v1273, %v1297
      %v1301 = vmul.f32 %v1220, %v1220
      %v1302 = vmul.f32 %v1221, %v1221
      %v1303 = vmul.f32 %v1222, %v1222
      %v1304 = vsub.f32 0.0, %v1301
      %v1305 = vsub.f32 0.0, %v1302
      %v1306 = vsub.f32 0.0, %v1303
      %v1307 = vmul.f32 %v1304, 1.442695
      %v1308 = vpow.pop %v1307
      %v1309 = vmul.f32 %v1305, 1.442695
      %v1310 = vpow.pop %v1309
      %v1311 = vmul.f32 %v1306, 1.442695
      %v1312 = vpow.pop %v1311
      %v1313 = vmul.f32 %v1298, %v1308
      %v1314 = vmul.f32 %v1299, %v1310
      %v1315 = vmul.f32 %v1300, %v1312
      %v1316 = vsub.f32 1.0, %v1313
      %v1317 = vsub.f32 1.0, %v1314
      %v1318 = vsub.f32 1.0, %v1315
      %vm1319 = vcmp.ge.f32.partialorder %v1217, 0.0
      %vm1320 = vcmp.ge.f32.partialorder %v1218, 0.0
      %vm1321 = vcmp.ge.f32.partialorder %v1219, 0.0
      %v1322 = vsub.f32 0.0, %v1316
      %v1323 = vsub.f32 0.0, %v1317
      %v1324 = vsub.f32 0.0, %v1318
      %v1325 = vsel %vm1319, %v1316, %v1322
      %v1326 = vsel %vm1320, %v1317, %v1323
      %v1327 = vsel %vm1321, %v1318, %v1324
      %v1328 = vmul.f32 %v1209, 0.5
      %v1329 = vmul.f32 %v1211, 0.5
      %v1330 = vmul.f32 %v1214, 0.5
      %v1331 = vadd.f32 %v1325, 1.0
      %v1332 = vadd.f32 %v1326, 1.0
      %v1333 = vadd.f32 %v1327, 1.0
      %v1334 = vmul.f32 %v1328, %v1331
      %v1335 = vmul.f32 %v1329, %v1332
      %v1336 = vmul.f32 %v1330, %v1333
      %v1337 = vpack.c.bf16 %v1335, %v1334
      %v1338 = vpack.c.bf16 %v1336, %v1336
      %v1339 = vld [vmem:[%s8] sm:$0xf]
      %v1340 = vld [vmem:[%s8 + $0x4] sm:$0xf]
      %v1341 = vld [vmem:[%s8 + $0x8] sm:$0xf]
      %v1342 = vld [vmem:[%s8 + $0xc] sm:$0xf]
      %v1343 = vld [vmem:[%s8 + $0x10] sm:$0xf]
      %v1344 = vld [vmem:[%s8 + $0x14] sm:$0xf]
      %v1345 = vld [vmem:[%s8 + $0x18] sm:$0xf]
      %v1346 = vld [vmem:[%s8 + $0x1c] sm:$0xf]
      %v1347 = vld [vmem:[%s9 + $0x5] sm:$0x1]
      %v1348 = vperm.slane %v1347, 0
      %v1357 = vunpack.c.l.b16 %v1339
      %v1358 = vunpack.c.l.b16 %v1340
      %v1359 = vunpack.c.l.b16 %v1341
      %v1360 = vunpack.c.l.b16 %v1342
      %v1361 = vunpack.c.l.b16 %v1343
      %v1362 = vunpack.c.l.b16 %v1344
      %v1363 = vunpack.c.l.b16 %v1345
      %v1364 = vunpack.c.l.b16 %v1346
      %v1365 = vpack.c.b16 %v1358, %v1357
      %v1366 = vpack.c.b16 %v1360, %v1359
      %v1367 = vpack.c.b16 %v1362, %v1361
      %v1368 = vpack.c.b16 %v1364, %v1363
      %vm1373 = vcmask 523264
      %v1375 = vsel %vm1373, %v1337, 0
      %v1378 = vsel %vm1373, %v1338, 0
      %1380 = vmatpush.bf16.msra.mxu0 0
      %1381 = vmatpush.bf16.msra.mxu0 0
      %1382 = vmatpush.bf16.msra.mxu0 0
      %1383 = vmatpush.bf16.msra.mxu0 0
      %1384 = vmatpush.bf16.msra.mxu0 %v1368
      %1385 = vmatpush.bf16.msra.mxu0 %v1367
      %1386 = vmatpush.bf16.msra.mxu0 %v1366
      %1387 = vmatpush.bf16.msra.mxu0 %v1365
      %1388 = vmatmul.bf16.gmra.mxu0 %v1375
      %v1389 = vpop.f32.mrf.mxu0
      %v1390 = vadd.f32 %v1348, %v1389
      %v1391 = vpop.f32.mrf.mxu0
      %v1392 = vadd.f32 %v1348, %v1391
      %1393 = vmatmul.bf16.gmra.mxu0 %v1378
      %v1394 = vpop.f32.mrf.mxu0
      %v1395 = vadd.f32 %v1348, %v1394
      %v1396 = vpop.f32.mrf.mxu0
      %1397 = vdwg.mxu0
      %v1398 = vadd.f32 %v1094, %v1390
      %v1399 = vadd.f32 %v1095, %v1392
      %v1400 = vadd.f32 %v1096, %v1395
      %s1401 = scalar_lea.vmem %s9, 8
      %v1402 = vld [vmem:[%s1401] sm:$0x1]
      %v1403 = vld [vmem:[%s1401 + $0x1] sm:$0x1]
      %v1404 = vsel %vm447, %v1398, 0.0
      %1405 = vadd.xlane.f32.xlu0 %v1404
      %v1406 = vpop.xlane.xlu0 %1405
      %v1407 = vsel %vm447, %v1399, 0.0
      %1408 = vadd.xlane.f32.xlu0 %v1407
      %v1409 = vpop.xlane.xlu0 %1408
      %v1410 = vsel %vm454, %v1400, 0.0
      %1411 = vadd.xlane.f32.xlu0 %v1410
      %v1412 = vpop.xlane.xlu0 %1411
      %v1413 = vmul.f32 %v1406, %v464
      %v1414 = vmul.f32 %v1409, %v464
      %v1415 = vmul.f32 %v1412, %v464
      %v1416 = vsub.f32 %v1398, %v1413
      %v1417 = vsub.f32 %v1399, %v1414
      %v1418 = vsub.f32 %v1400, %v1415
      %v1419 = vmul.f32 %v1416, %v1416
      %v1420 = vmul.f32 %v1417, %v1417
      %v1421 = vmul.f32 %v1418, %v1418
      %v1422 = vsel %vm447, %v1419, 0.0
      %1423 = vadd.xlane.f32.xlu0 %v1422
      %v1424 = vpop.xlane.xlu0 %1423
      %v1425 = vsel %vm447, %v1420, 0.0
      %1426 = vadd.xlane.f32.xlu0 %v1425
      %v1427 = vpop.xlane.xlu0 %1426
      %v1428 = vsel %vm454, %v1421, 0.0
      %1429 = vadd.xlane.f32.xlu0 %v1428
      %v1430 = vpop.xlane.xlu0 %1429
      %v1431 = vmul.f32 %v1424, %v464
      %v1432 = vmul.f32 %v1427, %v464
      %v1433 = vmul.f32 %v1430, %v464
      %v1434 = vadd.f32 %v1431, 1e-12
      %v1435 = vadd.f32 %v1432, 1e-12
      %v1436 = vadd.f32 %v1433, 1e-12
      %v1437 = vrsqrt.pop %v1434
      %v1438 = vmul.f32 %v1437, %v1434
      %v1439 = vmul.f32 %v1438, %v1437
      %v1440 = vmul.f32 0.5, %v1439
      %v1441 = vsub.f32 1.5, %v1440
      %v1442 = vmul.f32 %v1437, %v1441
      %vm1443 = vweird.f32 %v1434
      %vm1444 = vweird.f32 %v1437
      %vm1445 = vmor %vm1443, %vm1444
      %v1446 = vsel %vm1445, %v1437, %v1442
      %v1447 = vrsqrt.pop %v1435
      %v1448 = vmul.f32 %v1447, %v1435
      %v1449 = vmul.f32 %v1448, %v1447
      %v1450 = vmul.f32 0.5, %v1449
      %v1451 = vsub.f32 1.5, %v1450
      %v1452 = vmul.f32 %v1447, %v1451
      %vm1453 = vweird.f32 %v1435
      %vm1454 = vweird.f32 %v1447
      %vm1455 = vmor %vm1453, %vm1454
      %v1456 = vsel %vm1455, %v1447, %v1452
      %v1457 = vrsqrt.pop %v1436
      %v1458 = vmul.f32 %v1457, %v1436
      %v1459 = vmul.f32 %v1458, %v1457
      %v1460 = vmul.f32 0.5, %v1459
      %v1461 = vsub.f32 1.5, %v1460
      %v1462 = vmul.f32 %v1457, %v1461
      %vm1463 = vweird.f32 %v1436
      %vm1464 = vweird.f32 %v1457
      %vm1465 = vmor %vm1463, %vm1464
      %v1466 = vsel %vm1465, %v1457, %v1462
      %v1467 = vmul.f32 %v1416, %v1446
      %v1468 = vmul.f32 %v1417, %v1456
      %v1469 = vmul.f32 %v1418, %v1466
      %v1470 = vperm.slane %v1402, 0
      %v1471 = vmul.f32 %v1467, %v1470
      %v1472 = vmul.f32 %v1468, %v1470
      %v1473 = vmul.f32 %v1469, %v1470
      %v1474 = vperm.slane %v1403, 0
      %v1475 = vadd.f32 %v1471, %v1474
      %v1476 = vadd.f32 %v1472, %v1474
      %v1477 = vadd.f32 %v1473, %v1474
      %v1478 = vpack.c.bf16 %v1476, %v1475
      %v1479 = vpack.c.bf16 %v1477, %v1477
      %s1480 = scalar_lea.vmem %s3, 16
      %v1481 = vld [vmem:[%s1480] sm:$0xf]
      %v1482 = vld [vmem:[%s1480 + $0x4] sm:$0xf]
      %v1483 = vld [vmem:[%s1480 + $0x8] sm:$0xf]
      %v1484 = vld [vmem:[%s1480 + $0xc] sm:$0xf]
      %v1485 = vld [vmem:[%s4 + $0x1] sm:$0x1]
      %v1486 = vperm.slane %v1485, 0
      %v1491 = vunpack.c.l.b16 %v1481
      %v1492 = vunpack.c.l.b16 %v1482
      %v1493 = vunpack.c.l.b16 %v1483
      %v1494 = vunpack.c.l.b16 %v1484
      %v1495 = vpack.c.b16 %v1492, %v1491
      %v1496 = vpack.c.b16 %v1494, %v1493
      %v1500 = vsel %vm447, %v1478, 0
      %v1503 = vsel %vm447, %v1479, 0
      %1505 = vmatpush.bf16.msra.mxu0 0
      %1506 = vmatpush.bf16.msra.mxu0 0
      %1507 = vmatpush.bf16.msra.mxu0 0
      %1508 = vmatpush.bf16.msra.mxu0 0
      %1509 = vmatpush.bf16.msra.mxu0 0
      %1510 = vmatpush.bf16.msra.mxu0 0
      %1511 = vmatpush.bf16.msra.mxu0 %v1496
      %1512 = vmatpush.bf16.msra.mxu0 %v1495
      %1513 = vmatmul.bf16.gmra.mxu0 %v1500
      %v1514 = vpop.f32.mrf.mxu0
      %v1515 = vadd.f32 %v1486, %v1514
      %v1516 = vpop.f32.mrf.mxu0
      %v1517 = vadd.f32 %v1486, %v1516
      %1518 = vmatmul.bf16.gmra.mxu0 %v1503
      %v1519 = vpop.f32.mrf.mxu0
      %v1520 = vadd.f32 %v1486, %v1519
      %v1521 = vpop.f32.mrf.mxu0
      %1522 = vdwg.mxu0
      %v1523 = vpack.c.bf16 %v1517, %v1515
      %v1524 = vpack.c.bf16 %v1520, %v1520
      %1527 = vrot.lane.b32.xlu0 %v1523, 96
      %v1528 = vpop.permute.xlu0 %1527
      %1529 = vrot.lane.b32.xlu0 %v1524, 96
      %v1530 = vpop.permute.xlu0 %1529
      %v1532 = vsel %vm582, %v1523, 0
      %v1535 = vsel %vm582, %v1524, 0
      %v1538 = vsel %vm582, %v1528, 0
      %v1541 = vsel %vm582, %v1530, 0
      %1543 = vmatpush.bf16.xpose.msra.mxu0 0
      %1544 = vmatpush.bf16.xpose.msra.mxu0 0
      %1545 = vmatpush.bf16.xpose.msra.mxu0 0
      %1546 = vmatpush.bf16.xpose.msra.mxu0 0
      %1547 = vmatpush.bf16.xpose.msra.mxu0 0
      %1548 = vmatpush.bf16.xpose.msra.mxu0 0
      %1549 = vmatpush.bf16.xpose.msra.mxu0 %v1541
      %1550 = vmatpush.bf16.xpose.msra.mxu0 %v1538
      %1551 = vmatmul.bf16.gmra.mxu0 %v1532
      %v1552 = vpop.f32.mrf.mxu0
      %v1553 = vadd.f32 0.0, %v1552
      %v1554 = vpop.f32.mrf.mxu0
      %v1555 = vadd.f32 0.0, %v1554
      %1556 = vmatmul.bf16.gmra.mxu0 %v1535
      %v1557 = vpop.f32.mrf.mxu0
      %v1558 = vadd.f32 0.0, %v1557
      %v1559 = vpop.f32.mrf.mxu0
      %1560 = vdwg.mxu0
      %v1561 = vsel %vm613, %v1553, -inf
      %1562 = vmax.xlane.f32.xlu0 %v1561
      %v1563 = vpop.xlane.xlu0 %1562
      %v1564 = vsel %vm613, %v1555, -inf
      %1565 = vmax.xlane.f32.xlu0 %v1564
      %v1566 = vpop.xlane.xlu0 %1565
      %v1567 = vsel %vm620, %v1558, -inf
      %1568 = vmax.xlane.f32.xlu0 %v1567
      %v1569 = vpop.xlane.xlu0 %1568
      %v1570 = vsub.f32 %v1553, %v1563
      %v1571 = vsub.f32 %v1555, %v1566
      %v1572 = vsub.f32 %v1558, %v1569
      %v1573 = vmul.f32 %v1570, 1.442695
      %v1574 = vpow.pop %v1573
      %v1575 = vmul.f32 %v1571, 1.442695
      %v1576 = vpow.pop %v1575
      %v1577 = vmul.f32 %v1572, 1.442695
      %v1578 = vpow.pop %v1577
      %v1579 = vsel %vm613, %v1574, 0.0
      %1580 = vadd.xlane.f32.xlu0 %v1579
      %v1581 = vpop.xlane.xlu0 %1580
      %v1582 = vsel %vm613, %v1576, 0.0
      %1583 = vadd.xlane.f32.xlu0 %v1582
      %v1584 = vpop.xlane.xlu0 %1583
      %v1585 = vsel %vm620, %v1578, 0.0
      %1586 = vadd.xlane.f32.xlu0 %v1585
      %v1587 = vpop.xlane.xlu0 %1586
      %v1588 = vrcp.pop %v1581
      %v1589 = vrcp.pop %v1584
      %v1590 = vrcp.pop %v1587
      %v1591 = vmul.f32 %v1574, %v1588
      %v1592 = vmul.f32 %v1576, %v1589
      %v1593 = vmul.f32 %v1578, %v1590
      %v1594 = vpack.c.bf16 %v1592, %v1591
      %v1595 = vpack.c.bf16 %v1593, %v1593
      %1596 = vrot.lane.b32.xlu0 %v1523, 64
      %v1597 = vpop.permute.xlu0 %1596
      %1598 = vrot.lane.b32.xlu0 %v1524, 64
      %v1599 = vpop.permute.xlu0 %1598
      %v1602 = vsel %vm613, %v1594, 0
      %v1605 = vsel %vm613, %v1595, 0
      %v1608 = vand.u32 %v1599, %v663
      %1610 = vmatpush.bf16.msra.mxu0 0
      %1611 = vmatpush.bf16.msra.mxu0 0
      %1612 = vmatpush.bf16.msra.mxu0 0
      %1613 = vmatpush.bf16.msra.mxu0 0
      %1614 = vmatpush.bf16.msra.mxu0 0
      %1615 = vmatpush.bf16.msra.mxu0 0
      %1616 = vmatpush.bf16.msra.mxu0 %v1608
      %1617 = vmatpush.bf16.msra.mxu0 %v1597
      %1618 = vmatmul.bf16.gmra.mxu0 %v1602
      %v1619 = vpop.f32.mrf.mxu0
      %v1620 = vadd.f32 0.0, %v1619
      %v1621 = vpop.f32.mrf.mxu0
      %v1622 = vadd.f32 0.0, %v1621
      %1623 = vmatmul.bf16.gmra.mxu0 %v1605
      %v1624 = vpop.f32.mrf.mxu0
      %v1625 = vadd.f32 0.0, %v1624
      %v1626 = vpop.f32.mrf.mxu0
      %1627 = vdwg.mxu0
      %1628 = vrot.lane.b32.xlu0 %v1523, 120
      %v1629 = vpop.permute.xlu0 %1628
      %1630 = vrot.lane.b32.xlu0 %v1524, 120
      %v1631 = vpop.permute.xlu0 %1630
      %1632 = vrot.lane.b32.xlu0 %v1523, 88
      %v1633 = vpop.permute.xlu0 %1632
      %1634 = vrot.lane.b32.xlu0 %v1524, 88
      %v1635 = vpop.permute.xlu0 %1634
      %v1637 = vsel %vm582, %v1629, 0
      %v1640 = vsel %vm582, %v1631, 0
      %v1643 = vsel %vm582, %v1633, 0
      %v1646 = vsel %vm582, %v1635, 0
      %1648 = vmatpush.bf16.xpose.msra.mxu0 0
      %1649 = vmatpush.bf16.xpose.msra.mxu0 0
      %1650 = vmatpush.bf16.xpose.msra.mxu0 0
      %1651 = vmatpush.bf16.xpose.msra.mxu0 0
      %1652 = vmatpush.bf16.xpose.msra.mxu0 0
      %1653 = vmatpush.bf16.xpose.msra.mxu0 0
      %1654 = vmatpush.bf16.xpose.msra.mxu0 %v1646
      %1655 = vmatpush.bf16.xpose.msra.mxu0 %v1643
      %1656 = vmatmul.bf16.gmra.mxu0 %v1637
      %v1657 = vpop.f32.mrf.mxu0
      %v1658 = vadd.f32 0.0, %v1657
      %v1659 = vpop.f32.mrf.mxu0
      %v1660 = vadd.f32 0.0, %v1659
      %1661 = vmatmul.bf16.gmra.mxu0 %v1640
      %v1662 = vpop.f32.mrf.mxu0
      %v1663 = vadd.f32 0.0, %v1662
      %v1664 = vpop.f32.mrf.mxu0
      %1665 = vdwg.mxu0
      %v1666 = vsel %vm613, %v1658, -inf
      %1667 = vmax.xlane.f32.xlu0 %v1666
      %v1668 = vpop.xlane.xlu0 %1667
      %v1669 = vsel %vm613, %v1660, -inf
      %1670 = vmax.xlane.f32.xlu0 %v1669
      %v1671 = vpop.xlane.xlu0 %1670
      %v1672 = vsel %vm620, %v1663, -inf
      %1673 = vmax.xlane.f32.xlu0 %v1672
      %v1674 = vpop.xlane.xlu0 %1673
      %v1675 = vsub.f32 %v1658, %v1668
      %v1676 = vsub.f32 %v1660, %v1671
      %v1677 = vsub.f32 %v1663, %v1674
      %v1678 = vmul.f32 %v1675, 1.442695
      %v1679 = vpow.pop %v1678
      %v1680 = vmul.f32 %v1676, 1.442695
      %v1681 = vpow.pop %v1680
      %v1682 = vmul.f32 %v1677, 1.442695
      %v1683 = vpow.pop %v1682
      %v1684 = vsel %vm613, %v1679, 0.0
      %1685 = vadd.xlane.f32.xlu0 %v1684
      %v1686 = vpop.xlane.xlu0 %1685
      %v1687 = vsel %vm613, %v1681, 0.0
      %1688 = vadd.xlane.f32.xlu0 %v1687
      %v1689 = vpop.xlane.xlu0 %1688
      %v1690 = vsel %vm620, %v1683, 0.0
      %1691 = vadd.xlane.f32.xlu0 %v1690
      %v1692 = vpop.xlane.xlu0 %1691
      %v1693 = vrcp.pop %v1686
      %v1694 = vrcp.pop %v1689
      %v1695 = vrcp.pop %v1692
      %v1696 = vmul.f32 %v1679, %v1693
      %v1697 = vmul.f32 %v1681, %v1694
      %v1698 = vmul.f32 %v1683, %v1695
      %v1699 = vpack.c.bf16 %v1697, %v1696
      %v1700 = vpack.c.bf16 %v1698, %v1698
      %1701 = vrot.lane.b32.xlu0 %v1523, 56
      %v1702 = vpop.permute.xlu0 %1701
      %1703 = vrot.lane.b32.xlu0 %v1524, 56
      %v1704 = vpop.permute.xlu0 %1703
      %v1707 = vsel %vm613, %v1699, 0
      %v1710 = vsel %vm613, %v1700, 0
      %v1713 = vand.u32 %v1704, %v663
      %1715 = vmatpush.bf16.msra.mxu0 0
      %1716 = vmatpush.bf16.msra.mxu0 0
      %1717 = vmatpush.bf16.msra.mxu0 0
      %1718 = vmatpush.bf16.msra.mxu0 0
      %1719 = vmatpush.bf16.msra.mxu0 0
      %1720 = vmatpush.bf16.msra.mxu0 0
      %1721 = vmatpush.bf16.msra.mxu0 %v1713
      %1722 = vmatpush.bf16.msra.mxu0 %v1702
      %1723 = vmatmul.bf16.gmra.mxu0 %v1707
      %v1724 = vpop.f32.mrf.mxu0
      %v1725 = vadd.f32 0.0, %v1724
      %v1726 = vpop.f32.mrf.mxu0
      %v1727 = vadd.f32 0.0, %v1726
      %1728 = vmatmul.bf16.gmra.mxu0 %v1710
      %v1729 = vpop.f32.mrf.mxu0
      %v1730 = vadd.f32 0.0, %v1729
      %v1731 = vpop.f32.mrf.mxu0
      %1732 = vdwg.mxu0
      %1733 = vrot.lane.b32.xlu0 %v1523, 112
      %v1734 = vpop.permute.xlu0 %1733
      %1735 = vrot.lane.b32.xlu0 %v1524, 112
      %v1736 = vpop.permute.xlu0 %1735
      %1737 = vrot.lane.b32.xlu0 %v1523, 80
      %v1738 = vpop.permute.xlu0 %1737
      %1739 = vrot.lane.b32.xlu0 %v1524, 80
      %v1740 = vpop.permute.xlu0 %1739
      %v1742 = vsel %vm582, %v1734, 0
      %v1745 = vsel %vm582, %v1736, 0
      %v1748 = vsel %vm582, %v1738, 0
      %v1751 = vsel %vm582, %v1740, 0
      %1753 = vmatpush.bf16.xpose.msra.mxu0 0
      %1754 = vmatpush.bf16.xpose.msra.mxu0 0
      %1755 = vmatpush.bf16.xpose.msra.mxu0 0
      %1756 = vmatpush.bf16.xpose.msra.mxu0 0
      %1757 = vmatpush.bf16.xpose.msra.mxu0 0
      %1758 = vmatpush.bf16.xpose.msra.mxu0 0
      %1759 = vmatpush.bf16.xpose.msra.mxu0 %v1751
      %1760 = vmatpush.bf16.xpose.msra.mxu0 %v1748
      %1761 = vmatmul.bf16.gmra.mxu0 %v1742
      %v1762 = vpop.f32.mrf.mxu0
      %v1763 = vadd.f32 0.0, %v1762
      %v1764 = vpop.f32.mrf.mxu0
      %v1765 = vadd.f32 0.0, %v1764
      %1766 = vmatmul.bf16.gmra.mxu0 %v1745
      %v1767 = vpop.f32.mrf.mxu0
      %v1768 = vadd.f32 0.0, %v1767
      %v1769 = vpop.f32.mrf.mxu0
      %1770 = vdwg.mxu0
      %v1771 = vsel %vm613, %v1763, -inf
      %1772 = vmax.xlane.f32.xlu0 %v1771
      %v1773 = vpop.xlane.xlu0 %1772
      %v1774 = vsel %vm613, %v1765, -inf
      %1775 = vmax.xlane.f32.xlu0 %v1774
      %v1776 = vpop.xlane.xlu0 %1775
      %v1777 = vsel %vm620, %v1768, -inf
      %1778 = vmax.xlane.f32.xlu0 %v1777
      %v1779 = vpop.xlane.xlu0 %1778
      %v1780 = vsub.f32 %v1763, %v1773
      %v1781 = vsub.f32 %v1765, %v1776
      %v1782 = vsub.f32 %v1768, %v1779
      %v1783 = vmul.f32 %v1780, 1.442695
      %v1784 = vpow.pop %v1783
      %v1785 = vmul.f32 %v1781, 1.442695
      %v1786 = vpow.pop %v1785
      %v1787 = vmul.f32 %v1782, 1.442695
      %v1788 = vpow.pop %v1787
      %v1789 = vsel %vm613, %v1784, 0.0
      %1790 = vadd.xlane.f32.xlu0 %v1789
      %v1791 = vpop.xlane.xlu0 %1790
      %v1792 = vsel %vm613, %v1786, 0.0
      %1793 = vadd.xlane.f32.xlu0 %v1792
      %v1794 = vpop.xlane.xlu0 %1793
      %v1795 = vsel %vm620, %v1788, 0.0
      %1796 = vadd.xlane.f32.xlu0 %v1795
      %v1797 = vpop.xlane.xlu0 %1796
      %v1798 = vrcp.pop %v1791
      %v1799 = vrcp.pop %v1794
      %v1800 = vrcp.pop %v1797
      %v1801 = vmul.f32 %v1784, %v1798
      %v1802 = vmul.f32 %v1786, %v1799
      %v1803 = vmul.f32 %v1788, %v1800
      %v1804 = vpack.c.bf16 %v1802, %v1801
      %v1805 = vpack.c.bf16 %v1803, %v1803
      %1806 = vrot.lane.b32.xlu0 %v1523, 48
      %v1807 = vpop.permute.xlu0 %1806
      %1808 = vrot.lane.b32.xlu0 %v1524, 48
      %v1809 = vpop.permute.xlu0 %1808
      %v1812 = vsel %vm613, %v1804, 0
      %v1815 = vsel %vm613, %v1805, 0
      %v1818 = vand.u32 %v1809, %v663
      %1820 = vmatpush.bf16.msra.mxu0 0
      %1821 = vmatpush.bf16.msra.mxu0 0
      %1822 = vmatpush.bf16.msra.mxu0 0
      %1823 = vmatpush.bf16.msra.mxu0 0
      %1824 = vmatpush.bf16.msra.mxu0 0
      %1825 = vmatpush.bf16.msra.mxu0 0
      %1826 = vmatpush.bf16.msra.mxu0 %v1818
      %1827 = vmatpush.bf16.msra.mxu0 %v1807
      %1828 = vmatmul.bf16.gmra.mxu0 %v1812
      %v1829 = vpop.f32.mrf.mxu0
      %v1830 = vadd.f32 0.0, %v1829
      %v1831 = vpop.f32.mrf.mxu0
      %v1832 = vadd.f32 0.0, %v1831
      %1833 = vmatmul.bf16.gmra.mxu0 %v1815
      %v1834 = vpop.f32.mrf.mxu0
      %v1835 = vadd.f32 0.0, %v1834
      %v1836 = vpop.f32.mrf.mxu0
      %1837 = vdwg.mxu0
      %1838 = vrot.lane.b32.xlu0 %v1523, 104
      %v1839 = vpop.permute.xlu0 %1838
      %1840 = vrot.lane.b32.xlu0 %v1524, 104
      %v1841 = vpop.permute.xlu0 %1840
      %1842 = vrot.lane.b32.xlu0 %v1523, 72
      %v1843 = vpop.permute.xlu0 %1842
      %1844 = vrot.lane.b32.xlu0 %v1524, 72
      %v1845 = vpop.permute.xlu0 %1844
      %v1847 = vsel %vm582, %v1839, 0
      %v1850 = vsel %vm582, %v1841, 0
      %v1853 = vsel %vm582, %v1843, 0
      %v1856 = vsel %vm582, %v1845, 0
      %1858 = vmatpush.bf16.xpose.msra.mxu0 0
      %1859 = vmatpush.bf16.xpose.msra.mxu0 0
      %1860 = vmatpush.bf16.xpose.msra.mxu0 0
      %1861 = vmatpush.bf16.xpose.msra.mxu0 0
      %1862 = vmatpush.bf16.xpose.msra.mxu0 0
      %1863 = vmatpush.bf16.xpose.msra.mxu0 0
      %1864 = vmatpush.bf16.xpose.msra.mxu0 %v1856
      %1865 = vmatpush.bf16.xpose.msra.mxu0 %v1853
      %1866 = vmatmul.bf16.gmra.mxu0 %v1847
      %v1867 = vpop.f32.mrf.mxu0
      %v1868 = vadd.f32 0.0, %v1867
      %v1869 = vpop.f32.mrf.mxu0
      %v1870 = vadd.f32 0.0, %v1869
      %1871 = vmatmul.bf16.gmra.mxu0 %v1850
      %v1872 = vpop.f32.mrf.mxu0
      %v1873 = vadd.f32 0.0, %v1872
      %v1874 = vpop.f32.mrf.mxu0
      %1875 = vdwg.mxu0
      %v1876 = vsel %vm613, %v1868, -inf
      %1877 = vmax.xlane.f32.xlu0 %v1876
      %v1878 = vpop.xlane.xlu0 %1877
      %v1879 = vsel %vm613, %v1870, -inf
      %1880 = vmax.xlane.f32.xlu0 %v1879
      %v1881 = vpop.xlane.xlu0 %1880
      %v1882 = vsel %vm620, %v1873, -inf
      %1883 = vmax.xlane.f32.xlu0 %v1882
      %v1884 = vpop.xlane.xlu0 %1883
      %v1885 = vsub.f32 %v1868, %v1878
      %v1886 = vsub.f32 %v1870, %v1881
      %v1887 = vsub.f32 %v1873, %v1884
      %v1888 = vmul.f32 %v1885, 1.442695
      %v1889 = vpow.pop %v1888
      %v1890 = vmul.f32 %v1886, 1.442695
      %v1891 = vpow.pop %v1890
      %v1892 = vmul.f32 %v1887, 1.442695
      %v1893 = vpow.pop %v1892
      %v1894 = vsel %vm613, %v1889, 0.0
      %1895 = vadd.xlane.f32.xlu0 %v1894
      %v1896 = vpop.xlane.xlu0 %1895
      %v1897 = vsel %vm613, %v1891, 0.0
      %1898 = vadd.xlane.f32.xlu0 %v1897
      %v1899 = vpop.xlane.xlu0 %1898
      %v1900 = vsel %vm620, %v1893, 0.0
      %1901 = vadd.xlane.f32.xlu0 %v1900
      %v1902 = vpop.xlane.xlu0 %1901
      %v1903 = vrcp.pop %v1896
      %v1904 = vrcp.pop %v1899
      %v1905 = vrcp.pop %v1902
      %v1906 = vmul.f32 %v1889, %v1903
      %v1907 = vmul.f32 %v1891, %v1904
      %v1908 = vmul.f32 %v1893, %v1905
      %v1909 = vpack.c.bf16 %v1907, %v1906
      %v1910 = vpack.c.bf16 %v1908, %v1908
      %1911 = vrot.lane.b32.xlu0 %v1523, 40
      %v1912 = vpop.permute.xlu0 %1911
      %1913 = vrot.lane.b32.xlu0 %v1524, 40
      %v1914 = vpop.permute.xlu0 %1913
      %v1917 = vsel %vm613, %v1909, 0
      %v1920 = vsel %vm613, %v1910, 0
      %v1923 = vand.u32 %v1914, %v663
      %1925 = vmatpush.bf16.msra.mxu0 0
      %1926 = vmatpush.bf16.msra.mxu0 0
      %1927 = vmatpush.bf16.msra.mxu0 0
      %1928 = vmatpush.bf16.msra.mxu0 0
      %1929 = vmatpush.bf16.msra.mxu0 0
      %1930 = vmatpush.bf16.msra.mxu0 0
      %1931 = vmatpush.bf16.msra.mxu0 %v1923
      %1932 = vmatpush.bf16.msra.mxu0 %v1912
      %1933 = vmatmul.bf16.gmra.mxu0 %v1917
      %v1934 = vpop.f32.mrf.mxu0
      %v1935 = vadd.f32 0.0, %v1934
      %v1936 = vpop.f32.mrf.mxu0
      %v1937 = vadd.f32 0.0, %v1936
      %1938 = vmatmul.bf16.gmra.mxu0 %v1920
      %v1939 = vpop.f32.mrf.mxu0
      %v1940 = vadd.f32 0.0, %v1939
      %v1941 = vpop.f32.mrf.mxu0
      %1942 = vdwg.mxu0
      %1946 = vrot.lane.b32.xlu0 %v1725, 8
      %v1947 = vpop.permute.xlu0 %1946
      %1948 = vrot.lane.b32.xlu0 %v1727, 8
      %v1949 = vpop.permute.xlu0 %1948
      %1950 = vrot.lane.b32.xlu0 %v1730, 8
      %v1951 = vpop.permute.xlu0 %1950
      %1958 = vrot.lane.b32.xlu0 %v1830, 16
      %v1959 = vpop.permute.xlu0 %1958
      %1960 = vrot.lane.b32.xlu0 %v1832, 16
      %v1961 = vpop.permute.xlu0 %1960
      %1962 = vrot.lane.b32.xlu0 %v1835, 16
      %v1963 = vpop.permute.xlu0 %1962
      %1970 = vrot.lane.b32.xlu0 %v1935, 24
      %v1971 = vpop.permute.xlu0 %1970
      %1972 = vrot.lane.b32.xlu0 %v1937, 24
      %v1973 = vpop.permute.xlu0 %1972
      %1974 = vrot.lane.b32.xlu0 %v1940, 24
      %v1975 = vpop.permute.xlu0 %1974
      %v1979 = vsel %vm582, %v1620, %v1947
      %v1980 = vsel %vm582, %v1622, %v1949
      %v1981 = vsel %vm582, %v1625, %v1951
      %v1982 = vsel %vm1039, %v1979, %v1959
      %v1983 = vsel %vm1039, %v1980, %v1961
      %v1984 = vsel %vm1039, %v1981, %v1963
      %v1985 = vsel %vm1043, %v1982, %v1971
      %v1986 = vsel %vm1043, %v1983, %v1973
      %v1987 = vsel %vm1043, %v1984, %v1975
      %v1988 = vpack.c.bf16 %v1986, %v1985
      %v1989 = vpack.c.bf16 %v1987, %v1987
      %s1990 = scalar_lea.vmem %s5, 16
      %v1991 = vld [vmem:[%s1990] sm:$0xf]
      %v1992 = vld [vmem:[%s1990 + $0x4] sm:$0xf]
      %v1993 = vld [vmem:[%s1990 + $0x8] sm:$0xf]
      %v1994 = vld [vmem:[%s1990 + $0xc] sm:$0xf]
      %v1999 = vunpack.c.l.b16 %v1991
      %v2000 = vunpack.c.l.b16 %v1992
      %v2001 = vunpack.c.l.b16 %v1993
      %v2002 = vunpack.c.l.b16 %v1994
      %v2003 = vpack.c.b16 %v2000, %v1999
      %v2004 = vpack.c.b16 %v2002, %v2001
      %v2008 = vsel %vm447, %v1988, 0
      %v2011 = vsel %vm447, %v1989, 0
      %2013 = vmatpush.bf16.msra.mxu0 0
      %2014 = vmatpush.bf16.msra.mxu0 0
      %2015 = vmatpush.bf16.msra.mxu0 0
      %2016 = vmatpush.bf16.msra.mxu0 0
      %2017 = vmatpush.bf16.msra.mxu0 0
      %2018 = vmatpush.bf16.msra.mxu0 0
      %2019 = vmatpush.bf16.msra.mxu0 %v2004
      %2020 = vmatpush.bf16.msra.mxu0 %v2003
      %2021 = vmatmul.bf16.gmra.mxu0 %v2008
      %v2022 = vpop.f32.mrf.mxu0
      %v2023 = vadd.f32 0.0, %v2022
      %v2024 = vpop.f32.mrf.mxu0
      %v2025 = vadd.f32 0.0, %v2024
      %2026 = vmatmul.bf16.gmra.mxu0 %v2011
      %v2027 = vpop.f32.mrf.mxu0
      %v2028 = vadd.f32 0.0, %v2027
      %v2029 = vpop.f32.mrf.mxu0
      %2030 = vdwg.mxu0
      %v2031 = vadd.f32 %v1398, %v2023
      %v2032 = vadd.f32 %v1399, %v2025
      %v2033 = vadd.f32 %v1400, %v2028
      %v2034 = vld [vmem:[%s1401 + $0x4] sm:$0x1]
      %v2035 = vperm.slane %v2034, 0
      %v2036 = vadd.f32 %v2031, %v2035
      %v2037 = vadd.f32 %v2032, %v2035
      %v2038 = vadd.f32 %v2033, %v2035
      %v2039 = vld [vmem:[%s1401 + $0x2] sm:$0x1]
      %v2040 = vld [vmem:[%s1401 + $0x3] sm:$0x1]
      %v2041 = vsel %vm447, %v2036, 0.0
      %2042 = vadd.xlane.f32.xlu0 %v2041
      %v2043 = vpop.xlane.xlu0 %2042
      %v2044 = vsel %vm447, %v2037, 0.0
      %2045 = vadd.xlane.f32.xlu0 %v2044
      %v2046 = vpop.xlane.xlu0 %2045
      %v2047 = vsel %vm454, %v2038, 0.0
      %2048 = vadd.xlane.f32.xlu0 %v2047
      %v2049 = vpop.xlane.xlu0 %2048
      %v2050 = vmul.f32 %v2043, %v464
      %v2051 = vmul.f32 %v2046, %v464
      %v2052 = vmul.f32 %v2049, %v464
      %v2053 = vsub.f32 %v2036, %v2050
      %v2054 = vsub.f32 %v2037, %v2051
      %v2055 = vsub.f32 %v2038, %v2052
      %v2056 = vmul.f32 %v2053, %v2053
      %v2057 = vmul.f32 %v2054, %v2054
      %v2058 = vmul.f32 %v2055, %v2055
      %v2059 = vsel %vm447, %v2056, 0.0
      %2060 = vadd.xlane.f32.xlu0 %v2059
      %v2061 = vpop.xlane.xlu0 %2060
      %v2062 = vsel %vm447, %v2057, 0.0
      %2063 = vadd.xlane.f32.xlu0 %v2062
      %v2064 = vpop.xlane.xlu0 %2063
      %v2065 = vsel %vm454, %v2058, 0.0
      %2066 = vadd.xlane.f32.xlu0 %v2065
      %v2067 = vpop.xlane.xlu0 %2066
      %v2068 = vmul.f32 %v2061, %v464
      %v2069 = vmul.f32 %v2064, %v464
      %v2070 = vmul.f32 %v2067, %v464
      %v2071 = vadd.f32 %v2068, 1e-12
      %v2072 = vadd.f32 %v2069, 1e-12
      %v2073 = vadd.f32 %v2070, 1e-12
      %v2074 = vrsqrt.pop %v2071
      %v2075 = vmul.f32 %v2074, %v2071
      %v2076 = vmul.f32 %v2075, %v2074
      %v2077 = vmul.f32 0.5, %v2076
      %v2078 = vsub.f32 1.5, %v2077
      %v2079 = vmul.f32 %v2074, %v2078
      %vm2080 = vweird.f32 %v2071
      %vm2081 = vweird.f32 %v2074
      %vm2082 = vmor %vm2080, %vm2081
      %v2083 = vsel %vm2082, %v2074, %v2079
      %v2084 = vrsqrt.pop %v2072
      %v2085 = vmul.f32 %v2084, %v2072
      %v2086 = vmul.f32 %v2085, %v2084
      %v2087 = vmul.f32 0.5, %v2086
      %v2088 = vsub.f32 1.5, %v2087
      %v2089 = vmul.f32 %v2084, %v2088
      %vm2090 = vweird.f32 %v2072
      %vm2091 = vweird.f32 %v2084
      %vm2092 = vmor %vm2090, %vm2091
      %v2093 = vsel %vm2092, %v2084, %v2089
      %v2094 = vrsqrt.pop %v2073
      %v2095 = vmul.f32 %v2094, %v2073
      %v2096 = vmul.f32 %v2095, %v2094
      %v2097 = vmul.f32 0.5, %v2096
      %v2098 = vsub.f32 1.5, %v2097
      %v2099 = vmul.f32 %v2094, %v2098
      %vm2100 = vweird.f32 %v2073
      %vm2101 = vweird.f32 %v2094
      %vm2102 = vmor %vm2100, %vm2101
      %v2103 = vsel %vm2102, %v2094, %v2099
      %v2104 = vmul.f32 %v2053, %v2083
      %v2105 = vmul.f32 %v2054, %v2093
      %v2106 = vmul.f32 %v2055, %v2103
      %v2107 = vperm.slane %v2039, 0
      %v2108 = vmul.f32 %v2104, %v2107
      %v2109 = vmul.f32 %v2105, %v2107
      %v2110 = vmul.f32 %v2106, %v2107
      %v2111 = vperm.slane %v2040, 0
      %v2112 = vadd.f32 %v2108, %v2111
      %v2113 = vadd.f32 %v2109, %v2111
      %v2114 = vadd.f32 %v2110, %v2111
      %v2115 = vpack.c.bf16 %v2113, %v2112
      %v2116 = vpack.c.bf16 %v2114, %v2114
      %s2117 = scalar_lea.vmem %s6, 16
      %v2118 = vld [vmem:[%s2117] sm:$0xf]
      %v2119 = vld [vmem:[%s2117 + $0x4] sm:$0xf]
      %v2120 = vld [vmem:[%s2117 + $0x8] sm:$0xf]
      %v2121 = vld [vmem:[%s2117 + $0xc] sm:$0xf]
      %v2122 = vld [vmem:[%s7 + $0x1] sm:$0x1]
      %v2123 = vperm.slane %v2122, 0
      %v2128 = vunpack.c.l.b16 %v2118
      %v2129 = vunpack.c.l.b16 %v2119
      %v2130 = vunpack.c.l.b16 %v2120
      %v2131 = vunpack.c.l.b16 %v2121
      %v2132 = vpack.c.b16 %v2129, %v2128
      %v2133 = vpack.c.b16 %v2131, %v2130
      %v2137 = vsel %vm447, %v2115, 0
      %v2140 = vsel %vm447, %v2116, 0
      %2142 = vmatpush.bf16.msra.mxu0 0
      %2143 = vmatpush.bf16.msra.mxu0 0
      %2144 = vmatpush.bf16.msra.mxu0 0
      %2145 = vmatpush.bf16.msra.mxu0 0
      %2146 = vmatpush.bf16.msra.mxu0 0
      %2147 = vmatpush.bf16.msra.mxu0 0
      %2148 = vmatpush.bf16.msra.mxu0 %v2133
      %2149 = vmatpush.bf16.msra.mxu0 %v2132
      %2150 = vmatmul.bf16.gmra.mxu0 %v2137
      %v2151 = vpop.f32.mrf.mxu0
      %v2152 = vadd.f32 %v2123, %v2151
      %v2153 = vpop.f32.mrf.mxu0
      %v2154 = vadd.f32 %v2123, %v2153
      %2155 = vmatmul.bf16.gmra.mxu0 %v2140
      %v2156 = vpop.f32.mrf.mxu0
      %v2157 = vadd.f32 %v2123, %v2156
      %v2158 = vpop.f32.mrf.mxu0
      %2159 = vdwg.mxu0
      %v2160 = vmul.f32 %v2152, 0.70710677
      %v2161 = vmul.f32 %v2154, 0.70710677
      %v2162 = vmul.f32 %v2157, 0.70710677
      %v2163 = vand.u32 2147483647, %v2160
      %v2164 = vand.u32 2147483647, %v2161
      %v2165 = vand.u32 2147483647, %v2162
      %v2166 = vmul.f32 %v2163, 0.3275911
      %v2167 = vmul.f32 %v2164, 0.3275911
      %v2168 = vmul.f32 %v2165, 0.3275911
      %v2169 = vadd.f32 %v2166, 1.0
      %v2170 = vadd.f32 %v2167, 1.0
      %v2171 = vadd.f32 %v2168, 1.0
      %v2172 = vrcp.pop %v2169
      %v2173 = vmul.f32 %v2169, %v2172
      %v2174 = vsub.f32 1.0, %v2173
      %v2175 = vmul.f32 %v2172, %v2174
      %v2176 = vadd.f32 %v2172, %v2175
      %vm2177 = vweird.f32 %v2169
      %vm2178 = vweird.f32 %v2172
      %vm2179 = vmor %vm2177, %vm2178
      %v2180 = vsel %vm2179, %v2172, %v2176
      %v2181 = vand.u32 2147483647, %v2169
      %vm2182 = vcmp.eq.f32.partialorder %v2181, 8.507059e+37
      %v2183 = vand.u32 %v2169, 2147483648
      %v2184 = vor.u32 1.1754944e-38, %v2183
      %v2185 = vsel %vm2182, %v2184, %v2180
      %v2186 = vmul.f32 1.0, %v2185
      %v2187 = vrcp.pop %v2170
      %v2188 = vmul.f32 %v2170, %v2187
      %v2189 = vsub.f32 1.0, %v2188
      %v2190 = vmul.f32 %v2187, %v2189
      %v2191 = vadd.f32 %v2187, %v2190
      %vm2192 = vweird.f32 %v2170
      %vm2193 = vweird.f32 %v2187
      %vm2194 = vmor %vm2192, %vm2193
      %v2195 = vsel %vm2194, %v2187, %v2191
      %v2196 = vand.u32 2147483647, %v2170
      %vm2197 = vcmp.eq.f32.partialorder %v2196, 8.507059e+37
      %v2198 = vand.u32 %v2170, 2147483648
      %v2199 = vor.u32 1.1754944e-38, %v2198
      %v2200 = vsel %vm2197, %v2199, %v2195
      %v2201 = vmul.f32 1.0, %v2200
      %v2202 = vrcp.pop %v2171
      %v2203 = vmul.f32 %v2171, %v2202
      %v2204 = vsub.f32 1.0, %v2203
      %v2205 = vmul.f32 %v2202, %v2204
      %v2206 = vadd.f32 %v2202, %v2205
      %vm2207 = vweird.f32 %v2171
      %vm2208 = vweird.f32 %v2202
      %vm2209 = vmor %vm2207, %vm2208
      %v2210 = vsel %vm2209, %v2202, %v2206
      %v2211 = vand.u32 2147483647, %v2171
      %vm2212 = vcmp.eq.f32.partialorder %v2211, 8.507059e+37
      %v2213 = vand.u32 %v2171, 2147483648
      %v2214 = vor.u32 1.1754944e-38, %v2213
      %v2215 = vsel %vm2212, %v2214, %v2210
      %v2216 = vmul.f32 1.0, %v2215
      %v2217 = vmul.f32 %v2186, 1.0614054
      %v2218 = vmul.f32 %v2201, 1.0614054
      %v2219 = vmul.f32 %v2216, 1.0614054
      %v2220 = vadd.f32 %v2217, -1.4531521
      %v2221 = vadd.f32 %v2218, -1.4531521
      %v2222 = vadd.f32 %v2219, -1.4531521
      %v2223 = vmul.f32 %v2186, %v2220
      %v2224 = vmul.f32 %v2201, %v2221
      %v2225 = vmul.f32 %v2216, %v2222
      %v2226 = vadd.f32 %v2223, 1.4214138
      %v2227 = vadd.f32 %v2224, 1.4214138
      %v2228 = vadd.f32 %v2225, 1.4214138
      %v2229 = vmul.f32 %v2186, %v2226
      %v2230 = vmul.f32 %v2201, %v2227
      %v2231 = vmul.f32 %v2216, %v2228
      %v2232 = vadd.f32 %v2229, -0.28449672
      %v2233 = vadd.f32 %v2230, -0.28449672
      %v2234 = vadd.f32 %v2231, -0.28449672
      %v2235 = vmul.f32 %v2186, %v2232
      %v2236 = vmul.f32 %v2201, %v2233
      %v2237 = vmul.f32 %v2216, %v2234
      %v2238 = vadd.f32 %v2235, 0.2548296
      %v2239 = vadd.f32 %v2236, 0.2548296
      %v2240 = vadd.f32 %v2237, 0.2548296
      %v2241 = vmul.f32 %v2186, %v2238
      %v2242 = vmul.f32 %v2201, %v2239
      %v2243 = vmul.f32 %v2216, %v2240
      %v2244 = vmul.f32 %v2163, %v2163
      %v2245 = vmul.f32 %v2164, %v2164
      %v2246 = vmul.f32 %v2165, %v2165
      %v2247 = vsub.f32 0.0, %v2244
      %v2248 = vsub.f32 0.0, %v2245
      %v2249 = vsub.f32 0.0, %v2246
      %v2250 = vmul.f32 %v2247, 1.442695
      %v2251 = vpow.pop %v2250
      %v2252 = vmul.f32 %v2248, 1.442695
      %v2253 = vpow.pop %v2252
      %v2254 = vmul.f32 %v2249, 1.442695
      %v2255 = vpow.pop %v2254
      %v2256 = vmul.f32 %v2241, %v2251
      %v2257 = vmul.f32 %v2242, %v2253
      %v2258 = vmul.f32 %v2243, %v2255
      %v2259 = vsub.f32 1.0, %v2256
      %v2260 = vsub.f32 1.0, %v2257
      %v2261 = vsub.f32 1.0, %v2258
      %vm2262 = vcmp.ge.f32.partialorder %v2160, 0.0
      %vm2263 = vcmp.ge.f32.partialorder %v2161, 0.0
      %vm2264 = vcmp.ge.f32.partialorder %v2162, 0.0
      %v2265 = vsub.f32 0.0, %v2259
      %v2266 = vsub.f32 0.0, %v2260
      %v2267 = vsub.f32 0.0, %v2261
      %v2268 = vsel %vm2262, %v2259, %v2265
      %v2269 = vsel %vm2263, %v2260, %v2266
      %v2270 = vsel %vm2264, %v2261, %v2267
      %v2271 = vmul.f32 %v2152, 0.5
      %v2272 = vmul.f32 %v2154, 0.5
      %v2273 = vmul.f32 %v2157, 0.5
      %v2274 = vadd.f32 %v2268, 1.0
      %v2275 = vadd.f32 %v2269, 1.0
      %v2276 = vadd.f32 %v2270, 1.0
      %v2277 = vmul.f32 %v2271, %v2274
      %v2278 = vmul.f32 %v2272, %v2275
      %v2279 = vmul.f32 %v2273, %v2276
      %v2280 = vpack.c.bf16 %v2278, %v2277
      %v2281 = vpack.c.bf16 %v2279, %v2279
      %s2282 = scalar_lea.vmem %s8, 32
      %v2283 = vld [vmem:[%s2282] sm:$0xf]
      %v2284 = vld [vmem:[%s2282 + $0x4] sm:$0xf]
      %v2285 = vld [vmem:[%s2282 + $0x8] sm:$0xf]
      %v2286 = vld [vmem:[%s2282 + $0xc] sm:$0xf]
      %v2287 = vld [vmem:[%s2282 + $0x10] sm:$0xf]
      %v2288 = vld [vmem:[%s2282 + $0x14] sm:$0xf]
      %v2289 = vld [vmem:[%s2282 + $0x18] sm:$0xf]
      %v2290 = vld [vmem:[%s2282 + $0x1c] sm:$0xf]
      %v2291 = vld [vmem:[%s1401 + $0x5] sm:$0x1]
      %v2292 = vperm.slane %v2291, 0
      %v2301 = vunpack.c.l.b16 %v2283
      %v2302 = vunpack.c.l.b16 %v2284
      %v2303 = vunpack.c.l.b16 %v2285
      %v2304 = vunpack.c.l.b16 %v2286
      %v2305 = vunpack.c.l.b16 %v2287
      %v2306 = vunpack.c.l.b16 %v2288
      %v2307 = vunpack.c.l.b16 %v2289
      %v2308 = vunpack.c.l.b16 %v2290
      %v2309 = vpack.c.b16 %v2302, %v2301
      %v2310 = vpack.c.b16 %v2304, %v2303
      %v2311 = vpack.c.b16 %v2306, %v2305
      %v2312 = vpack.c.b16 %v2308, %v2307
      %v2318 = vsel %vm1373, %v2280, 0
      %v2321 = vsel %vm1373, %v2281, 0
      %2323 = vmatpush.bf16.msra.mxu0 0
      %2324 = vmatpush.bf16.msra.mxu0 0
      %2325 = vmatpush.bf16.msra.mxu0 0
      %2326 = vmatpush.bf16.msra.mxu0 0
      %2327 = vmatpush.bf16.msra.mxu0 %v2312
      %2328 = vmatpush.bf16.msra.mxu0 %v2311
      %2329 = vmatpush.bf16.msra.mxu0 %v2310
      %2330 = vmatpush.bf16.msra.mxu0 %v2309
      %2331 = vmatmul.bf16.gmra.mxu0 %v2318
      %v2332 = vpop.f32.mrf.mxu0
      %v2333 = vadd.f32 %v2292, %v2332
      %v2334 = vpop.f32.mrf.mxu0
      %v2335 = vadd.f32 %v2292, %v2334
      %2336 = vmatmul.bf16.gmra.mxu0 %v2321
      %v2337 = vpop.f32.mrf.mxu0
      %v2338 = vadd.f32 %v2292, %v2337
      %v2339 = vpop.f32.mrf.mxu0
      %2340 = vdwg.mxu0
      %v2341 = vadd.f32 %v2036, %v2333
      %v2342 = vadd.f32 %v2037, %v2335
      %v2343 = vadd.f32 %v2038, %v2338
      %v2344 = vld [vmem:[%s10] sm:$0x1]
      %v2345 = vld [vmem:[%s10 + $0x1] sm:$0x1]
      %v2346 = vsel %vm447, %v2341, 0.0
      %2347 = vadd.xlane.f32.xlu0 %v2346
      %v2348 = vpop.xlane.xlu0 %2347
      %v2349 = vsel %vm447, %v2342, 0.0
      %2350 = vadd.xlane.f32.xlu0 %v2349
      %v2351 = vpop.xlane.xlu0 %2350
      %v2352 = vsel %vm454, %v2343, 0.0
      %2353 = vadd.xlane.f32.xlu0 %v2352
      %v2354 = vpop.xlane.xlu0 %2353
      %v2355 = vmul.f32 %v2348, %v464
      %v2356 = vmul.f32 %v2351, %v464
      %v2357 = vmul.f32 %v2354, %v464
      %v2358 = vsub.f32 %v2341, %v2355
      %v2359 = vsub.f32 %v2342, %v2356
      %v2360 = vsub.f32 %v2343, %v2357
      %v2361 = vmul.f32 %v2358, %v2358
      %v2362 = vmul.f32 %v2359, %v2359
      %v2363 = vmul.f32 %v2360, %v2360
      %v2364 = vsel %vm447, %v2361, 0.0
      %2365 = vadd.xlane.f32.xlu0 %v2364
      %v2366 = vpop.xlane.xlu0 %2365
      %v2367 = vsel %vm447, %v2362, 0.0
      %2368 = vadd.xlane.f32.xlu0 %v2367
      %v2369 = vpop.xlane.xlu0 %2368
      %v2370 = vsel %vm454, %v2363, 0.0
      %2371 = vadd.xlane.f32.xlu0 %v2370
      %v2372 = vpop.xlane.xlu0 %2371
      %v2373 = vmul.f32 %v2366, %v464
      %v2374 = vmul.f32 %v2369, %v464
      %v2375 = vmul.f32 %v2372, %v464
      %v2376 = vadd.f32 %v2373, 1e-12
      %v2377 = vadd.f32 %v2374, 1e-12
      %v2378 = vadd.f32 %v2375, 1e-12
      %v2379 = vrsqrt.pop %v2376
      %v2380 = vmul.f32 %v2379, %v2376
      %v2381 = vmul.f32 %v2380, %v2379
      %v2382 = vmul.f32 0.5, %v2381
      %v2383 = vsub.f32 1.5, %v2382
      %v2384 = vmul.f32 %v2379, %v2383
      %vm2385 = vweird.f32 %v2376
      %vm2386 = vweird.f32 %v2379
      %vm2387 = vmor %vm2385, %vm2386
      %v2388 = vsel %vm2387, %v2379, %v2384
      %v2389 = vrsqrt.pop %v2377
      %v2390 = vmul.f32 %v2389, %v2377
      %v2391 = vmul.f32 %v2390, %v2389
      %v2392 = vmul.f32 0.5, %v2391
      %v2393 = vsub.f32 1.5, %v2392
      %v2394 = vmul.f32 %v2389, %v2393
      %vm2395 = vweird.f32 %v2377
      %vm2396 = vweird.f32 %v2389
      %vm2397 = vmor %vm2395, %vm2396
      %v2398 = vsel %vm2397, %v2389, %v2394
      %v2399 = vrsqrt.pop %v2378
      %v2400 = vmul.f32 %v2399, %v2378
      %v2401 = vmul.f32 %v2400, %v2399
      %v2402 = vmul.f32 0.5, %v2401
      %v2403 = vsub.f32 1.5, %v2402
      %v2404 = vmul.f32 %v2399, %v2403
      %vm2405 = vweird.f32 %v2378
      %vm2406 = vweird.f32 %v2399
      %vm2407 = vmor %vm2405, %vm2406
      %v2408 = vsel %vm2407, %v2399, %v2404
      %v2409 = vmul.f32 %v2358, %v2388
      %v2410 = vmul.f32 %v2359, %v2398
      %v2411 = vmul.f32 %v2360, %v2408
      %v2412 = vperm.slane %v2344, 0
      %v2413 = vmul.f32 %v2409, %v2412
      %v2414 = vmul.f32 %v2410, %v2412
      %v2415 = vmul.f32 %v2411, %v2412
      %v2416 = vperm.slane %v2345, 0
      %v2417 = vadd.f32 %v2413, %v2416
      %v2418 = vadd.f32 %v2414, %v2416
      %v2419 = vadd.f32 %v2415, %v2416
      %2420 = vst.msk [vmem:[%s386] sm:$0xff] %vm447, %v2417
      %2421 = vst.msk [vmem:[%s386 + $0x8] sm:$0xff] %vm447, %v2418
      %2422 = vst.msk [vmem:[%s386 + $0x10] sm:$0x1] %vm454, %v2419
      %p2423 = scmp.lt.s32.totalorder %s22, 1
      %s2424 = scalar_select %p2423, %s22, 1
      %s2425 = smul.addr %s2424, 3
      %s2426 = smul.addr %s2425, 8
      %s2427 = scalar_lea.vmem %s11, %s2426
      // Predicated region
      $region65: #{vit_forward.1} parent=63 // pred_check
        %p2428 = pneg %p276
      $region66: #{vit_forward.1} parent=63 // pred_check_branch
        %2430 = sbr.rel (%p2428) target = $region68
      $region67: #{vit_forward.1} parent=63 // pred_region
        _
      $region68: #{vit_forward.1} parent=63 // pred_fallthru
        _
    $region64: #{vit_forward.1} parent=5 // pred_fallthru
      _
    %p2431 = scmp.le.s32.totalorder 2, %s17
    // Predicated region
    $region69: #{vit_forward.1} parent=5 // pred_check
      %p2432 = pneg %p2431
    $region70: #{vit_forward.1} parent=5 // pred_check_branch
      %2434 = sbr.rel (%p2432) target = $region72
    $region71: #{vit_forward.1} parent=5 // pred_region
      %s2435 = ssub.s32 %s17, 2
      // Predicated region
      $region73: #{vit_forward.1} parent=71 // pred_check
        %p2436 = pneg %p282
      $region74: #{vit_forward.1} parent=71 // pred_check_branch
        %2438 = sbr.rel (%p2436) target = $region76
      $region75: #{vit_forward.1} parent=71 // pred_region
        %p2439 = scmp.lt.s32.totalorder %s23, 1
        %s2440 = scalar_select %p2439, %s23, 1
        %s2441 = smul.addr %s2440, 3
        %s2442 = smul.addr %s2441, 8
        %s2443 = scalar_lea.vmem %s11, %s2442
      $region76: #{vit_forward.1} parent=71 // pred_fallthru
        _
    $region72: #{vit_forward.1} parent=5 // pred_fallthru
      _
  $region6: #{vit_forward.1} parent=0 // loop_footer
    %s21 = sadd.s32 1, %s17
  $region7: #{vit_forward.1} parent=0 // loop_footer_branch
    %16 = sbr.rel target = $region3
  $region8: #{vit_forward.1} parent=0 // loop_exit
    _

</llo_original>
